<compile_context>
chip_gen: v7x
topology: tpu7x:2x2x1
jax: 0.10.0
libtpu: 0.0.40
codegen_flags: <defaults>
</compile_context>

<pallas_src>
import math
import functools

import numpy as np
import jax
import jax.numpy as jnp
from jax.experimental import pallas as pl
from jax.experimental.pallas import tpu as pltpu  # noqa: F401 (not needed at demo scale)


# ----------------------------- Pallas kernels -----------------------------

def _block_kernel(x_ref, *refs, H, eps, has_pos):
    """One full ResidualAttentionBlock, everything resident in VMEM."""
    refs = list(refs)
    pos_ref = refs.pop(0) if has_pos else None
    (mask_ref,
     ln1_g_ref, ln1_b_ref,
     wqkv_ref, bqkv_ref,
     wo_ref, bo_ref,
     ln2_g_ref, ln2_b_ref,
     wfc_ref, bfc_ref,
     wpr_ref, bpr_ref,
     o_ref) = refs

    x = x_ref[...]                                           # (M, E)
    if has_pos:                                              # fused pos-embedding add
        x = x + pos_ref[...]
    M, E = x.shape
    Dh = E // H
    scale = 1.0 / math.sqrt(Dh)

    # ---- ln_1: training-mode BatchNorm1d (batch stats, biased var), fused ----
    mu = jnp.mean(x, axis=0, keepdims=True)
    var = jnp.mean(jnp.square(x - mu), axis=0, keepdims=True)
    h = (x - mu) * jax.lax.rsqrt(var + eps) * ln1_g_ref[...] + ln1_b_ref[...]

    # ---- fused QKV projection: single (E, 3E) matmul ----
    qkv = jnp.dot(h, wqkv_ref[...], preferred_element_type=jnp.float32) + bqkv_ref[...]
    q = qkv[:, :E]
    k = qkv[:, E:2 * E]
    v = qkv[:, 2 * E:]

    # ---- multi-head self-attention over all B*L rows at once.
    #      Block-diagonal additive mask keeps batch elements independent;
    #      out-projection is accumulated per head (no transposes / concats). ----
    bias = mask_ref[...]                                     # (M, M): 0 / -1e30
    w_o = wo_ref[...]                                        # (E, E)
    acc = None
    for hh in range(H):
        sl = slice(hh * Dh, (hh + 1) * Dh)
        qh, kh, vh = q[:, sl], k[:, sl], v[:, sl]            # (M, Dh)
        # q @ k^T without materializing a transpose
        s = jax.lax.dot_general(qh, kh, (((1,), (1,)), ((), ())),
                                preferred_element_type=jnp.float32)
        s = s * scale + bias
        s = s - jnp.max(s, axis=-1, keepdims=True)
        p = jnp.exp(s)
        p = p / jnp.sum(p, axis=-1, keepdims=True)
        oh = jnp.dot(p, vh, preferred_element_type=jnp.float32)          # (M, Dh)
        contrib = jnp.dot(oh, w_o[sl, :], preferred_element_type=jnp.float32)
        acc = contrib if acc is None else acc + contrib
    x = x + acc + bo_ref[...]        # residual (dropout1: identity, inference mode)

    # ---- ln_2 + MLP (c_fc -> QuickGELU -> c_proj) + residual ----
    mu2 = jnp.mean(x, axis=0, keepdims=True)
    var2 = jnp.mean(jnp.square(x - mu2), axis=0, keepdims=True)
    h2 = (x - mu2) * jax.lax.rsqrt(var2 + eps) * ln2_g_ref[...] + ln2_b_ref[...]
    h2 = jnp.dot(h2, wfc_ref[...], preferred_element_type=jnp.float32) + bfc_ref[...]
    h2 = h2 * jax.nn.sigmoid(1.702 * h2)                     # QuickGELU
    x = x + jnp.dot(h2, wpr_ref[...], preferred_element_type=jnp.float32) + bpr_ref[...]

    o_ref[...] = x.astype(o_ref.dtype)


def _head_kernel(x_ref, g_ref, b_ref, w_ref, pb_ref, o_ref, *, eps):
    """Fused ln_post (training-mode BatchNorm) + Linear(width -> 1) for all rows."""
    x = x_ref[...]                                           # (M, E)
    mu = jnp.mean(x, axis=0, keepdims=True)
    var = jnp.mean(jnp.square(x - mu), axis=0, keepdims=True)
    xn = (x - mu) * jax.lax.rsqrt(var + eps) * g_ref[...] + b_ref[...]
    # projection to a single logit per row (cls-row selection is index glue outside)
    y = jnp.sum(xn * w_ref[...], axis=-1, keepdims=True) + pb_ref[...]   # (M, 1)
    o_ref[...] = y.astype(o_ref.dtype)


# ----------------------------- kernel wrappers -----------------------------

def fused_block(x, blk, attn_bias, *, num_heads, pos=None, eps=1e-5):
    M, E = x.shape
    kernel = functools.partial(_block_kernel, H=num_heads, eps=eps,
                               has_pos=pos is not None)
    args = [x]
    if pos is not None:
        args.append(pos)
    args += [
        attn_bias,
        blk["ln1_g"].reshape(1, E), blk["ln1_b"].reshape(1, E),
        blk["w_qkv"], blk["b_qkv"].reshape(1, 3 * E),
        blk["w_o"], blk["b_o"].reshape(1, E),
        blk["ln2_g"].reshape(1, E), blk["ln2_b"].reshape(1, E),
        blk["w_fc"], blk["b_fc"].reshape(1, 4 * E),
        blk["w_proj"], blk["b_proj"].reshape(1, E),
    ]
    # No grid: single invocation, every operand whole-array resident in VMEM
    # (weights + activations are tiny at demo scale; see TODO for tiling).
    return pl.pallas_call(
        kernel,
        out_shape=jax.ShapeDtypeStruct((M, E), jnp.float32),
    )(*args)


def fused_head(x, gamma, beta, proj_w, proj_b, *, eps=1e-5):
    M, E = x.shape
    kernel = functools.partial(_head_kernel, eps=eps)
    return pl.pallas_call(
        kernel,
        out_shape=jax.ShapeDtypeStruct((M, 1), jnp.float32),
    )(x, gamma.reshape(1, E), beta.reshape(1, E),
      proj_w.reshape(1, E), proj_b.reshape(1, 1))


# ----------------------------- parameters ---------------------------------

def sinusoidal_pos_embedding(sequence_length, d_model):
    f = np.zeros((sequence_length, d_model), dtype=np.float32)
    for pos in range(sequence_length):
        for i in range(0, d_model, 2):
            div_term = math.pow(10000, 2 * i / d_model)
            f[pos, i] = math.sin(pos / div_term)
            if i + 1 < d_model:
                f[pos, i + 1] = math.cos(pos / div_term)
    return jnp.asarray(f)


def init_params(key, *, width, num_layers, output_length):
    E = width
    keys = jax.random.split(key, 2 + num_layers)
    p = {
        "cls_token": jax.random.normal(keys[0], (1, 1, E), jnp.float32),
        "pos_embedding": sinusoidal_pos_embedding(output_length, E),
        "ln_post_g": jnp.ones((E,), jnp.float32),
        "ln_post_b": jnp.zeros((E,), jnp.float32),
        "proj_w": 0.02 * jax.random.normal(keys[1], (E, 1), jnp.float32),
        "proj_b": jnp.zeros((1,), jnp.float32),
    }
    blocks = []
    for l in range(num_layers):
        ks = jax.random.split(keys[2 + l], 4)
        blocks.append({
            # wq / wk / wv fused into a single (E, 3E) weight
            "w_qkv": 0.02 * jax.random.normal(ks[0], (E, 3 * E), jnp.float32),
            "b_qkv": jnp.zeros((3 * E,), jnp.float32),
            "w_o": 0.02 * jax.random.normal(ks[1], (E, E), jnp.float32),
            "b_o": jnp.zeros((E,), jnp.float32),
            "ln1_g": jnp.ones((E,), jnp.float32),
            "ln1_b": jnp.zeros((E,), jnp.float32),
            "ln2_g": jnp.ones((E,), jnp.float32),
            "ln2_b": jnp.zeros((E,), jnp.float32),
            "w_fc": 0.02 * jax.random.normal(ks[2], (E, 4 * E), jnp.float32),
            "b_fc": jnp.zeros((4 * E,), jnp.float32),
            "w_proj": 0.02 * jax.random.normal(ks[3], (4 * E, E), jnp.float32),
            "b_proj": jnp.zeros((E,), jnp.float32),
        })
    p["blocks"] = blocks
    return p


# ----------------------------- forward pass --------------------------------

def discriminator_forward(params, imu, image, shuffle_key, *, num_heads):
    """imu: (B, T_imu, width), image: (B, T_img, width) -> logits (B, 1)."""
    B, T_imu, C = imu.shape
    E = params["cls_token"].shape[-1]
    assert C == E and image.shape[-1] == E
    assert len(params["blocks"]) >= 1

    # shuffle_half_of_tensors: permute the first half of the batch (data movement)
    mid = B // 2
    if mid > 0:
        perm = jax.random.permutation(shuffle_key, mid)
        imu = jnp.concatenate([imu[:mid][perm], imu[mid:]], axis=0)

    # cls token + sequence concat (data-movement glue)
    cls = jnp.broadcast_to(params["cls_token"], (B, 1, E)).astype(jnp.float32)
    x = jnp.concatenate([cls, imu, image], axis=1)            # (B, L, E)
    L = x.shape[1]
    M = B * L
    x = x.reshape(M, E)                                       # rows ordered (batch, seq)

    # positional embedding broadcast to (M, E); the add is fused into block 0
    pos = jnp.tile(params["pos_embedding"][:L], (B, 1))

    # additive block-diagonal mask: attention stays within each batch element
    bids = jnp.repeat(jnp.arange(B, dtype=jnp.int32), L)
    attn_bias = jnp.where(bids[:, None] == bids[None, :], 0.0, -1e30
                          ).astype(jnp.float32)               # (M, M)

    # transformer: one fused Pallas kernel per residual block
    for i, blk in enumerate(params["blocks"]):
        x = fused_block(x, blk, attn_bias, num_heads=num_heads,
                        pos=pos if i == 0 else None)

    # fused ln_post + projection, then pick the cls row of each batch element
    logits_all = fused_head(x, params["ln_post_g"], params["ln_post_b"],
                            params["proj_w"], params["proj_b"])          # (M, 1)
    return logits_all.reshape(B, L, 1)[:, 0, :]                          # (B, 1)


# ----------------------------- demo ----------------------------------------

if __name__ == "__main__":
    width = 32
    num_heads = 4
    num_layers = 2
    B = 2
    T_imu = 8
    T_img = 8
    output_length = 1 + T_imu + T_img        # cls + imu + image = 17

    key = jax.random.PRNGKey(0)
    pkey, ikey, mkey, skey = jax.random.split(key, 4)
    params = init_params(pkey, width=width, num_layers=num_layers,
                         output_length=output_length)
    imu = jax.random.normal(ikey, (B, T_imu, width), jnp.float32)
    image = jax.random.normal(mkey, (B, T_img, width), jnp.float32)

    fwd = jax.jit(functools.partial(discriminator_forward, num_heads=num_heads))
    out = jax.block_until_ready(fwd(params, imu, image, skey))

    assert out.shape == (B, 1), out.shape
    assert bool(jnp.all(jnp.isfinite(out)))
    print("KERNEL_OK")
</pallas_src>

<mosaic_0001>
module attributes {stable_mosaic.version = 11 : i64} {
  func.func @_head_kernel(%arg0: memref<34x32xf32, #tpu.memory_space<vmem>>, %arg1: memref<1x32xf32, #tpu.memory_space<vmem>>, %arg2: memref<1x32xf32, #tpu.memory_space<vmem>>, %arg3: memref<1x32xf32, #tpu.memory_space<vmem>>, %arg4: memref<1x1xf32, #tpu.memory_space<vmem>>, %arg5: memref<34x1xf32, #tpu.memory_space<vmem>>) attributes {dimension_semantics = [], scalar_prefetch = 0 : i64, scratch_operands = 0 : i64, tpu.core_type = #tpu.core_type<tc>} {
    %c0 = arith.constant 0 : index
    %c0_0 = arith.constant 0 : index
    %0 = vector.load %arg0[%c0, %c0_0] : memref<34x32xf32, #tpu.memory_space<vmem>>, vector<34x32xf32>
    %cst = arith.constant dense<0.000000e+00> : vector<32xf32>
    %1 = vector.multi_reduction <add>, %0, %cst [0] : vector<34x32xf32> to vector<32xf32>
    %2 = vector.shape_cast %1 : vector<32xf32> to vector<1x32xf32>
    %cst_1 = arith.constant 3.400000e+01 : f32
    %3 = vector.broadcast %cst_1 : f32 to vector<1x32xf32>
    %4 = arith.divf %2, %3 : vector<1x32xf32>
    %5 = vector.broadcast %4 : vector<1x32xf32> to vector<34x32xf32>
    %6 = arith.subf %0, %5 : vector<34x32xf32>
    %7 = arith.mulf %6, %6 : vector<34x32xf32>
    %cst_2 = arith.constant dense<0.000000e+00> : vector<32xf32>
    %8 = vector.multi_reduction <add>, %7, %cst_2 [0] : vector<34x32xf32> to vector<32xf32>
    %9 = vector.shape_cast %8 : vector<32xf32> to vector<1x32xf32>
    %cst_3 = arith.constant 3.400000e+01 : f32
    %10 = vector.broadcast %cst_3 : f32 to vector<1x32xf32>
    %11 = arith.divf %9, %10 : vector<1x32xf32>
    %12 = vector.broadcast %4 : vector<1x32xf32> to vector<34x32xf32>
    %13 = arith.subf %0, %12 : vector<34x32xf32>
    %cst_4 = arith.constant 9.99999974E-6 : f32
    %14 = vector.broadcast %cst_4 : f32 to vector<1x32xf32>
    %15 = arith.addf %11, %14 : vector<1x32xf32>
    %16 = math.rsqrt %15 : vector<1x32xf32>
    %17 = vector.broadcast %16 : vector<1x32xf32> to vector<34x32xf32>
    %18 = arith.mulf %13, %17 : vector<34x32xf32>
    %c0_5 = arith.constant 0 : index
    %c0_6 = arith.constant 0 : index
    %19 = vector.load %arg1[%c0_5, %c0_6] : memref<1x32xf32, #tpu.memory_space<vmem>>, vector<1x32xf32>
    %20 = vector.broadcast %19 : vector<1x32xf32> to vector<34x32xf32>
    %21 = arith.mulf %18, %20 : vector<34x32xf32>
    %c0_7 = arith.constant 0 : index
    %c0_8 = arith.constant 0 : index
    %22 = vector.load %arg2[%c0_7, %c0_8] : memref<1x32xf32, #tpu.memory_space<vmem>>, vector<1x32xf32>
    %23 = vector.broadcast %22 : vector<1x32xf32> to vector<34x32xf32>
    %24 = arith.addf %21, %23 : vector<34x32xf32>
    %c0_9 = arith.constant 0 : index
    %c0_10 = arith.constant 0 : index
    %25 = vector.load %arg3[%c0_9, %c0_10] : memref<1x32xf32, #tpu.memory_space<vmem>>, vector<1x32xf32>
    %26 = vector.broadcast %25 : vector<1x32xf32> to vector<34x32xf32>
    %27 = arith.mulf %24, %26 : vector<34x32xf32>
    %cst_11 = arith.constant dense<0.000000e+00> : vector<34xf32>
    %28 = vector.multi_reduction <add>, %27, %cst_11 [1] : vector<34x32xf32> to vector<34xf32>
    %29 = vector.shape_cast %28 : vector<34xf32> to vector<34x1xf32>
    %c0_12 = arith.constant 0 : index
    %c0_13 = arith.constant 0 : index
    %30 = vector.load %arg4[%c0_12, %c0_13] : memref<1x1xf32, #tpu.memory_space<vmem>>, vector<1x1xf32>
    %31 = vector.broadcast %30 : vector<1x1xf32> to vector<34x1xf32>
    %32 = arith.addf %29, %31 : vector<34x1xf32>
    %c0_14 = arith.constant 0 : index
    %c0_15 = arith.constant 0 : index
    %33 = vector.load %arg5[%c0_14, %c0_15] : memref<34x1xf32, #tpu.memory_space<vmem>>, vector<34x1xf32>
    tpu.vector_store %arg5[%c0_14, %c0_15], %32 {strides = array<i32>} : memref<34x1xf32, #tpu.memory_space<vmem>>, vector<34x1xf32>,
    return
  }
}

module attributes {stable_mosaic.version = 11 : i64} {
  func.func @_block_kernel(%arg0: memref<34x32xf32, #tpu.memory_space<vmem>>, %arg1: memref<34x32xf32, #tpu.memory_space<vmem>>, %arg2: memref<34x34xf32, #tpu.memory_space<vmem>>, %arg3: memref<1x32xf32, #tpu.memory_space<vmem>>, %arg4: memref<1x32xf32, #tpu.memory_space<vmem>>, %arg5: memref<32x96xf32, #tpu.memory_space<vmem>>, %arg6: memref<1x96xf32, #tpu.memory_space<vmem>>, %arg7: memref<32x32xf32, #tpu.memory_space<vmem>>, %arg8: memref<1x32xf32, #tpu.memory_space<vmem>>, %arg9: memref<1x32xf32, #tpu.memory_space<vmem>>, %arg10: memref<1x32xf32, #tpu.memory_space<vmem>>, %arg11: memref<32x128xf32, #tpu.memory_space<vmem>>, %arg12: memref<1x128xf32, #tpu.memory_space<vmem>>, %arg13: memref<128x32xf32, #tpu.memory_space<vmem>>, %arg14: memref<1x32xf32, #tpu.memory_space<vmem>>, %arg15: memref<34x32xf32, #tpu.memory_space<vmem>>) attributes {dimension_semantics = [], scalar_prefetch = 0 : i64, scratch_operands = 0 : i64, tpu.core_type = #tpu.core_type<tc>} {
    %c0 = arith.constant 0 : index
    %c0_0 = arith.constant 0 : index
    %0 = vector.load %arg0[%c0, %c0_0] : memref<34x32xf32, #tpu.memory_space<vmem>>, vector<34x32xf32>
    %c0_1 = arith.constant 0 : index
    %c0_2 = arith.constant 0 : index
    %1 = vector.load %arg1[%c0_1, %c0_2] : memref<34x32xf32, #tpu.memory_space<vmem>>, vector<34x32xf32>
    %2 = arith.addf %0, %1 : vector<34x32xf32>
    %cst = arith.constant dense<0.000000e+00> : vector<32xf32>
    %3 = vector.multi_reduction <add>, %2, %cst [0] : vector<34x32xf32> to vector<32xf32>
    %4 = vector.shape_cast %3 : vector<32xf32> to vector<1x32xf32>
    %cst_3 = arith.constant 3.400000e+01 : f32
    %5 = vector.broadcast %cst_3 : f32 to vector<1x32xf32>
    %6 = arith.divf %4, %5 : vector<1x32xf32>
    %7 = vector.broadcast %6 : vector<1x32xf32> to vector<34x32xf32>
    %8 = arith.subf %2, %7 : vector<34x32xf32>
    %9 = arith.mulf %8, %8 : vector<34x32xf32>
    %cst_4 = arith.constant dense<0.000000e+00> : vector<32xf32>
    %10 = vector.multi_reduction <add>, %9, %cst_4 [0] : vector<34x32xf32> to vector<32xf32>
    %11 = vector.shape_cast %10 : vector<32xf32> to vector<1x32xf32>
    %cst_5 = arith.constant 3.400000e+01 : f32
    %12 = vector.broadcast %cst_5 : f32 to vector<1x32xf32>
    %13 = arith.divf %11, %12 : vector<1x32xf32>
    %14 = vector.broadcast %6 : vector<1x32xf32> to vector<34x32xf32>
    %15 = arith.subf %2, %14 : vector<34x32xf32>
    %cst_6 = arith.constant 9.99999974E-6 : f32
    %16 = vector.broadcast %cst_6 : f32 to vector<1x32xf32>
    %17 = arith.addf %13, %16 : vector<1x32xf32>
    %18 = math.rsqrt %17 : vector<1x32xf32>
    %19 = vector.broadcast %18 : vector<1x32xf32> to vector<34x32xf32>
    %20 = arith.mulf %15, %19 : vector<34x32xf32>
    %c0_7 = arith.constant 0 : index
    %c0_8 = arith.constant 0 : index
    %21 = vector.load %arg3[%c0_7, %c0_8] : memref<1x32xf32, #tpu.memory_space<vmem>>, vector<1x32xf32>
    %22 = vector.broadcast %21 : vector<1x32xf32> to vector<34x32xf32>
    %23 = arith.mulf %20, %22 : vector<34x32xf32>
    %c0_9 = arith.constant 0 : index
    %c0_10 = arith.constant 0 : index
    %24 = vector.load %arg4[%c0_9, %c0_10] : memref<1x32xf32, #tpu.memory_space<vmem>>, vector<1x32xf32>
    %25 = vector.broadcast %24 : vector<1x32xf32> to vector<34x32xf32>
    %26 = arith.addf %23, %25 : vector<34x32xf32>
    %c0_11 = arith.constant 0 : index
    %c0_12 = arith.constant 0 : index
    %27 = vector.load %arg5[%c0_11, %c0_12] : memref<32x96xf32, #tpu.memory_space<vmem>>, vector<32x96xf32>
    %cst_13 = arith.constant dense<0.000000e+00> : vector<34x96xf32>
    %28 = tpu.matmul %26, %27, %cst_13 {dimension_numbers = #tpu.dot_dimension_numbers<[1], [0], [0], [1], [0, 0, 1, 1], [], []>} : vector<34x32xf32>, vector<32x96xf32>, vector<34x96xf32> -> vector<34x96xf32>
    %c0_14 = arith.constant 0 : index
    %c0_15 = arith.constant 0 : index
    %29 = vector.load %arg6[%c0_14, %c0_15] : memref<1x96xf32, #tpu.memory_space<vmem>>, vector<1x96xf32>
    %30 = vector.broadcast %29 : vector<1x96xf32> to vector<34x96xf32>
    %31 = arith.addf %28, %30 : vector<34x96xf32>
    %32 = vector.extract_strided_slice %31 {offsets = [0, 0], sizes = [34, 32], strides = [1, 1]} : vector<34x96xf32> to vector<34x32xf32>
    %33 = vector.extract_strided_slice %31 {offsets = [0, 32], sizes = [34, 32], strides = [1, 1]} : vector<34x96xf32> to vector<34x32xf32>
    %34 = vector.extract_strided_slice %31 {offsets = [0, 64], sizes = [34, 32], strides = [1, 1]} : vector<34x96xf32> to vector<34x32xf32>
    %c0_16 = arith.constant 0 : index
    %c0_17 = arith.constant 0 : index
    %35 = vector.load %arg2[%c0_16, %c0_17] : memref<34x34xf32, #tpu.memory_space<vmem>>, vector<34x34xf32>
    %c0_18 = arith.constant 0 : index
    %c0_19 = arith.constant 0 : index
    %36 = vector.load %arg7[%c0_18, %c0_19] : memref<32x32xf32, #tpu.memory_space<vmem>>, vector<32x32xf32>
    %37 = vector.extract_strided_slice %32 {offsets = [0, 0], sizes = [34, 8], strides = [1, 1]} : vector<34x32xf32> to vector<34x8xf32>
    %38 = vector.extract_strided_slice %33 {offsets = [0, 0], sizes = [34, 8], strides = [1, 1]} : vector<34x32xf32> to vector<34x8xf32>
    %39 = vector.extract_strided_slice %34 {offsets = [0, 0], sizes = [34, 8], strides = [1, 1]} : vector<34x32xf32> to vector<34x8xf32>
    %cst_20 = arith.constant dense<0.000000e+00> : vector<34x34xf32>
    %40 = tpu.matmul %37, %38, %cst_20 {dimension_numbers = #tpu.dot_dimension_numbers<[1], [1], [0], [0], [0, 0, 1, 0], [], []>} : vector<34x8xf32>, vector<34x8xf32>, vector<34x34xf32> -> vector<34x34xf32>
    %cst_21 = arith.constant 0.353553385 : f32
    %41 = vector.broadcast %cst_21 : f32 to vector<34x34xf32>
    %42 = arith.mulf %40, %41 : vector<34x34xf32>
    %43 = arith.addf %42, %35 : vector<34x34xf32>
    %cst_22 = arith.constant dense<0xFF800000> : vector<34xf32>
    %44 = vector.multi_reduction <maximumf>, %43, %cst_22 [1] : vector<34x34xf32> to vector<34xf32>
    %45 = vector.shape_cast %44 : vector<34xf32> to vector<34x1xf32>
    %46 = vector.broadcast %45 : vector<34x1xf32> to vector<34x34xf32>
    %47 = arith.subf %43, %46 : vector<34x34xf32>
    %48 = math.exp %47 : vector<34x34xf32>
    %cst_23 = arith.constant dense<0.000000e+00> : vector<34xf32>
    %49 = vector.multi_reduction <add>, %48, %cst_23 [1] : vector<34x34xf32> to vector<34xf32>
    %50 = vector.shape_cast %49 : vector<34xf32> to vector<34x1xf32>
    %51 = vector.broadcast %50 : vector<34x1xf32> to vector<34x34xf32>
    %52 = arith.divf %48, %51 : vector<34x34xf32>
    %cst_24 = arith.constant dense<0.000000e+00> : vector<34x8xf32>
    %53 = tpu.matmul %52, %39, %cst_24 {dimension_numbers = #tpu.dot_dimension_numbers<[1], [0], [0], [1], [0, 0, 1, 1], [], []>} : vector<34x34xf32>, vector<34x8xf32>, vector<34x8xf32> -> vector<34x8xf32>
    %54 = vector.extract_strided_slice %36 {offsets = [0, 0], sizes = [8, 32], strides = [1, 1]} : vector<32x32xf32> to vector<8x32xf32>
    %cst_25 = arith.constant dense<0.000000e+00> : vector<34x32xf32>
    %55 = tpu.matmul %53, %54, %cst_25 {dimension_numbers = #tpu.dot_dimension_numbers<[1], [0], [0], [1], [0, 0, 1, 1], [], []>} : vector<34x8xf32>, vector<8x32xf32>, vector<34x32xf32> -> vector<34x32xf32>
    %56 = vector.extract_strided_slice %32 {offsets = [0, 8], sizes = [34, 8], strides = [1, 1]} : vector<34x32xf32> to vector<34x8xf32>
    %57 = vector.extract_strided_slice %33 {offsets = [0, 8], sizes = [34, 8], strides = [1, 1]} : vector<34x32xf32> to vector<34x8xf32>
    %58 = vector.extract_strided_slice %34 {offsets = [0, 8], sizes = [34, 8], strides = [1, 1]} : vector<34x32xf32> to vector<34x8xf32>
    %cst_26 = arith.constant dense<0.000000e+00> : vector<34x34xf32>
    %59 = tpu.matmul %56, %57, %cst_26 {dimension_numbers = #tpu.dot_dimension_numbers<[1], [1], [0], [0], [0, 0, 1, 0], [], []>} : vector<34x8xf32>, vector<34x8xf32>, vector<34x34xf32> -> vector<34x34xf32>
    %cst_27 = arith.constant 0.353553385 : f32
    %60 = vector.broadcast %cst_27 : f32 to vector<34x34xf32>
    %61 = arith.mulf %59, %60 : vector<34x34xf32>
    %62 = arith.addf %61, %35 : vector<34x34xf32>
    %cst_28 = arith.constant dense<0xFF800000> : vector<34xf32>
    %63 = vector.multi_reduction <maximumf>, %62, %cst_28 [1] : vector<34x34xf32> to vector<34xf32>
    %64 = vector.shape_cast %63 : vector<34xf32> to vector<34x1xf32>
    %65 = vector.broadcast %64 : vector<34x1xf32> to vector<34x34xf32>
    %66 = arith.subf %62, %65 : vector<34x34xf32>
    %67 = math.exp %66 : vector<34x34xf32>
    %cst_29 = arith.constant dense<0.000000e+00> : vector<34xf32>
    %68 = vector.multi_reduction <add>, %67, %cst_29 [1] : vector<34x34xf32> to vector<34xf32>
    %69 = vector.shape_cast %68 : vector<34xf32> to vector<34x1xf32>
    %70 = vector.broadcast %69 : vector<34x1xf32> to vector<34x34xf32>
    %71 = arith.divf %67, %70 : vector<34x34xf32>
    %cst_30 = arith.constant dense<0.000000e+00> : vector<34x8xf32>
    %72 = tpu.matmul %71, %58, %cst_30 {dimension_numbers = #tpu.dot_dimension_numbers<[1], [0], [0], [1], [0, 0, 1, 1], [], []>} : vector<34x34xf32>, vector<34x8xf32>, vector<34x8xf32> -> vector<34x8xf32>
    %73 = vector.extract_strided_slice %36 {offsets = [8, 0], sizes = [8, 32], strides = [1, 1]} : vector<32x32xf32> to vector<8x32xf32>
    %cst_31 = arith.constant dense<0.000000e+00> : vector<34x32xf32>
    %74 = tpu.matmul %72, %73, %cst_31 {dimension_numbers = #tpu.dot_dimension_numbers<[1], [0], [0], [1], [0, 0, 1, 1], [], []>} : vector<34x8xf32>, vector<8x32xf32>, vector<34x32xf32> -> vector<34x32xf32>
    %75 = arith.addf %55, %74 : vector<34x32xf32>
    %76 = vector.extract_strided_slice %32 {offsets = [0, 16], sizes = [34, 8], strides = [1, 1]} : vector<34x32xf32> to vector<34x8xf32>
    %77 = vector.extract_strided_slice %33 {offsets = [0, 16], sizes = [34, 8], strides = [1, 1]} : vector<34x32xf32> to vector<34x8xf32>
    %78 = vector.extract_strided_slice %34 {offsets = [0, 16], sizes = [34, 8], strides = [1, 1]} : vector<34x32xf32> to vector<34x8xf32>
    %cst_32 = arith.constant dense<0.000000e+00> : vector<34x34xf32>
    %79 = tpu.matmul %76, %77, %cst_32 {dimension_numbers = #tpu.dot_dimension_numbers<[1], [1], [0], [0], [0, 0, 1, 0], [], []>} : vector<34x8xf32>, vector<34x8xf32>, vector<34x34xf32> -> vector<34x34xf32>
    %cst_33 = arith.constant 0.353553385 : f32
    %80 = vector.broadcast %cst_33 : f32 to vector<34x34xf32>
    %81 = arith.mulf %79, %80 : vector<34x34xf32>
    %82 = arith.addf %81, %35 : vector<34x34xf32>
    %cst_34 = arith.constant dense<0xFF800000> : vector<34xf32>
    %83 = vector.multi_reduction <maximumf>, %82, %cst_34 [1] : vector<34x34xf32> to vector<34xf32>
    %84 = vector.shape_cast %83 : vector<34xf32> to vector<34x1xf32>
    %85 = vector.broadcast %84 : vector<34x1xf32> to vector<34x34xf32>
    %86 = arith.subf %82, %85 : vector<34x34xf32>
    %87 = math.exp %86 : vector<34x34xf32>
    %cst_35 = arith.constant dense<0.000000e+00> : vector<34xf32>
    %88 = vector.multi_reduction <add>, %87, %cst_35 [1] : vector<34x34xf32> to vector<34xf32>
    %89 = vector.shape_cast %88 : vector<34xf32> to vector<34x1xf32>
    %90 = vector.broadcast %89 : vector<34x1xf32> to vector<34x34xf32>
    %91 = arith.divf %87, %90 : vector<34x34xf32>
    %cst_36 = arith.constant dense<0.000000e+00> : vector<34x8xf32>
    %92 = tpu.matmul %91, %78, %cst_36 {dimension_numbers = #tpu.dot_dimension_numbers<[1], [0], [0], [1], [0, 0, 1, 1], [], []>} : vector<34x34xf32>, vector<34x8xf32>, vector<34x8xf32> -> vector<34x8xf32>
    %93 = vector.extract_strided_slice %36 {offsets = [16, 0], sizes = [8, 32], strides = [1, 1]} : vector<32x32xf32> to vector<8x32xf32>
    %cst_37 = arith.constant dense<0.000000e+00> : vector<34x32xf32>
    %94 = tpu.matmul %92, %93, %cst_37 {dimension_numbers = #tpu.dot_dimension_numbers<[1], [0], [0], [1], [0, 0, 1, 1], [], []>} : vector<34x8xf32>, vector<8x32xf32>, vector<34x32xf32> -> vector<34x32xf32>
    %95 = arith.addf %75, %94 : vector<34x32xf32>
    %96 = vector.extract_strided_slice %32 {offsets = [0, 24], sizes = [34, 8], strides = [1, 1]} : vector<34x32xf32> to vector<34x8xf32>
    %97 = vector.extract_strided_slice %33 {offsets = [0, 24], sizes = [34, 8], strides = [1, 1]} : vector<34x32xf32> to vector<34x8xf32>
    %98 = vector.extract_strided_slice %34 {offsets = [0, 24], sizes = [34, 8], strides = [1, 1]} : vector<34x32xf32> to vector<34x8xf32>
    %cst_38 = arith.constant dense<0.000000e+00> : vector<34x34xf32>
    %99 = tpu.matmul %96, %97, %cst_38 {dimension_numbers = #tpu.dot_dimension_numbers<[1], [1], [0], [0], [0, 0, 1, 0], [], []>} : vector<34x8xf32>, vector<34x8xf32>, vector<34x34xf32> -> vector<34x34xf32>
    %cst_39 = arith.constant 0.353553385 : f32
    %100 = vector.broadcast %cst_39 : f32 to vector<34x34xf32>
    %101 = arith.mulf %99, %100 : vector<34x34xf32>
    %102 = arith.addf %101, %35 : vector<34x34xf32>
    %cst_40 = arith.constant dense<0xFF800000> : vector<34xf32>
    %103 = vector.multi_reduction <maximumf>, %102, %cst_40 [1] : vector<34x34xf32> to vector<34xf32>
    %104 = vector.shape_cast %103 : vector<34xf32> to vector<34x1xf32>
    %105 = vector.broadcast %104 : vector<34x1xf32> to vector<34x34xf32>
    %106 = arith.subf %102, %105 : vector<34x34xf32>
    %107 = math.exp %106 : vector<34x34xf32>
    %cst_41 = arith.constant dense<0.000000e+00> : vector<34xf32>
    %108 = vector.multi_reduction <add>, %107, %cst_41 [1] : vector<34x34xf32> to vector<34xf32>
    %109 = vector.shape_cast %108 : vector<34xf32> to vector<34x1xf32>
    %110 = vector.broadcast %109 : vector<34x1xf32> to vector<34x34xf32>
    %111 = arith.divf %107, %110 : vector<34x34xf32>
    %cst_42 = arith.constant dense<0.000000e+00> : vector<34x8xf32>
    %112 = tpu.matmul %111, %98, %cst_42 {dimension_numbers = #tpu.dot_dimension_numbers<[1], [0], [0], [1], [0, 0, 1, 1], [], []>} : vector<34x34xf32>, vector<34x8xf32>, vector<34x8xf32> -> vector<34x8xf32>
    %113 = vector.extract_strided_slice %36 {offsets = [24, 0], sizes = [8, 32], strides = [1, 1]} : vector<32x32xf32> to vector<8x32xf32>
    %cst_43 = arith.constant dense<0.000000e+00> : vector<34x32xf32>
    %114 = tpu.matmul %112, %113, %cst_43 {dimension_numbers = #tpu.dot_dimension_numbers<[1], [0], [0], [1], [0, 0, 1, 1], [], []>} : vector<34x8xf32>, vector<8x32xf32>, vector<34x32xf32> -> vector<34x32xf32>
    %115 = arith.addf %95, %114 : vector<34x32xf32>
    %116 = arith.addf %2, %115 : vector<34x32xf32>
    %c0_44 = arith.constant 0 : index
    %c0_45 = arith.constant 0 : index
    %117 = vector.load %arg8[%c0_44, %c0_45] : memref<1x32xf32, #tpu.memory_space<vmem>>, vector<1x32xf32>
    %118 = vector.broadcast %117 : vector<1x32xf32> to vector<34x32xf32>
    %119 = arith.addf %116, %118 : vector<34x32xf32>
    %cst_46 = arith.constant dense<0.000000e+00> : vector<32xf32>
    %120 = vector.multi_reduction <add>, %119, %cst_46 [0] : vector<34x32xf32> to vector<32xf32>
    %121 = vector.shape_cast %120 : vector<32xf32> to vector<1x32xf32>
    %cst_47 = arith.constant 3.400000e+01 : f32
    %122 = vector.broadcast %cst_47 : f32 to vector<1x32xf32>
    %123 = arith.divf %121, %122 : vector<1x32xf32>
    %124 = vector.broadcast %123 : vector<1x32xf32> to vector<34x32xf32>
    %125 = arith.subf %119, %124 : vector<34x32xf32>
    %126 = arith.mulf %125, %125 : vector<34x32xf32>
    %cst_48 = arith.constant dense<0.000000e+00> : vector<32xf32>
    %127 = vector.multi_reduction <add>, %126, %cst_48 [0] : vector<34x32xf32> to vector<32xf32>
    %128 = vector.shape_cast %127 : vector<32xf32> to vector<1x32xf32>
    %cst_49 = arith.constant 3.400000e+01 : f32
    %129 = vector.broadcast %cst_49 : f32 to vector<1x32xf32>
    %130 = arith.divf %128, %129 : vector<1x32xf32>
    %131 = vector.broadcast %123 : vector<1x32xf32> to vector<34x32xf32>
    %132 = arith.subf %119, %131 : vector<34x32xf32>
    %cst_50 = arith.constant 9.99999974E-6 : f32
    %133 = vector.broadcast %cst_50 : f32 to vector<1x32xf32>
    %134 = arith.addf %130, %133 : vector<1x32xf32>
    %135 = math.rsqrt %134 : vector<1x32xf32>
    %136 = vector.broadcast %135 : vector<1x32xf32> to vector<34x32xf32>
    %137 = arith.mulf %132, %136 : vector<34x32xf32>
    %c0_51 = arith.constant 0 : index
    %c0_52 = arith.constant 0 : index
    %138 = vector.load %arg9[%c0_51, %c0_52] : memref<1x32xf32, #tpu.memory_space<vmem>>, vector<1x32xf32>
    %139 = vector.broadcast %138 : vector<1x32xf32> to vector<34x32xf32>
    %140 = arith.mulf %137, %139 : vector<34x32xf32>
    %c0_53 = arith.constant 0 : index
    %c0_54 = arith.constant 0 : index
    %141 = vector.load %arg10[%c0_53, %c0_54] : memref<1x32xf32, #tpu.memory_space<vmem>>, vector<1x32xf32>
    %142 = vector.broadcast %141 : vector<1x32xf32> to vector<34x32xf32>
    %143 = arith.addf %140, %142 : vector<34x32xf32>
    %c0_55 = arith.constant 0 : index
    %c0_56 = arith.constant 0 : index
    %144 = vector.load %arg11[%c0_55, %c0_56] : memref<32x128xf32, #tpu.memory_space<vmem>>, vector<32x128xf32>
    %cst_57 = arith.constant dense<0.000000e+00> : vector<34x128xf32>
    %145 = tpu.matmul %143, %144, %cst_57 {dimension_numbers = #tpu.dot_dimension_numbers<[1], [0], [0], [1], [0, 0, 1, 1], [], []>} : vector<34x32xf32>, vector<32x128xf32>, vector<34x128xf32> -> vector<34x128xf32>
    %c0_58 = arith.constant 0 : index
    %c0_59 = arith.constant 0 : index
    %146 = vector.load %arg12[%c0_58, %c0_59] : memref<1x128xf32, #tpu.memory_space<vmem>>, vector<1x128xf32>
    %147 = vector.broadcast %146 : vector<1x128xf32> to vector<34x128xf32>
    %148 = arith.addf %145, %147 : vector<34x128xf32>
    %cst_60 = arith.constant 1.702000e+00 : f32
    %149 = vector.broadcast %cst_60 : f32 to vector<34x128xf32>
    %150 = arith.mulf %149, %148 : vector<34x128xf32>
    %151 = arith.negf %150 : vector<34x128xf32>
    %152 = math.exp %151 : vector<34x128xf32>
    %cst_61 = arith.constant 1.000000e+00 : f32
    %153 = vector.broadcast %cst_61 : f32 to vector<34x128xf32>
    %154 = arith.addf %153, %152 : vector<34x128xf32>
    %155 = arith.divf %153, %154 : vector<34x128xf32>
    %156 = arith.mulf %148, %155 : vector<34x128xf32>
    %c0_62 = arith.constant 0 : index
    %c0_63 = arith.constant 0 : index
    %157 = vector.load %arg13[%c0_62, %c0_63] : memref<128x32xf32, #tpu.memory_space<vmem>>, vector<128x32xf32>
    %cst_64 = arith.constant dense<0.000000e+00> : vector<34x32xf32>
    %158 = tpu.matmul %156, %157, %cst_64 {dimension_numbers = #tpu.dot_dimension_numbers<[1], [0], [0], [1], [0, 0, 1, 1], [], []>} : vector<34x128xf32>, vector<128x32xf32>, vector<34x32xf32> -> vector<34x32xf32>
    %159 = arith.addf %119, %158 : vector<34x32xf32>
    %c0_65 = arith.constant 0 : index
    %c0_66 = arith.constant 0 : index
    %160 = vector.load %arg14[%c0_65, %c0_66] : memref<1x32xf32, #tpu.memory_space<vmem>>, vector<1x32xf32>
    %161 = vector.broadcast %160 : vector<1x32xf32> to vector<34x32xf32>
    %162 = arith.addf %159, %161 : vector<34x32xf32>
    %c0_67 = arith.constant 0 : index
    %c0_68 = arith.constant 0 : index
    %163 = vector.load %arg15[%c0_67, %c0_68] : memref<34x32xf32, #tpu.memory_space<vmem>>, vector<34x32xf32>
    tpu.vector_store %arg15[%c0_67, %c0_68], %162 {strides = array<i32>} : memref<34x32xf32, #tpu.memory_space<vmem>>, vector<34x32xf32>,
    return
  }
}

module attributes {stable_mosaic.version = 11 : i64} {
  func.func @_block_kernel(%arg0: memref<34x32xf32, #tpu.memory_space<vmem>>, %arg1: memref<34x34xf32, #tpu.memory_space<vmem>>, %arg2: memref<1x32xf32, #tpu.memory_space<vmem>>, %arg3: memref<1x32xf32, #tpu.memory_space<vmem>>, %arg4: memref<32x96xf32, #tpu.memory_space<vmem>>, %arg5: memref<1x96xf32, #tpu.memory_space<vmem>>, %arg6: memref<32x32xf32, #tpu.memory_space<vmem>>, %arg7: memref<1x32xf32, #tpu.memory_space<vmem>>, %arg8: memref<1x32xf32, #tpu.memory_space<vmem>>, %arg9: memref<1x32xf32, #tpu.memory_space<vmem>>, %arg10: memref<32x128xf32, #tpu.memory_space<vmem>>, %arg11: memref<1x128xf32, #tpu.memory_space<vmem>>, %arg12: memref<128x32xf32, #tpu.memory_space<vmem>>, %arg13: memref<1x32xf32, #tpu.memory_space<vmem>>, %arg14: memref<34x32xf32, #tpu.memory_space<vmem>>) attributes {dimension_semantics = [], scalar_prefetch = 0 : i64, scratch_operands = 0 : i64, tpu.core_type = #tpu.core_type<tc>} {
    %c0 = arith.constant 0 : index
    %c0_0 = arith.constant 0 : index
    %0 = vector.load %arg0[%c0, %c0_0] : memref<34x32xf32, #tpu.memory_space<vmem>>, vector<34x32xf32>
    %cst = arith.constant dense<0.000000e+00> : vector<32xf32>
    %1 = vector.multi_reduction <add>, %0, %cst [0] : vector<34x32xf32> to vector<32xf32>
    %2 = vector.shape_cast %1 : vector<32xf32> to vector<1x32xf32>
    %cst_1 = arith.constant 3.400000e+01 : f32
    %3 = vector.broadcast %cst_1 : f32 to vector<1x32xf32>
    %4 = arith.divf %2, %3 : vector<1x32xf32>
    %5 = vector.broadcast %4 : vector<1x32xf32> to vector<34x32xf32>
    %6 = arith.subf %0, %5 : vector<34x32xf32>
    %7 = arith.mulf %6, %6 : vector<34x32xf32>
    %cst_2 = arith.constant dense<0.000000e+00> : vector<32xf32>
    %8 = vector.multi_reduction <add>, %7, %cst_2 [0] : vector<34x32xf32> to vector<32xf32>
    %9 = vector.shape_cast %8 : vector<32xf32> to vector<1x32xf32>
    %cst_3 = arith.constant 3.400000e+01 : f32
    %10 = vector.broadcast %cst_3 : f32 to vector<1x32xf32>
    %11 = arith.divf %9, %10 : vector<1x32xf32>
    %12 = vector.broadcast %4 : vector<1x32xf32> to vector<34x32xf32>
    %13 = arith.subf %0, %12 : vector<34x32xf32>
    %cst_4 = arith.constant 9.99999974E-6 : f32
    %14 = vector.broadcast %cst_4 : f32 to vector<1x32xf32>
    %15 = arith.addf %11, %14 : vector<1x32xf32>
    %16 = math.rsqrt %15 : vector<1x32xf32>
    %17 = vector.broadcast %16 : vector<1x32xf32> to vector<34x32xf32>
    %18 = arith.mulf %13, %17 : vector<34x32xf32>
    %c0_5 = arith.constant 0 : index
    %c0_6 = arith.constant 0 : index
    %19 = vector.load %arg2[%c0_5, %c0_6] : memref<1x32xf32, #tpu.memory_space<vmem>>, vector<1x32xf32>
    %20 = vector.broadcast %19 : vector<1x32xf32> to vector<34x32xf32>
    %21 = arith.mulf %18, %20 : vector<34x32xf32>
    %c0_7 = arith.constant 0 : index
    %c0_8 = arith.constant 0 : index
    %22 = vector.load %arg3[%c0_7, %c0_8] : memref<1x32xf32, #tpu.memory_space<vmem>>, vector<1x32xf32>
    %23 = vector.broadcast %22 : vector<1x32xf32> to vector<34x32xf32>
    %24 = arith.addf %21, %23 : vector<34x32xf32>
    %c0_9 = arith.constant 0 : index
    %c0_10 = arith.constant 0 : index
    %25 = vector.load %arg4[%c0_9, %c0_10] : memref<32x96xf32, #tpu.memory_space<vmem>>, vector<32x96xf32>
    %cst_11 = arith.constant dense<0.000000e+00> : vector<34x96xf32>
    %26 = tpu.matmul %24, %25, %cst_11 {dimension_numbers = #tpu.dot_dimension_numbers<[1], [0], [0], [1], [0, 0, 1, 1], [], []>} : vector<34x32xf32>, vector<32x96xf32>, vector<34x96xf32> -> vector<34x96xf32>
    %c0_12 = arith.constant 0 : index
    %c0_13 = arith.constant 0 : index
    %27 = vector.load %arg5[%c0_12, %c0_13] : memref<1x96xf32, #tpu.memory_space<vmem>>, vector<1x96xf32>
    %28 = vector.broadcast %27 : vector<1x96xf32> to vector<34x96xf32>
    %29 = arith.addf %26, %28 : vector<34x96xf32>
    %30 = vector.extract_strided_slice %29 {offsets = [0, 0], sizes = [34, 32], strides = [1, 1]} : vector<34x96xf32> to vector<34x32xf32>
    %31 = vector.extract_strided_slice %29 {offsets = [0, 32], sizes = [34, 32], strides = [1, 1]} : vector<34x96xf32> to vector<34x32xf32>
    %32 = vector.extract_strided_slice %29 {offsets = [0, 64], sizes = [34, 32], strides = [1, 1]} : vector<34x96xf32> to vector<34x32xf32>
    %c0_14 = arith.constant 0 : index
    %c0_15 = arith.constant 0 : index
    %33 = vector.load %arg1[%c0_14, %c0_15] : memref<34x34xf32, #tpu.memory_space<vmem>>, vector<34x34xf32>
    %c0_16 = arith.constant 0 : index
    %c0_17 = arith.constant 0 : index
    %34 = vector.load %arg6[%c0_16, %c0_17] : memref<32x32xf32, #tpu.memory_space<vmem>>, vector<32x32xf32>
    %35 = vector.extract_strided_slice %30 {offsets = [0, 0], sizes = [34, 8], strides = [1, 1]} : vector<34x32xf32> to vector<34x8xf32>
    %36 = vector.extract_strided_slice %31 {offsets = [0, 0], sizes = [34, 8], strides = [1, 1]} : vector<34x32xf32> to vector<34x8xf32>
    %37 = vector.extract_strided_slice %32 {offsets = [0, 0], sizes = [34, 8], strides = [1, 1]} : vector<34x32xf32> to vector<34x8xf32>
    %cst_18 = arith.constant dense<0.000000e+00> : vector<34x34xf32>
    %38 = tpu.matmul %35, %36, %cst_18 {dimension_numbers = #tpu.dot_dimension_numbers<[1], [1], [0], [0], [0, 0, 1, 0], [], []>} : vector<34x8xf32>, vector<34x8xf32>, vector<34x34xf32> -> vector<34x34xf32>
    %cst_19 = arith.constant 0.353553385 : f32
    %39 = vector.broadcast %cst_19 : f32 to vector<34x34xf32>
    %40 = arith.mulf %38, %39 : vector<34x34xf32>
    %41 = arith.addf %40, %33 : vector<34x34xf32>
    %cst_20 = arith.constant dense<0xFF800000> : vector<34xf32>
    %42 = vector.multi_reduction <maximumf>, %41, %cst_20 [1] : vector<34x34xf32> to vector<34xf32>
    %43 = vector.shape_cast %42 : vector<34xf32> to vector<34x1xf32>
    %44 = vector.broadcast %43 : vector<34x1xf32> to vector<34x34xf32>
    %45 = arith.subf %41, %44 : vector<34x34xf32>
    %46 = math.exp %45 : vector<34x34xf32>
    %cst_21 = arith.constant dense<0.000000e+00> : vector<34xf32>
    %47 = vector.multi_reduction <add>, %46, %cst_21 [1] : vector<34x34xf32> to vector<34xf32>
    %48 = vector.shape_cast %47 : vector<34xf32> to vector<34x1xf32>
    %49 = vector.broadcast %48 : vector<34x1xf32> to vector<34x34xf32>
    %50 = arith.divf %46, %49 : vector<34x34xf32>
    %cst_22 = arith.constant dense<0.000000e+00> : vector<34x8xf32>
    %51 = tpu.matmul %50, %37, %cst_22 {dimension_numbers = #tpu.dot_dimension_numbers<[1], [0], [0], [1], [0, 0, 1, 1], [], []>} : vector<34x34xf32>, vector<34x8xf32>, vector<34x8xf32> -> vector<34x8xf32>
    %52 = vector.extract_strided_slice %34 {offsets = [0, 0], sizes = [8, 32], strides = [1, 1]} : vector<32x32xf32> to vector<8x32xf32>
    %cst_23 = arith.constant dense<0.000000e+00> : vector<34x32xf32>
    %53 = tpu.matmul %51, %52, %cst_23 {dimension_numbers = #tpu.dot_dimension_numbers<[1], [0], [0], [1], [0, 0, 1, 1], [], []>} : vector<34x8xf32>, vector<8x32xf32>, vector<34x32xf32> -> vector<34x32xf32>
    %54 = vector.extract_strided_slice %30 {offsets = [0, 8], sizes = [34, 8], strides = [1, 1]} : vector<34x32xf32> to vector<34x8xf32>
    %55 = vector.extract_strided_slice %31 {offsets = [0, 8], sizes = [34, 8], strides = [1, 1]} : vector<34x32xf32> to vector<34x8xf32>
    %56 = vector.extract_strided_slice %32 {offsets = [0, 8], sizes = [34, 8], strides = [1, 1]} : vector<34x32xf32> to vector<34x8xf32>
    %cst_24 = arith.constant dense<0.000000e+00> : vector<34x34xf32>
    %57 = tpu.matmul %54, %55, %cst_24 {dimension_numbers = #tpu.dot_dimension_numbers<[1], [1], [0], [0], [0, 0, 1, 0], [], []>} : vector<34x8xf32>, vector<34x8xf32>, vector<34x34xf32> -> vector<34x34xf32>
    %cst_25 = arith.constant 0.353553385 : f32
    %58 = vector.broadcast %cst_25 : f32 to vector<34x34xf32>
    %59 = arith.mulf %57, %58 : vector<34x34xf32>
    %60 = arith.addf %59, %33 : vector<34x34xf32>
    %cst_26 = arith.constant dense<0xFF800000> : vector<34xf32>
    %61 = vector.multi_reduction <maximumf>, %60, %cst_26 [1] : vector<34x34xf32> to vector<34xf32>
    %62 = vector.shape_cast %61 : vector<34xf32> to vector<34x1xf32>
    %63 = vector.broadcast %62 : vector<34x1xf32> to vector<34x34xf32>
    %64 = arith.subf %60, %63 : vector<34x34xf32>
    %65 = math.exp %64 : vector<34x34xf32>
    %cst_27 = arith.constant dense<0.000000e+00> : vector<34xf32>
    %66 = vector.multi_reduction <add>, %65, %cst_27 [1] : vector<34x34xf32> to vector<34xf32>
    %67 = vector.shape_cast %66 : vector<34xf32> to vector<34x1xf32>
    %68 = vector.broadcast %67 : vector<34x1xf32> to vector<34x34xf32>
    %69 = arith.divf %65, %68 : vector<34x34xf32>
    %cst_28 = arith.constant dense<0.000000e+00> : vector<34x8xf32>
    %70 = tpu.matmul %69, %56, %cst_28 {dimension_numbers = #tpu.dot_dimension_numbers<[1], [0], [0], [1], [0, 0, 1, 1], [], []>} : vector<34x34xf32>, vector<34x8xf32>, vector<34x8xf32> -> vector<34x8xf32>
    %71 = vector.extract_strided_slice %34 {offsets = [8, 0], sizes = [8, 32], strides = [1, 1]} : vector<32x32xf32> to vector<8x32xf32>
    %cst_29 = arith.constant dense<0.000000e+00> : vector<34x32xf32>
    %72 = tpu.matmul %70, %71, %cst_29 {dimension_numbers = #tpu.dot_dimension_numbers<[1], [0], [0], [1], [0, 0, 1, 1], [], []>} : vector<34x8xf32>, vector<8x32xf32>, vector<34x32xf32> -> vector<34x32xf32>
    %73 = arith.addf %53, %72 : vector<34x32xf32>
    %74 = vector.extract_strided_slice %30 {offsets = [0, 16], sizes = [34, 8], strides = [1, 1]} : vector<34x32xf32> to vector<34x8xf32>
    %75 = vector.extract_strided_slice %31 {offsets = [0, 16], sizes = [34, 8], strides = [1, 1]} : vector<34x32xf32> to vector<34x8xf32>
    %76 = vector.extract_strided_slice %32 {offsets = [0, 16], sizes = [34, 8], strides = [1, 1]} : vector<34x32xf32> to vector<34x8xf32>
    %cst_30 = arith.constant dense<0.000000e+00> : vector<34x34xf32>
    %77 = tpu.matmul %74, %75, %cst_30 {dimension_numbers = #tpu.dot_dimension_numbers<[1], [1], [0], [0], [0, 0, 1, 0], [], []>} : vector<34x8xf32>, vector<34x8xf32>, vector<34x34xf32> -> vector<34x34xf32>
    %cst_31 = arith.constant 0.353553385 : f32
    %78 = vector.broadcast %cst_31 : f32 to vector<34x34xf32>
    %79 = arith.mulf %77, %78 : vector<34x34xf32>
    %80 = arith.addf %79, %33 : vector<34x34xf32>
    %cst_32 = arith.constant dense<0xFF800000> : vector<34xf32>
    %81 = vector.multi_reduction <maximumf>, %80, %cst_32 [1] : vector<34x34xf32> to vector<34xf32>
    %82 = vector.shape_cast %81 : vector<34xf32> to vector<34x1xf32>
    %83 = vector.broadcast %82 : vector<34x1xf32> to vector<34x34xf32>
    %84 = arith.subf %80, %83 : vector<34x34xf32>
    %85 = math.exp %84 : vector<34x34xf32>
    %cst_33 = arith.constant dense<0.000000e+00> : vector<34xf32>
    %86 = vector.multi_reduction <add>, %85, %cst_33 [1] : vector<34x34xf32> to vector<34xf32>
    %87 = vector.shape_cast %86 : vector<34xf32> to vector<34x1xf32>
    %88 = vector.broadcast %87 : vector<34x1xf32> to vector<34x34xf32>
    %89 = arith.divf %85, %88 : vector<34x34xf32>
    %cst_34 = arith.constant dense<0.000000e+00> : vector<34x8xf32>
    %90 = tpu.matmul %89, %76, %cst_34 {dimension_numbers = #tpu.dot_dimension_numbers<[1], [0], [0], [1], [0, 0, 1, 1], [], []>} : vector<34x34xf32>, vector<34x8xf32>, vector<34x8xf32> -> vector<34x8xf32>
    %91 = vector.extract_strided_slice %34 {offsets = [16, 0], sizes = [8, 32], strides = [1, 1]} : vector<32x32xf32> to vector<8x32xf32>
    %cst_35 = arith.constant dense<0.000000e+00> : vector<34x32xf32>
    %92 = tpu.matmul %90, %91, %cst_35 {dimension_numbers = #tpu.dot_dimension_numbers<[1], [0], [0], [1], [0, 0, 1, 1], [], []>} : vector<34x8xf32>, vector<8x32xf32>, vector<34x32xf32> -> vector<34x32xf32>
    %93 = arith.addf %73, %92 : vector<34x32xf32>
    %94 = vector.extract_strided_slice %30 {offsets = [0, 24], sizes = [34, 8], strides = [1, 1]} : vector<34x32xf32> to vector<34x8xf32>
    %95 = vector.extract_strided_slice %31 {offsets = [0, 24], sizes = [34, 8], strides = [1, 1]} : vector<34x32xf32> to vector<34x8xf32>
    %96 = vector.extract_strided_slice %32 {offsets = [0, 24], sizes = [34, 8], strides = [1, 1]} : vector<34x32xf32> to vector<34x8xf32>
    %cst_36 = arith.constant dense<0.000000e+00> : vector<34x34xf32>
    %97 = tpu.matmul %94, %95, %cst_36 {dimension_numbers = #tpu.dot_dimension_numbers<[1], [1], [0], [0], [0, 0, 1, 0], [], []>} : vector<34x8xf32>, vector<34x8xf32>, vector<34x34xf32> -> vector<34x34xf32>
    %cst_37 = arith.constant 0.353553385 : f32
    %98 = vector.broadcast %cst_37 : f32 to vector<34x34xf32>
    %99 = arith.mulf %97, %98 : vector<34x34xf32>
    %100 = arith.addf %99, %33 : vector<34x34xf32>
    %cst_38 = arith.constant dense<0xFF800000> : vector<34xf32>
    %101 = vector.multi_reduction <maximumf>, %100, %cst_38 [1] : vector<34x34xf32> to vector<34xf32>
    %102 = vector.shape_cast %101 : vector<34xf32> to vector<34x1xf32>
    %103 = vector.broadcast %102 : vector<34x1xf32> to vector<34x34xf32>
    %104 = arith.subf %100, %103 : vector<34x34xf32>
    %105 = math.exp %104 : vector<34x34xf32>
    %cst_39 = arith.constant dense<0.000000e+00> : vector<34xf32>
    %106 = vector.multi_reduction <add>, %105, %cst_39 [1] : vector<34x34xf32> to vector<34xf32>
    %107 = vector.shape_cast %106 : vector<34xf32> to vector<34x1xf32>
    %108 = vector.broadcast %107 : vector<34x1xf32> to vector<34x34xf32>
    %109 = arith.divf %105, %108 : vector<34x34xf32>
    %cst_40 = arith.constant dense<0.000000e+00> : vector<34x8xf32>
    %110 = tpu.matmul %109, %96, %cst_40 {dimension_numbers = #tpu.dot_dimension_numbers<[1], [0], [0], [1], [0, 0, 1, 1], [], []>} : vector<34x34xf32>, vector<34x8xf32>, vector<34x8xf32> -> vector<34x8xf32>
    %111 = vector.extract_strided_slice %34 {offsets = [24, 0], sizes = [8, 32], strides = [1, 1]} : vector<32x32xf32> to vector<8x32xf32>
    %cst_41 = arith.constant dense<0.000000e+00> : vector<34x32xf32>
    %112 = tpu.matmul %110, %111, %cst_41 {dimension_numbers = #tpu.dot_dimension_numbers<[1], [0], [0], [1], [0, 0, 1, 1], [], []>} : vector<34x8xf32>, vector<8x32xf32>, vector<34x32xf32> -> vector<34x32xf32>
    %113 = arith.addf %93, %112 : vector<34x32xf32>
    %114 = arith.addf %0, %113 : vector<34x32xf32>
    %c0_42 = arith.constant 0 : index
    %c0_43 = arith.constant 0 : index
    %115 = vector.load %arg7[%c0_42, %c0_43] : memref<1x32xf32, #tpu.memory_space<vmem>>, vector<1x32xf32>
    %116 = vector.broadcast %115 : vector<1x32xf32> to vector<34x32xf32>
    %117 = arith.addf %114, %116 : vector<34x32xf32>
    %cst_44 = arith.constant dense<0.000000e+00> : vector<32xf32>
    %118 = vector.multi_reduction <add>, %117, %cst_44 [0] : vector<34x32xf32> to vector<32xf32>
    %119 = vector.shape_cast %118 : vector<32xf32> to vector<1x32xf32>
    %cst_45 = arith.constant 3.400000e+01 : f32
    %120 = vector.broadcast %cst_45 : f32 to vector<1x32xf32>
    %121 = arith.divf %119, %120 : vector<1x32xf32>
    %122 = vector.broadcast %121 : vector<1x32xf32> to vector<34x32xf32>
    %123 = arith.subf %117, %122 : vector<34x32xf32>
    %124 = arith.mulf %123, %123 : vector<34x32xf32>
    %cst_46 = arith.constant dense<0.000000e+00> : vector<32xf32>
    %125 = vector.multi_reduction <add>, %124, %cst_46 [0] : vector<34x32xf32> to vector<32xf32>
    %126 = vector.shape_cast %125 : vector<32xf32> to vector<1x32xf32>
    %cst_47 = arith.constant 3.400000e+01 : f32
    %127 = vector.broadcast %cst_47 : f32 to vector<1x32xf32>
    %128 = arith.divf %126, %127 : vector<1x32xf32>
    %129 = vector.broadcast %121 : vector<1x32xf32> to vector<34x32xf32>
    %130 = arith.subf %117, %129 : vector<34x32xf32>
    %cst_48 = arith.constant 9.99999974E-6 : f32
    %131 = vector.broadcast %cst_48 : f32 to vector<1x32xf32>
    %132 = arith.addf %128, %131 : vector<1x32xf32>
    %133 = math.rsqrt %132 : vector<1x32xf32>
    %134 = vector.broadcast %133 : vector<1x32xf32> to vector<34x32xf32>
    %135 = arith.mulf %130, %134 : vector<34x32xf32>
    %c0_49 = arith.constant 0 : index
    %c0_50 = arith.constant 0 : index
    %136 = vector.load %arg8[%c0_49, %c0_50] : memref<1x32xf32, #tpu.memory_space<vmem>>, vector<1x32xf32>
    %137 = vector.broadcast %136 : vector<1x32xf32> to vector<34x32xf32>
    %138 = arith.mulf %135, %137 : vector<34x32xf32>
    %c0_51 = arith.constant 0 : index
    %c0_52 = arith.constant 0 : index
    %139 = vector.load %arg9[%c0_51, %c0_52] : memref<1x32xf32, #tpu.memory_space<vmem>>, vector<1x32xf32>
    %140 = vector.broadcast %139 : vector<1x32xf32> to vector<34x32xf32>
    %141 = arith.addf %138, %140 : vector<34x32xf32>
    %c0_53 = arith.constant 0 : index
    %c0_54 = arith.constant 0 : index
    %142 = vector.load %arg10[%c0_53, %c0_54] : memref<32x128xf32, #tpu.memory_space<vmem>>, vector<32x128xf32>
    %cst_55 = arith.constant dense<0.000000e+00> : vector<34x128xf32>
    %143 = tpu.matmul %141, %142, %cst_55 {dimension_numbers = #tpu.dot_dimension_numbers<[1], [0], [0], [1], [0, 0, 1, 1], [], []>} : vector<34x32xf32>, vector<32x128xf32>, vector<34x128xf32> -> vector<34x128xf32>
    %c0_56 = arith.constant 0 : index
    %c0_57 = arith.constant 0 : index
    %144 = vector.load %arg11[%c0_56, %c0_57] : memref<1x128xf32, #tpu.memory_space<vmem>>, vector<1x128xf32>
    %145 = vector.broadcast %144 : vector<1x128xf32> to vector<34x128xf32>
    %146 = arith.addf %143, %145 : vector<34x128xf32>
    %cst_58 = arith.constant 1.702000e+00 : f32
    %147 = vector.broadcast %cst_58 : f32 to vector<34x128xf32>
    %148 = arith.mulf %147, %146 : vector<34x128xf32>
    %149 = arith.negf %148 : vector<34x128xf32>
    %150 = math.exp %149 : vector<34x128xf32>
    %cst_59 = arith.constant 1.000000e+00 : f32
    %151 = vector.broadcast %cst_59 : f32 to vector<34x128xf32>
    %152 = arith.addf %151, %150 : vector<34x128xf32>
    %153 = arith.divf %151, %152 : vector<34x128xf32>
    %154 = arith.mulf %146, %153 : vector<34x128xf32>
    %c0_60 = arith.constant 0 : index
    %c0_61 = arith.constant 0 : index
    %155 = vector.load %arg12[%c0_60, %c0_61] : memref<128x32xf32, #tpu.memory_space<vmem>>, vector<128x32xf32>
    %cst_62 = arith.constant dense<0.000000e+00> : vector<34x32xf32>
    %156 = tpu.matmul %154, %155, %cst_62 {dimension_numbers = #tpu.dot_dimension_numbers<[1], [0], [0], [1], [0, 0, 1, 1], [], []>} : vector<34x128xf32>, vector<128x32xf32>, vector<34x32xf32> -> vector<34x32xf32>
    %157 = arith.addf %117, %156 : vector<34x32xf32>
    %c0_63 = arith.constant 0 : index
    %c0_64 = arith.constant 0 : index
    %158 = vector.load %arg13[%c0_63, %c0_64] : memref<1x32xf32, #tpu.memory_space<vmem>>, vector<1x32xf32>
    %159 = vector.broadcast %158 : vector<1x32xf32> to vector<34x32xf32>
    %160 = arith.addf %157, %159 : vector<34x32xf32>
    %c0_65 = arith.constant 0 : index
    %c0_66 = arith.constant 0 : index
    %161 = vector.load %arg14[%c0_65, %c0_66] : memref<34x32xf32, #tpu.memory_space<vmem>>, vector<34x32xf32>
    tpu.vector_store %arg14[%c0_65, %c0_66], %160 {strides = array<i32>} : memref<34x32xf32, #tpu.memory_space<vmem>>, vector<34x32xf32>,
    return
  }
}

</mosaic_0001>

<llo_original>
// kernel: eq.8
$region0: #{eq.8}
  %s0 = inlined_call_operand.vmem [shape: s32[2,17], index: 0, kind: input, shape index: {}]
  %s1 = inlined_call_operand.vmem [shape: s32[34], index: 1, kind: output, shape index: {}]
  $region1: #{eq.8} parent=0
    #allocation0 [shape = 'u8[4096]{0}', space=vmem, size = 0x1000, scoped, tag = 'scoped mem for output reshape']
    #allocation1 [shape = 'u8[4096]{0}', space=vmem, size = 0x1000, scoped, tag = 'scoped mem for input reshape']
    %s3 = sshllo.u32 0, 2
    %v4 = vld [vmem:[%s0] sm:%s3]
    %5 = vst [vmem:[#allocation1] sm:%s3] %v4
    %v6 = vld [vmem:[#allocation1] sm:$0x1]
    %vm7 = vcmask 138240
    %8 = vst.msk [vmem:[#allocation0] sm:$0x1] %vm7, %v6
    %s9 = scalar_lea.vmem [#allocation1], 1
    %v10 = vld [vmem:[%s9] sm:$0x1]
    %11 = vrot.lane.b32.xlu0 %v10, 17
    %v12 = vpop.permute.xlu0 %11
    %vm13 = vcmask 277640
    %14 = vst.msk [vmem:[#allocation0] sm:$0x1] %vm13, %v12
    %s16 = sshllo.u32 0, 1
    %v18 = vld [vmem:[#allocation0] sm:%s16]
    %s19 = sshllo.u32 0, 1
    %20 = vst [vmem:[%s1] sm:%s19] %v18

// kernel: discriminator_forward.5
$region0: #{discriminator_forward.5}
  #allocation0 [shape = 'u32[]', space=smem, size = 0x4, offset = 0x4, fixed_abs, tag = 'smem constant byte address 0x4 - core index']
  #allocation1 [shape = 'u32[144,128]{1,0:T(1,128)}', space=vmem, size = 0x12000, scoped, tag = 'internal scratch']
  #allocation2 [shape = 'f32[1,1]{1,0:T(1,128)S(1)}', space=vmem, size = 0x200, scoped, tag = 'scoped memory for discriminator_forward.5']
  %s0 = inlined_call_operand.vmem [shape: f32[34,32], index: 0, kind: input, shape index: {}]
  %s1 = inlined_call_operand.vmem [shape: f32[1,32], index: 1, kind: input, shape index: {}]
  %s2 = inlined_call_operand.vmem [shape: f32[1,32], index: 2, kind: input, shape index: {}]
  %s3 = inlined_call_operand.vmem [shape: f32[1,32], index: 3, kind: input, shape index: {}]
  %s4 = inlined_call_operand.<no memory space> [shape: f32[1,1], index: 4, kind: input, shape index: {}]
  %s5 = inlined_call_operand.vmem [shape: f32[34,1], index: 5, kind: output, shape index: {}]
  %s6 = sld [smem:[#allocation0]]
  $region30: #{discriminator_forward.5} parent=0
    _
  %s8 = ssub.s32 1, %s6
  %s9 = scalar_select 0, %s8, %s6
  %v10 = vstv %s4
  %11 = vst [vmem:[#allocation2] sm:$0x1] %v10
  // Predicated region
  $region2: #{discriminator_forward.5} parent=0 // pred_check
    _
  $region3: #{discriminator_forward.5} parent=0 // pred_check_branch
    %13 = sbr.rel (0) target = $region5
  $region4: #{discriminator_forward.5} parent=0 // pred_region
    _
  $region5: #{discriminator_forward.5} parent=0 // pred_fallthru
    _
  // Predicated region
  $region6: #{discriminator_forward.5} parent=0 // pred_check
    _
  $region7: #{discriminator_forward.5} parent=0 // pred_check_branch
    %15 = sbr.rel (0) target = $region9
  $region8: #{discriminator_forward.5} parent=0 // pred_region
    _
  $region9: #{discriminator_forward.5} parent=0 // pred_fallthru
    _
  // Predicated region
  $region10: #{discriminator_forward.5} parent=0 // pred_check
    _
  $region11: #{discriminator_forward.5} parent=0 // pred_check_branch
    %17 = sbr.rel (0) target = $region13
  $region12: #{discriminator_forward.5} parent=0 // pred_region
    _
  $region13: #{discriminator_forward.5} parent=0 // pred_fallthru
    _
  // Predicated region
  $region14: #{discriminator_forward.5} parent=0 // pred_check
    _
  $region15: #{discriminator_forward.5} parent=0 // pred_check_branch
    %19 = sbr.rel (0) target = $region17
  $region16: #{discriminator_forward.5} parent=0 // pred_region
    _
  $region17: #{discriminator_forward.5} parent=0 // pred_fallthru
    _
  // Predicated region
  $region18: #{discriminator_forward.5} parent=0 // pred_check
    _
  $region19: #{discriminator_forward.5} parent=0 // pred_check_branch
    %21 = sbr.rel (0) target = $region21
  $region20: #{discriminator_forward.5} parent=0 // pred_region
    _
  $region21: #{discriminator_forward.5} parent=0 // pred_fallthru
    _
  %v22 = vld [vmem:[%s0] sm:$0xff]
  %v23 = vld [vmem:[%s0 + $0x8] sm:$0xff]
  %v24 = vld [vmem:[%s0 + $0x10] sm:$0xff]
  %v25 = vld [vmem:[%s0 + $0x18] sm:$0xff]
  %v26 = vld [vmem:[%s0 + $0x20] sm:$0x3]
  %vm27 = vcmask 261120
  %v28 = vsel %vm27, %v22, 0.0
  %v29 = vsel %vm27, %v23, 0.0
  %v30 = vadd.f32 %v28, %v29
  %v31 = vsel %vm27, %v24, 0.0
  %v32 = vadd.f32 %v30, %v31
  %v33 = vsel %vm27, %v25, 0.0
  %v34 = vadd.f32 %v32, %v33
  %vm35 = vcmask 254976
  %v36 = vsel %vm35, %v26, 0.0
  %v37 = vadd.f32 %v34, %v36
  %v38 = vrot.slane %v37, 4
  %v39 = vadd.f32 %v37, %v38
  %v40 = vrot.slane %v39, 2
  %v41 = vadd.f32 %v39, %v40
  %v42 = vrot.slane %v41, 1
  %v43 = vadd.f32 %v41, %v42
  %v44 = vrcp.pop 34.0
  %v45 = vmul.f32 %v43, %v44
  %v46 = vsub.f32 %v22, %v45
  %v47 = vsub.f32 %v23, %v45
  %v48 = vsub.f32 %v24, %v45
  %v49 = vsub.f32 %v25, %v45
  %v50 = vsub.f32 %v26, %v45
  %v51 = vmul.f32 %v46, %v46
  %v52 = vmul.f32 %v47, %v47
  %v53 = vmul.f32 %v48, %v48
  %v54 = vmul.f32 %v49, %v49
  %v55 = vmul.f32 %v50, %v50
  %v56 = vsel %vm27, %v51, 0.0
  %v57 = vsel %vm27, %v52, 0.0
  %v58 = vadd.f32 %v56, %v57
  %v59 = vsel %vm27, %v53, 0.0
  %v60 = vadd.f32 %v58, %v59
  %v61 = vsel %vm27, %v54, 0.0
  %v62 = vadd.f32 %v60, %v61
  %v63 = vsel %vm35, %v55, 0.0
  %v64 = vadd.f32 %v62, %v63
  %v65 = vrot.slane %v64, 4
  %v66 = vadd.f32 %v64, %v65
  %v67 = vrot.slane %v66, 2
  %v68 = vadd.f32 %v66, %v67
  %v69 = vrot.slane %v68, 1
  %v70 = vadd.f32 %v68, %v69
  %v71 = vmul.f32 %v70, %v44
  %v72 = vadd.f32 %v71, 1e-05
  %v73 = vrsqrt.pop %v72
  %v74 = vmul.f32 %v46, %v73
  %v75 = vmul.f32 %v47, %v73
  %v76 = vmul.f32 %v48, %v73
  %v77 = vmul.f32 %v49, %v73
  %v78 = vmul.f32 %v50, %v73
  %v79 = vld [vmem:[%s1] sm:$0x1]
  %v81 = vlaneseq
  %v82 = vshrl.u32 %v81, 7
  %v83 = vsub.s32 0, %v82
  %v84 = vrot.slane %v79, %v83
  %v86 = vmul.f32 %v74, %v84
  %v87 = vmul.f32 %v75, %v84
  %v88 = vmul.f32 %v76, %v84
  %v89 = vmul.f32 %v77, %v84
  %v90 = vmul.f32 %v78, %v84
  %v91 = vld [vmem:[%s2] sm:$0x1]
  %v93 = vlaneseq
  %v94 = vshrl.u32 %v93, 7
  %v95 = vsub.s32 0, %v94
  %v96 = vrot.slane %v91, %v95
  %v98 = vadd.f32 %v86, %v96
  %v99 = vadd.f32 %v87, %v96
  %v100 = vadd.f32 %v88, %v96
  %v101 = vadd.f32 %v89, %v96
  %v102 = vadd.f32 %v90, %v96
  %v103 = vld [vmem:[%s3] sm:$0x1]
  %v105 = vlaneseq
  %v106 = vshrl.u32 %v105, 7
  %v107 = vsub.s32 0, %v106
  %v108 = vrot.slane %v103, %v107
  %v110 = vmul.f32 %v98, %v108
  %v111 = vmul.f32 %v99, %v108
  %v112 = vmul.f32 %v100, %v108
  %v113 = vmul.f32 %v101, %v108
  %v114 = vmul.f32 %v102, %v108
  %v115 = vsel %vm27, %v110, 0.0
  %116 = vadd.xlane.f32.xlu0 %v115
  %v117 = vpop.xlane.xlu0 %116
  %v118 = vsel %vm27, %v111, 0.0
  %119 = vadd.xlane.f32.xlu0 %v118
  %v120 = vpop.xlane.xlu0 %119
  %v121 = vsel %vm27, %v112, 0.0
  %122 = vadd.xlane.f32.xlu0 %v121
  %v123 = vpop.xlane.xlu0 %122
  %v124 = vsel %vm27, %v113, 0.0
  %125 = vadd.xlane.f32.xlu0 %v124
  %v126 = vpop.xlane.xlu0 %125
  %v127 = vsel %vm35, %v114, 0.0
  %128 = vadd.xlane.f32.xlu0 %v127
  %v129 = vpop.xlane.xlu0 %128
  %v130 = vld [vmem:[#allocation2] sm:$0x1]
  %v132 = vlaneseq
  %v133 = vshrl.u32 %v132, 7
  %v134 = vsub.s32 0, %v133
  %v135 = vrot.slane %v130, %v134
  %v137 = vadd.f32 %v117, %v135
  %v138 = vadd.f32 %v120, %v135
  %v139 = vadd.f32 %v123, %v135
  %v140 = vadd.f32 %v126, %v135
  %v141 = vadd.f32 %v129, %v135
  %vm142 = vcmask 7168
  %143 = vst.msk [vmem:[%s5] sm:$0xff] %vm142, %v137
  %144 = vst.msk [vmem:[%s5 + $0x8] sm:$0xff] %vm142, %v138
  %145 = vst.msk [vmem:[%s5 + $0x10] sm:$0xff] %vm142, %v139
  %146 = vst.msk [vmem:[%s5 + $0x18] sm:$0xff] %vm142, %v140
  %vm147 = vcmask 1024
  %148 = vst.msk [vmem:[%s5 + $0x20] sm:$0x3] %vm147, %v141
  // Predicated region
  $region22: #{discriminator_forward.5} parent=0 // pred_check
    _
  $region23: #{discriminator_forward.5} parent=0 // pred_check_branch
    %150 = sbr.rel (0) target = $region25
  $region24: #{discriminator_forward.5} parent=0 // pred_region
    _
  $region25: #{discriminator_forward.5} parent=0 // pred_fallthru
    _
  // Predicated region
  $region26: #{discriminator_forward.5} parent=0 // pred_check
    _
  $region27: #{discriminator_forward.5} parent=0 // pred_check_branch
    %152 = sbr.rel (0) target = $region29
  $region28: #{discriminator_forward.5} parent=0 // pred_region
    _
  $region29: #{discriminator_forward.5} parent=0 // pred_fallthru
    _

// kernel: discriminator_forward.3
$region0: #{discriminator_forward.3}
  #allocation0 [shape = 'u32[]', space=smem, size = 0x4, offset = 0x4, fixed_abs, tag = 'smem constant byte address 0x4 - core index']
  #allocation1 [shape = 'u32[144,128]{1,0:T(1,128)}', space=vmem, size = 0x12000, scoped, tag = 'internal scratch']
  %s0 = inlined_call_operand.vmem [shape: f32[34,32], index: 0, kind: input, shape index: {}]
  %s1 = inlined_call_operand.vmem [shape: f32[34,32], index: 1, kind: input, shape index: {}]
  %s2 = inlined_call_operand.vmem [shape: f32[34,34], index: 2, kind: input, shape index: {}]
  %s3 = inlined_call_operand.vmem [shape: f32[1,32], index: 3, kind: input, shape index: {}]
  %s4 = inlined_call_operand.vmem [shape: f32[1,32], index: 4, kind: input, shape index: {}]
  %s5 = inlined_call_operand.vmem [shape: f32[32,96], index: 5, kind: input, shape index: {}]
  %s6 = inlined_call_operand.vmem [shape: f32[1,96], index: 6, kind: input, shape index: {}]
  %s7 = inlined_call_operand.vmem [shape: f32[32,32], index: 7, kind: input, shape index: {}]
  %s8 = inlined_call_operand.vmem [shape: f32[1,32], index: 8, kind: input, shape index: {}]
  %s9 = inlined_call_operand.vmem [shape: f32[1,32], index: 9, kind: input, shape index: {}]
  %s10 = inlined_call_operand.vmem [shape: f32[1,32], index: 10, kind: input, shape index: {}]
  %s11 = inlined_call_operand.vmem [shape: f32[32,128], index: 11, kind: input, shape index: {}]
  %s12 = inlined_call_operand.vmem [shape: f32[1,128], index: 12, kind: input, shape index: {}]
  %s13 = inlined_call_operand.vmem [shape: f32[128,32], index: 13, kind: input, shape index: {}]
  %s14 = inlined_call_operand.vmem [shape: f32[1,32], index: 14, kind: input, shape index: {}]
  %s15 = inlined_call_operand.vmem [shape: f32[34,32], index: 15, kind: output, shape index: {}]
  %s16 = sld [smem:[#allocation0]]
  $region70: #{discriminator_forward.3} parent=0
    _
  %s18 = ssub.s32 1, %s16
  %s19 = scalar_select 0, %s18, %s16
  // Predicated region
  $region2: #{discriminator_forward.3} parent=0 // pred_check
    _
  $region3: #{discriminator_forward.3} parent=0 // pred_check_branch
    %21 = sbr.rel (0) target = $region5
  $region4: #{discriminator_forward.3} parent=0 // pred_region
    _
  $region5: #{discriminator_forward.3} parent=0 // pred_fallthru
    _
  // Predicated region
  $region6: #{discriminator_forward.3} parent=0 // pred_check
    _
  $region7: #{discriminator_forward.3} parent=0 // pred_check_branch
    %23 = sbr.rel (0) target = $region9
  $region8: #{discriminator_forward.3} parent=0 // pred_region
    _
  $region9: #{discriminator_forward.3} parent=0 // pred_fallthru
    _
  // Predicated region
  $region10: #{discriminator_forward.3} parent=0 // pred_check
    _
  $region11: #{discriminator_forward.3} parent=0 // pred_check_branch
    %25 = sbr.rel (0) target = $region13
  $region12: #{discriminator_forward.3} parent=0 // pred_region
    _
  $region13: #{discriminator_forward.3} parent=0 // pred_fallthru
    _
  // Predicated region
  $region14: #{discriminator_forward.3} parent=0 // pred_check
    _
  $region15: #{discriminator_forward.3} parent=0 // pred_check_branch
    %27 = sbr.rel (0) target = $region17
  $region16: #{discriminator_forward.3} parent=0 // pred_region
    _
  $region17: #{discriminator_forward.3} parent=0 // pred_fallthru
    _
  // Predicated region
  $region18: #{discriminator_forward.3} parent=0 // pred_check
    _
  $region19: #{discriminator_forward.3} parent=0 // pred_check_branch
    %29 = sbr.rel (0) target = $region21
  $region20: #{discriminator_forward.3} parent=0 // pred_region
    _
  $region21: #{discriminator_forward.3} parent=0 // pred_fallthru
    _
  // Predicated region
  $region22: #{discriminator_forward.3} parent=0 // pred_check
    _
  $region23: #{discriminator_forward.3} parent=0 // pred_check_branch
    %31 = sbr.rel (0) target = $region25
  $region24: #{discriminator_forward.3} parent=0 // pred_region
    _
  $region25: #{discriminator_forward.3} parent=0 // pred_fallthru
    _
  // Predicated region
  $region26: #{discriminator_forward.3} parent=0 // pred_check
    _
  $region27: #{discriminator_forward.3} parent=0 // pred_check_branch
    %33 = sbr.rel (0) target = $region29
  $region28: #{discriminator_forward.3} parent=0 // pred_region
    _
  $region29: #{discriminator_forward.3} parent=0 // pred_fallthru
    _
  // Predicated region
  $region30: #{discriminator_forward.3} parent=0 // pred_check
    _
  $region31: #{discriminator_forward.3} parent=0 // pred_check_branch
    %35 = sbr.rel (0) target = $region33
  $region32: #{discriminator_forward.3} parent=0 // pred_region
    _
  $region33: #{discriminator_forward.3} parent=0 // pred_fallthru
    _
  // Predicated region
  $region34: #{discriminator_forward.3} parent=0 // pred_check
    _
  $region35: #{discriminator_forward.3} parent=0 // pred_check_branch
    %37 = sbr.rel (0) target = $region37
  $region36: #{discriminator_forward.3} parent=0 // pred_region
    _
  $region37: #{discriminator_forward.3} parent=0 // pred_fallthru
    _
  // Predicated region
  $region38: #{discriminator_forward.3} parent=0 // pred_check
    _
  $region39: #{discriminator_forward.3} parent=0 // pred_check_branch
    %39 = sbr.rel (0) target = $region41
  $region40: #{discriminator_forward.3} parent=0 // pred_region
    _
  $region41: #{discriminator_forward.3} parent=0 // pred_fallthru
    _
  // Predicated region
  $region42: #{discriminator_forward.3} parent=0 // pred_check
    _
  $region43: #{discriminator_forward.3} parent=0 // pred_check_branch
    %41 = sbr.rel (0) target = $region45
  $region44: #{discriminator_forward.3} parent=0 // pred_region
    _
  $region45: #{discriminator_forward.3} parent=0 // pred_fallthru
    _
  // Predicated region
  $region46: #{discriminator_forward.3} parent=0 // pred_check
    _
  $region47: #{discriminator_forward.3} parent=0 // pred_check_branch
    %43 = sbr.rel (0) target = $region49
  $region48: #{discriminator_forward.3} parent=0 // pred_region
    _
  $region49: #{discriminator_forward.3} parent=0 // pred_fallthru
    _
  // Predicated region
  $region50: #{discriminator_forward.3} parent=0 // pred_check
    _
  $region51: #{discriminator_forward.3} parent=0 // pred_check_branch
    %45 = sbr.rel (0) target = $region53
  $region52: #{discriminator_forward.3} parent=0 // pred_region
    _
  $region53: #{discriminator_forward.3} parent=0 // pred_fallthru
    _
  // Predicated region
  $region54: #{discriminator_forward.3} parent=0 // pred_check
    _
  $region55: #{discriminator_forward.3} parent=0 // pred_check_branch
    %47 = sbr.rel (0) target = $region57
  $region56: #{discriminator_forward.3} parent=0 // pred_region
    _
  $region57: #{discriminator_forward.3} parent=0 // pred_fallthru
    _
  // Predicated region
  $region58: #{discriminator_forward.3} parent=0 // pred_check
    _
  $region59: #{discriminator_forward.3} parent=0 // pred_check_branch
    %49 = sbr.rel (0) target = $region61
  $region60: #{discriminator_forward.3} parent=0 // pred_region
    _
  $region61: #{discriminator_forward.3} parent=0 // pred_fallthru
    _
  %v50 = vld [vmem:[%s0] sm:$0xff]
  %v51 = vld [vmem:[%s0 + $0x8] sm:$0xff]
  %v52 = vld [vmem:[%s0 + $0x10] sm:$0xff]
  %v53 = vld [vmem:[%s0 + $0x18] sm:$0xff]
  %v54 = vld [vmem:[%s0 + $0x20] sm:$0x3]
  %v55 = vld [vmem:[%s1] sm:$0xff]
  %v56 = vld [vmem:[%s1 + $0x8] sm:$0xff]
  %v57 = vld [vmem:[%s1 + $0x10] sm:$0xff]
  %v58 = vld [vmem:[%s1 + $0x18] sm:$0xff]
  %v59 = vld [vmem:[%s1 + $0x20] sm:$0x3]
  %v60 = vadd.f32 %v50, %v55
  %v61 = vadd.f32 %v51, %v56
  %v62 = vadd.f32 %v52, %v57
  %v63 = vadd.f32 %v53, %v58
  %v64 = vadd.f32 %v54, %v59
  %vm65 = vcmask 261120
  %v66 = vsel %vm65, %v60, 0.0
  %v67 = vsel %vm65, %v61, 0.0
  %v68 = vadd.f32 %v66, %v67
  %v69 = vsel %vm65, %v62, 0.0
  %v70 = vadd.f32 %v68, %v69
  %v71 = vsel %vm65, %v63, 0.0
  %v72 = vadd.f32 %v70, %v71
  %vm73 = vcmask 254976
  %v74 = vsel %vm73, %v64, 0.0
  %v75 = vadd.f32 %v72, %v74
  %v76 = vrot.slane %v75, 4
  %v77 = vadd.f32 %v75, %v76
  %v78 = vrot.slane %v77, 2
  %v79 = vadd.f32 %v77, %v78
  %v80 = vrot.slane %v79, 1
  %v81 = vadd.f32 %v79, %v80
  %v82 = vrcp.pop 34.0
  %v83 = vmul.f32 %v81, %v82
  %v84 = vsub.f32 %v60, %v83
  %v85 = vsub.f32 %v61, %v83
  %v86 = vsub.f32 %v62, %v83
  %v87 = vsub.f32 %v63, %v83
  %v88 = vsub.f32 %v64, %v83
  %v89 = vmul.f32 %v84, %v84
  %v90 = vmul.f32 %v85, %v85
  %v91 = vmul.f32 %v86, %v86
  %v92 = vmul.f32 %v87, %v87
  %v93 = vmul.f32 %v88, %v88
  %v94 = vsel %vm65, %v89, 0.0
  %v95 = vsel %vm65, %v90, 0.0
  %v96 = vadd.f32 %v94, %v95
  %v97 = vsel %vm65, %v91, 0.0
  %v98 = vadd.f32 %v96, %v97
  %v99 = vsel %vm65, %v92, 0.0
  %v100 = vadd.f32 %v98, %v99
  %v101 = vsel %vm73, %v93, 0.0
  %v102 = vadd.f32 %v100, %v101
  %v103 = vrot.slane %v102, 4
  %v104 = vadd.f32 %v102, %v103
  %v105 = vrot.slane %v104, 2
  %v106 = vadd.f32 %v104, %v105
  %v107 = vrot.slane %v106, 1
  %v108 = vadd.f32 %v106, %v107
  %v109 = vmul.f32 %v108, %v82
  %v110 = vadd.f32 %v109, 1e-05
  %v111 = vrsqrt.pop %v110
  %v112 = vmul.f32 %v84, %v111
  %v113 = vmul.f32 %v85, %v111
  %v114 = vmul.f32 %v86, %v111
  %v115 = vmul.f32 %v87, %v111
  %v116 = vmul.f32 %v88, %v111
  %v117 = vld [vmem:[%s3] sm:$0x1]
  %v119 = vlaneseq
  %v120 = vshrl.u32 %v119, 7
  %v121 = vsub.s32 0, %v120
  %v122 = vrot.slane %v117, %v121
  %v124 = vmul.f32 %v112, %v122
  %v125 = vmul.f32 %v113, %v122
  %v126 = vmul.f32 %v114, %v122
  %v127 = vmul.f32 %v115, %v122
  %v128 = vmul.f32 %v116, %v122
  %v129 = vld [vmem:[%s4] sm:$0x1]
  %v131 = vlaneseq
  %v132 = vshrl.u32 %v131, 7
  %v133 = vsub.s32 0, %v132
  %v134 = vrot.slane %v129, %v133
  %v136 = vadd.f32 %v124, %v134
  %v137 = vadd.f32 %v125, %v134
  %v138 = vadd.f32 %v126, %v134
  %v139 = vadd.f32 %v127, %v134
  %v140 = vadd.f32 %v128, %v134
  %v141 = vld [vmem:[%s5] sm:$0xff]
  %v142 = vld [vmem:[%s5 + $0x8] sm:$0xff]
  %v143 = vld [vmem:[%s5 + $0x10] sm:$0xff]
  %v144 = vld [vmem:[%s5 + $0x18] sm:$0xff]
  %v145 = vld [vmem:[%s6] sm:$0x1]
  %v147 = vlaneseq
  %v148 = vshrl.u32 %v147, 7
  %v149 = vsub.s32 0, %v148
  %v150 = vrot.slane %v145, %v149
  %v153 = vsel %vm65, %v136, 0
  %v156 = vsel %vm65, %v137, 0
  %v159 = vsel %vm65, %v138, 0
  %v162 = vsel %vm65, %v139, 0
  %v165 = vsel %vm65, %v140, 0
  %167 = vmatprep.subr.mxu0 0.0
  %168 = vmatpush1.msra.mxu0 %v141
  %169 = vmatprep.subr.mxu0 0.0
  %170 = vmatpush1.msra.mxu0 %v142
  %171 = vmatprep.subr.mxu0 0.0
  %172 = vmatpush1.msra.mxu0 %v143
  %173 = vmatprep.subr.mxu0 0.0
  %174 = vmatpush1.msra.mxu0 %v144
  %175 = vmatprep.subr.mxu0 0.0
  %176 = vmatpush1.msra.mxu0 0.0
  %177 = vmatprep.subr.mxu0 0.0
  %178 = vmatpush1.msra.mxu0 0.0
  %179 = vmatprep.subr.mxu0 0.0
  %180 = vmatpush1.msra.mxu0 0.0
  %181 = vmatprep.subr.mxu0 0.0
  %182 = vmatpush1.msra.mxu0 0.0
  %183 = vmatprep.subr.mxu0 0.0
  %184 = vmatpush1.msra.mxu0 0.0
  %185 = vmatprep.subr.mxu0 0.0
  %186 = vmatpush1.msra.mxu0 0.0
  %187 = vmatprep.subr.mxu0 0.0
  %188 = vmatpush1.msra.mxu0 0.0
  %189 = vmatprep.subr.mxu0 0.0
  %190 = vmatpush1.msra.mxu0 0.0
  %191 = vmatprep.subr.mxu0 0.0
  %192 = vmatpush1.msra.mxu0 0.0
  %193 = vmatprep.subr.mxu0 0.0
  %194 = vmatpush1.msra.mxu0 0.0
  %195 = vmatprep.subr.mxu0 0.0
  %196 = vmatpush1.msra.mxu0 0.0
  %197 = vmatprep.subr.mxu0 0.0
  %198 = vmatpush1.msra.mxu0 0.0
  %199 = vmatprep.subr.mxu0 0.0
  %200 = vmatpush1.msra.mxu0 0.0
  %201 = vmatprep.subr.mxu0 0.0
  %202 = vmatpush1.msra.mxu0 0.0
  %203 = vmatprep.subr.mxu0 0.0
  %204 = vmatpush1.msra.mxu0 0.0
  %205 = vmatprep.subr.mxu0 0.0
  %206 = vmatpush1.msra.mxu0 0.0
  %207 = vmatprep.subr.mxu0 0.0
  %208 = vmatpush1.msra.mxu0 0.0
  %209 = vmatprep.subr.mxu0 0.0
  %210 = vmatpush1.msra.mxu0 0.0
  %211 = vmatprep.subr.mxu0 0.0
  %212 = vmatpush1.msra.mxu0 0.0
  %213 = vmatprep.subr.mxu0 0.0
  %214 = vmatpush1.msra.mxu0 0.0
  %215 = vmatprep.subr.mxu0 0.0
  %216 = vmatpush1.msra.mxu0 0.0
  %217 = vmatprep.subr.mxu0 0.0
  %218 = vmatpush1.msra.mxu0 0.0
  %219 = vmatprep.subr.mxu0 0.0
  %220 = vmatpush1.msra.mxu0 0.0
  %221 = vmatprep.subr.mxu0 0.0
  %222 = vmatpush1.msra.mxu0 0.0
  %223 = vmatprep.subr.mxu0 0.0
  %224 = vmatpush1.msra.mxu0 0.0
  %225 = vmatprep.subr.mxu0 0.0
  %226 = vmatpush1.msra.mxu0 0.0
  %227 = vmatprep.subr.mxu0 0.0
  %228 = vmatpush1.msra.mxu0 0.0
  %229 = vmatprep.subr.mxu0 0.0
  %230 = vmatpush1.msra.mxu0 0.0
  %231 = vmatprep.mubr.f32.mxu0 0.0
  %232 = vmatmul.mubr.f32.gmra.mrb[0].mxu0 %v153
  %v233 = vpop.f32.mrb[0].mxu0
  %v234 = vadd.f32 %v150, %v233
  %v235 = vpop.f32.mrb[0].mxu0
  %236 = vmatprep.mubr.f32.mxu0 0.0
  %237 = vmatmul.mubr.f32.gmra.mrb[0].mxu0 %v156
  %v238 = vpop.f32.mrb[0].mxu0
  %v239 = vadd.f32 %v150, %v238
  %v240 = vpop.f32.mrb[0].mxu0
  %241 = vmatprep.mubr.f32.mxu0 0.0
  %242 = vmatmul.mubr.f32.gmra.mrb[0].mxu0 %v159
  %v243 = vpop.f32.mrb[0].mxu0
  %v244 = vadd.f32 %v150, %v243
  %v245 = vpop.f32.mrb[0].mxu0
  %246 = vmatprep.mubr.f32.mxu0 0.0
  %247 = vmatmul.mubr.f32.gmra.mrb[0].mxu0 %v162
  %v248 = vpop.f32.mrb[0].mxu0
  %v249 = vadd.f32 %v150, %v248
  %v250 = vpop.f32.mrb[0].mxu0
  %251 = vmatprep.mubr.f32.mxu0 0.0
  %252 = vmatmul.mubr.f32.gmra.mrb[0].mxu0 %v165
  %v253 = vpop.f32.mrb[0].mxu0
  %v254 = vadd.f32 %v150, %v253
  %v255 = vpop.f32.mrb[0].mxu0
  %256 = vdwg.mxu0
  %v257 = vld [vmem:[%s2] sm:$0xff]
  %v258 = vld [vmem:[%s2 + $0x8] sm:$0xff]
  %v259 = vld [vmem:[%s2 + $0x10] sm:$0xff]
  %v260 = vld [vmem:[%s2 + $0x18] sm:$0xff]
  %v261 = vld [vmem:[%s2 + $0x20] sm:$0x3]
  %v262 = vld [vmem:[%s7] sm:$0xff]
  %v263 = vld [vmem:[%s7 + $0x8] sm:$0xff]
  %v264 = vld [vmem:[%s7 + $0x10] sm:$0xff]
  %v265 = vld [vmem:[%s7 + $0x18] sm:$0xff]
  %271 = vrot.lane.b32.xlu0 %v234, 96
  %v272 = vpop.permute.xlu0 %271
  %273 = vrot.lane.b32.xlu0 %v239, 96
  %v274 = vpop.permute.xlu0 %273
  %275 = vrot.lane.b32.xlu0 %v244, 96
  %v276 = vpop.permute.xlu0 %275
  %277 = vrot.lane.b32.xlu0 %v249, 96
  %v278 = vpop.permute.xlu0 %277
  %279 = vrot.lane.b32.xlu0 %v254, 96
  %v280 = vpop.permute.xlu0 %279
  %vm281 = vcmask 64512
  %v282 = vsel %vm281, %v234, 0
  %v284 = vsel %vm281, %v239, 0
  %v286 = vsel %vm281, %v244, 0
  %v288 = vsel %vm281, %v249, 0
  %v290 = vsel %vm281, %v254, 0
  %v292 = vsel %vm281, %v272, 0
  %v294 = vsel %vm281, %v274, 0
  %v296 = vsel %vm281, %v276, 0
  %v298 = vsel %vm281, %v278, 0
  %v300 = vsel %vm281, %v280, 0
  %302 = vmatprep.subr.mxu0 0.0
  %303 = vmatpush1.xpose.msra.mxu0 %v292
  %304 = vmatprep.subr.mxu0 0.0
  %305 = vmatpush1.xpose.msra.mxu0 %v294
  %306 = vmatprep.subr.mxu0 0.0
  %307 = vmatpush1.xpose.msra.mxu0 %v296
  %308 = vmatprep.subr.mxu0 0.0
  %309 = vmatpush1.xpose.msra.mxu0 %v298
  %310 = vmatprep.subr.mxu0 0.0
  %311 = vmatpush1.xpose.msra.mxu0 %v300
  %312 = vmatprep.subr.mxu0 0.0
  %313 = vmatpush1.xpose.msra.mxu0 0.0
  %314 = vmatprep.subr.mxu0 0.0
  %315 = vmatpush1.xpose.msra.mxu0 0.0
  %316 = vmatprep.subr.mxu0 0.0
  %317 = vmatpush1.xpose.msra.mxu0 0.0
  %318 = vmatprep.subr.mxu0 0.0
  %319 = vmatpush1.xpose.msra.mxu0 0.0
  %320 = vmatprep.subr.mxu0 0.0
  %321 = vmatpush1.xpose.msra.mxu0 0.0
  %322 = vmatprep.subr.mxu0 0.0
  %323 = vmatpush1.xpose.msra.mxu0 0.0
  %324 = vmatprep.subr.mxu0 0.0
  %325 = vmatpush1.xpose.msra.mxu0 0.0
  %326 = vmatprep.subr.mxu0 0.0
  %327 = vmatpush1.xpose.msra.mxu0 0.0
  %328 = vmatprep.subr.mxu0 0.0
  %329 = vmatpush1.xpose.msra.mxu0 0.0
  %330 = vmatprep.subr.mxu0 0.0
  %331 = vmatpush1.xpose.msra.mxu0 0.0
  %332 = vmatprep.subr.mxu0 0.0
  %333 = vmatpush1.xpose.msra.mxu0 0.0
  %334 = vmatprep.subr.mxu0 0.0
  %335 = vmatpush1.xpose.msra.mxu0 0.0
  %336 = vmatprep.subr.mxu0 0.0
  %337 = vmatpush1.xpose.msra.mxu0 0.0
  %338 = vmatprep.subr.mxu0 0.0
  %339 = vmatpush1.xpose.msra.mxu0 0.0
  %340 = vmatprep.subr.mxu0 0.0
  %341 = vmatpush1.xpose.msra.mxu0 0.0
  %342 = vmatprep.subr.mxu0 0.0
  %343 = vmatpush1.xpose.msra.mxu0 0.0
  %344 = vmatprep.subr.mxu0 0.0
  %345 = vmatpush1.xpose.msra.mxu0 0.0
  %346 = vmatprep.subr.mxu0 0.0
  %347 = vmatpush1.xpose.msra.mxu0 0.0
  %348 = vmatprep.subr.mxu0 0.0
  %349 = vmatpush1.xpose.msra.mxu0 0.0
  %350 = vmatprep.subr.mxu0 0.0
  %351 = vmatpush1.xpose.msra.mxu0 0.0
  %352 = vmatprep.subr.mxu0 0.0
  %353 = vmatpush1.xpose.msra.mxu0 0.0
  %354 = vmatprep.subr.mxu0 0.0
  %355 = vmatpush1.xpose.msra.mxu0 0.0
  %356 = vmatprep.subr.mxu0 0.0
  %357 = vmatpush1.xpose.msra.mxu0 0.0
  %358 = vmatprep.subr.mxu0 0.0
  %359 = vmatpush1.xpose.msra.mxu0 0.0
  %360 = vmatprep.subr.mxu0 0.0
  %361 = vmatpush1.xpose.msra.mxu0 0.0
  %362 = vmatprep.subr.mxu0 0.0
  %363 = vmatpush1.xpose.msra.mxu0 0.0
  %364 = vmatprep.subr.mxu0 0.0
  %365 = vmatpush1.xpose.msra.mxu0 0.0
  %366 = vmatprep.mubr.f32.mxu0 0.0
  %367 = vmatmul.mubr.f32.gmra.mrb[0].mxu0 %v282
  %v368 = vpop.f32.mrb[0].mxu0
  %v369 = vadd.f32 0.0, %v368
  %v370 = vpop.f32.mrb[0].mxu0
  %371 = vmatprep.mubr.f32.mxu0 0.0
  %372 = vmatmul.mubr.f32.gmra.mrb[0].mxu0 %v284
  %v373 = vpop.f32.mrb[0].mxu0
  %v374 = vadd.f32 0.0, %v373
  %v375 = vpop.f32.mrb[0].mxu0
  %376 = vmatprep.mubr.f32.mxu0 0.0
  %377 = vmatmul.mubr.f32.gmra.mrb[0].mxu0 %v286
  %v378 = vpop.f32.mrb[0].mxu0
  %v379 = vadd.f32 0.0, %v378
  %v380 = vpop.f32.mrb[0].mxu0
  %381 = vmatprep.mubr.f32.mxu0 0.0
  %382 = vmatmul.mubr.f32.gmra.mrb[0].mxu0 %v288
  %v383 = vpop.f32.mrb[0].mxu0
  %v384 = vadd.f32 0.0, %v383
  %v385 = vpop.f32.mrb[0].mxu0
  %386 = vmatprep.mubr.f32.mxu0 0.0
  %387 = vmatmul.mubr.f32.gmra.mrb[0].mxu0 %v290
  %v388 = vpop.f32.mrb[0].mxu0
  %v389 = vadd.f32 0.0, %v388
  %v390 = vpop.f32.mrb[0].mxu0
  %391 = vdwg.mxu0
  %v392 = vmul.f32 %v369, 0.35355338
  %v393 = vmul.f32 %v374, 0.35355338
  %v394 = vmul.f32 %v379, 0.35355338
  %v395 = vmul.f32 %v384, 0.35355338
  %v396 = vmul.f32 %v389, 0.35355338
  %v397 = vadd.f32 %v392, %v257
  %v398 = vadd.f32 %v393, %v258
  %v399 = vadd.f32 %v394, %v259
  %v400 = vadd.f32 %v395, %v260
  %v401 = vadd.f32 %v396, %v261
  %vm402 = vcmask 277504
  %v403 = vsel %vm402, %v397, -inf
  %404 = vmax.xlane.f32.xlu0 %v403
  %v405 = vpop.xlane.xlu0 %404
  %v406 = vsel %vm402, %v398, -inf
  %407 = vmax.xlane.f32.xlu0 %v406
  %v408 = vpop.xlane.xlu0 %407
  %v409 = vsel %vm402, %v399, -inf
  %410 = vmax.xlane.f32.xlu0 %v409
  %v411 = vpop.xlane.xlu0 %410
  %v412 = vsel %vm402, %v400, -inf
  %413 = vmax.xlane.f32.xlu0 %v412
  %v414 = vpop.xlane.xlu0 %413
  %vm415 = vcmask 271360
  %v416 = vsel %vm415, %v401, -inf
  %417 = vmax.xlane.f32.xlu0 %v416
  %v418 = vpop.xlane.xlu0 %417
  %v419 = vsub.f32 %v397, %v405
  %v420 = vsub.f32 %v398, %v408
  %v421 = vsub.f32 %v399, %v411
  %v422 = vsub.f32 %v400, %v414
  %v423 = vsub.f32 %v401, %v418
  %v424 = vmul.f32 %v419, 1.442695
  %v425 = vpow.pop %v424
  %v426 = vmul.f32 %v420, 1.442695
  %v427 = vpow.pop %v426
  %v428 = vmul.f32 %v421, 1.442695
  %v429 = vpow.pop %v428
  %v430 = vmul.f32 %v422, 1.442695
  %v431 = vpow.pop %v430
  %v432 = vmul.f32 %v423, 1.442695
  %v433 = vpow.pop %v432
  %v434 = vsel %vm402, %v425, 0.0
  %435 = vadd.xlane.f32.xlu0 %v434
  %v436 = vpop.xlane.xlu0 %435
  %v437 = vsel %vm402, %v427, 0.0
  %438 = vadd.xlane.f32.xlu0 %v437
  %v439 = vpop.xlane.xlu0 %438
  %v440 = vsel %vm402, %v429, 0.0
  %441 = vadd.xlane.f32.xlu0 %v440
  %v442 = vpop.xlane.xlu0 %441
  %v443 = vsel %vm402, %v431, 0.0
  %444 = vadd.xlane.f32.xlu0 %v443
  %v445 = vpop.xlane.xlu0 %444
  %v446 = vsel %vm415, %v433, 0.0
  %447 = vadd.xlane.f32.xlu0 %v446
  %v448 = vpop.xlane.xlu0 %447
  %v449 = vrcp.pop %v436
  %v450 = vmul.f32 %v425, %v449
  %v451 = vrcp.pop %v439
  %v452 = vmul.f32 %v427, %v451
  %v453 = vrcp.pop %v442
  %v454 = vmul.f32 %v429, %v453
  %v455 = vrcp.pop %v445
  %v456 = vmul.f32 %v431, %v455
  %v457 = vrcp.pop %v448
  %v458 = vmul.f32 %v433, %v457
  %459 = vrot.lane.b32.xlu0 %v234, 64
  %v460 = vpop.permute.xlu0 %459
  %461 = vrot.lane.b32.xlu0 %v239, 64
  %v462 = vpop.permute.xlu0 %461
  %463 = vrot.lane.b32.xlu0 %v244, 64
  %v464 = vpop.permute.xlu0 %463
  %465 = vrot.lane.b32.xlu0 %v249, 64
  %v466 = vpop.permute.xlu0 %465
  %467 = vrot.lane.b32.xlu0 %v254, 64
  %v468 = vpop.permute.xlu0 %467
  %v474 = vsel %vm402, %v450, 0
  %v477 = vsel %vm402, %v452, 0
  %v480 = vsel %vm402, %v454, 0
  %v483 = vsel %vm402, %v456, 0
  %v486 = vsel %vm402, %v458, 0
  %vm488 = vcmask 1041408
  %v489 = vsel %vm488, %v468, 0
  %491 = vmatprep.subr.mxu0 0.0
  %492 = vmatpush1.msra.mxu0 %v460
  %493 = vmatprep.subr.mxu0 0.0
  %494 = vmatpush1.msra.mxu0 %v462
  %495 = vmatprep.subr.mxu0 0.0
  %496 = vmatpush1.msra.mxu0 %v464
  %497 = vmatprep.subr.mxu0 0.0
  %498 = vmatpush1.msra.mxu0 %v466
  %499 = vmatprep.subr.mxu0 0.0
  %500 = vmatpush1.msra.mxu0 %v489
  %501 = vmatprep.subr.mxu0 0.0
  %502 = vmatpush1.msra.mxu0 0.0
  %503 = vmatprep.subr.mxu0 0.0
  %504 = vmatpush1.msra.mxu0 0.0
  %505 = vmatprep.subr.mxu0 0.0
  %506 = vmatpush1.msra.mxu0 0.0
  %507 = vmatprep.subr.mxu0 0.0
  %508 = vmatpush1.msra.mxu0 0.0
  %509 = vmatprep.subr.mxu0 0.0
  %510 = vmatpush1.msra.mxu0 0.0
  %511 = vmatprep.subr.mxu0 0.0
  %512 = vmatpush1.msra.mxu0 0.0
  %513 = vmatprep.subr.mxu0 0.0
  %514 = vmatpush1.msra.mxu0 0.0
  %515 = vmatprep.subr.mxu0 0.0
  %516 = vmatpush1.msra.mxu0 0.0
  %517 = vmatprep.subr.mxu0 0.0
  %518 = vmatpush1.msra.mxu0 0.0
  %519 = vmatprep.subr.mxu0 0.0
  %520 = vmatpush1.msra.mxu0 0.0
  %521 = vmatprep.subr.mxu0 0.0
  %522 = vmatpush1.msra.mxu0 0.0
  %523 = vmatprep.subr.mxu0 0.0
  %524 = vmatpush1.msra.mxu0 0.0
  %525 = vmatprep.subr.mxu0 0.0
  %526 = vmatpush1.msra.mxu0 0.0
  %527 = vmatprep.subr.mxu0 0.0
  %528 = vmatpush1.msra.mxu0 0.0
  %529 = vmatprep.subr.mxu0 0.0
  %530 = vmatpush1.msra.mxu0 0.0
  %531 = vmatprep.subr.mxu0 0.0
  %532 = vmatpush1.msra.mxu0 0.0
  %533 = vmatprep.subr.mxu0 0.0
  %534 = vmatpush1.msra.mxu0 0.0
  %535 = vmatprep.subr.mxu0 0.0
  %536 = vmatpush1.msra.mxu0 0.0
  %537 = vmatprep.subr.mxu0 0.0
  %538 = vmatpush1.msra.mxu0 0.0
  %539 = vmatprep.subr.mxu0 0.0
  %540 = vmatpush1.msra.mxu0 0.0
  %541 = vmatprep.subr.mxu0 0.0
  %542 = vmatpush1.msra.mxu0 0.0
  %543 = vmatprep.subr.mxu0 0.0
  %544 = vmatpush1.msra.mxu0 0.0
  %545 = vmatprep.subr.mxu0 0.0
  %546 = vmatpush1.msra.mxu0 0.0
  %547 = vmatprep.subr.mxu0 0.0
  %548 = vmatpush1.msra.mxu0 0.0
  %549 = vmatprep.subr.mxu0 0.0
  %550 = vmatpush1.msra.mxu0 0.0
  %551 = vmatprep.subr.mxu0 0.0
  %552 = vmatpush1.msra.mxu0 0.0
  %553 = vmatprep.subr.mxu0 0.0
  %554 = vmatpush1.msra.mxu0 0.0
  %555 = vmatprep.mubr.f32.mxu0 0.0
  %556 = vmatmul.mubr.f32.gmra.mrb[0].mxu0 %v474
  %v557 = vpop.f32.mrb[0].mxu0
  %v558 = vadd.f32 0.0, %v557
  %v559 = vpop.f32.mrb[0].mxu0
  %560 = vmatprep.mubr.f32.mxu0 0.0
  %561 = vmatmul.mubr.f32.gmra.mrb[0].mxu0 %v477
  %v562 = vpop.f32.mrb[0].mxu0
  %v563 = vadd.f32 0.0, %v562
  %v564 = vpop.f32.mrb[0].mxu0
  %565 = vmatprep.mubr.f32.mxu0 0.0
  %566 = vmatmul.mubr.f32.gmra.mrb[0].mxu0 %v480
  %v567 = vpop.f32.mrb[0].mxu0
  %v568 = vadd.f32 0.0, %v567
  %v569 = vpop.f32.mrb[0].mxu0
  %570 = vmatprep.mubr.f32.mxu0 0.0
  %571 = vmatmul.mubr.f32.gmra.mrb[0].mxu0 %v483
  %v572 = vpop.f32.mrb[0].mxu0
  %v573 = vadd.f32 0.0, %v572
  %v574 = vpop.f32.mrb[0].mxu0
  %575 = vmatprep.mubr.f32.mxu0 0.0
  %576 = vmatmul.mubr.f32.gmra.mrb[0].mxu0 %v486
  %v577 = vpop.f32.mrb[0].mxu0
  %v578 = vadd.f32 0.0, %v577
  %v579 = vpop.f32.mrb[0].mxu0
  %580 = vdwg.mxu0
  %581 = vrot.lane.b32.xlu0 %v234, 120
  %v582 = vpop.permute.xlu0 %581
  %583 = vrot.lane.b32.xlu0 %v239, 120
  %v584 = vpop.permute.xlu0 %583
  %585 = vrot.lane.b32.xlu0 %v244, 120
  %v586 = vpop.permute.xlu0 %585
  %587 = vrot.lane.b32.xlu0 %v249, 120
  %v588 = vpop.permute.xlu0 %587
  %589 = vrot.lane.b32.xlu0 %v254, 120
  %v590 = vpop.permute.xlu0 %589
  %591 = vrot.lane.b32.xlu0 %v234, 88
  %v592 = vpop.permute.xlu0 %591
  %593 = vrot.lane.b32.xlu0 %v239, 88
  %v594 = vpop.permute.xlu0 %593
  %595 = vrot.lane.b32.xlu0 %v244, 88
  %v596 = vpop.permute.xlu0 %595
  %597 = vrot.lane.b32.xlu0 %v249, 88
  %v598 = vpop.permute.xlu0 %597
  %599 = vrot.lane.b32.xlu0 %v254, 88
  %v600 = vpop.permute.xlu0 %599
  %v601 = vsel %vm281, %v582, 0
  %v603 = vsel %vm281, %v584, 0
  %v605 = vsel %vm281, %v586, 0
  %v607 = vsel %vm281, %v588, 0
  %v609 = vsel %vm281, %v590, 0
  %v611 = vsel %vm281, %v592, 0
  %v613 = vsel %vm281, %v594, 0
  %v615 = vsel %vm281, %v596, 0
  %v617 = vsel %vm281, %v598, 0
  %v619 = vsel %vm281, %v600, 0
  %621 = vmatprep.subr.mxu0 0.0
  %622 = vmatpush1.xpose.msra.mxu0 %v611
  %623 = vmatprep.subr.mxu0 0.0
  %624 = vmatpush1.xpose.msra.mxu0 %v613
  %625 = vmatprep.subr.mxu0 0.0
  %626 = vmatpush1.xpose.msra.mxu0 %v615
  %627 = vmatprep.subr.mxu0 0.0
  %628 = vmatpush1.xpose.msra.mxu0 %v617
  %629 = vmatprep.subr.mxu0 0.0
  %630 = vmatpush1.xpose.msra.mxu0 %v619
  %631 = vmatprep.subr.mxu0 0.0
  %632 = vmatpush1.xpose.msra.mxu0 0.0
  %633 = vmatprep.subr.mxu0 0.0
  %634 = vmatpush1.xpose.msra.mxu0 0.0
  %635 = vmatprep.subr.mxu0 0.0
  %636 = vmatpush1.xpose.msra.mxu0 0.0
  %637 = vmatprep.subr.mxu0 0.0
  %638 = vmatpush1.xpose.msra.mxu0 0.0
  %639 = vmatprep.subr.mxu0 0.0
  %640 = vmatpush1.xpose.msra.mxu0 0.0
  %641 = vmatprep.subr.mxu0 0.0
  %642 = vmatpush1.xpose.msra.mxu0 0.0
  %643 = vmatprep.subr.mxu0 0.0
  %644 = vmatpush1.xpose.msra.mxu0 0.0
  %645 = vmatprep.subr.mxu0 0.0
  %646 = vmatpush1.xpose.msra.mxu0 0.0
  %647 = vmatprep.subr.mxu0 0.0
  %648 = vmatpush1.xpose.msra.mxu0 0.0
  %649 = vmatprep.subr.mxu0 0.0
  %650 = vmatpush1.xpose.msra.mxu0 0.0
  %651 = vmatprep.subr.mxu0 0.0
  %652 = vmatpush1.xpose.msra.mxu0 0.0
  %653 = vmatprep.subr.mxu0 0.0
  %654 = vmatpush1.xpose.msra.mxu0 0.0
  %655 = vmatprep.subr.mxu0 0.0
  %656 = vmatpush1.xpose.msra.mxu0 0.0
  %657 = vmatprep.subr.mxu0 0.0
  %658 = vmatpush1.xpose.msra.mxu0 0.0
  %659 = vmatprep.subr.mxu0 0.0
  %660 = vmatpush1.xpose.msra.mxu0 0.0
  %661 = vmatprep.subr.mxu0 0.0
  %662 = vmatpush1.xpose.msra.mxu0 0.0
  %663 = vmatprep.subr.mxu0 0.0
  %664 = vmatpush1.xpose.msra.mxu0 0.0
  %665 = vmatprep.subr.mxu0 0.0
  %666 = vmatpush1.xpose.msra.mxu0 0.0
  %667 = vmatprep.subr.mxu0 0.0
  %668 = vmatpush1.xpose.msra.mxu0 0.0
  %669 = vmatprep.subr.mxu0 0.0
  %670 = vmatpush1.xpose.msra.mxu0 0.0
  %671 = vmatprep.subr.mxu0 0.0
  %672 = vmatpush1.xpose.msra.mxu0 0.0
  %673 = vmatprep.subr.mxu0 0.0
  %674 = vmatpush1.xpose.msra.mxu0 0.0
  %675 = vmatprep.subr.mxu0 0.0
  %676 = vmatpush1.xpose.msra.mxu0 0.0
  %677 = vmatprep.subr.mxu0 0.0
  %678 = vmatpush1.xpose.msra.mxu0 0.0
  %679 = vmatprep.subr.mxu0 0.0
  %680 = vmatpush1.xpose.msra.mxu0 0.0
  %681 = vmatprep.subr.mxu0 0.0
  %682 = vmatpush1.xpose.msra.mxu0 0.0
  %683 = vmatprep.subr.mxu0 0.0
  %684 = vmatpush1.xpose.msra.mxu0 0.0
  %685 = vmatprep.mubr.f32.mxu0 0.0
  %686 = vmatmul.mubr.f32.gmra.mrb[0].mxu0 %v601
  %v687 = vpop.f32.mrb[0].mxu0
  %v688 = vadd.f32 0.0, %v687
  %v689 = vpop.f32.mrb[0].mxu0
  %690 = vmatprep.mubr.f32.mxu0 0.0
  %691 = vmatmul.mubr.f32.gmra.mrb[0].mxu0 %v603
  %v692 = vpop.f32.mrb[0].mxu0
  %v693 = vadd.f32 0.0, %v692
  %v694 = vpop.f32.mrb[0].mxu0
  %695 = vmatprep.mubr.f32.mxu0 0.0
  %696 = vmatmul.mubr.f32.gmra.mrb[0].mxu0 %v605
  %v697 = vpop.f32.mrb[0].mxu0
  %v698 = vadd.f32 0.0, %v697
  %v699 = vpop.f32.mrb[0].mxu0
  %700 = vmatprep.mubr.f32.mxu0 0.0
  %701 = vmatmul.mubr.f32.gmra.mrb[0].mxu0 %v607
  %v702 = vpop.f32.mrb[0].mxu0
  %v703 = vadd.f32 0.0, %v702
  %v704 = vpop.f32.mrb[0].mxu0
  %705 = vmatprep.mubr.f32.mxu0 0.0
  %706 = vmatmul.mubr.f32.gmra.mrb[0].mxu0 %v609
  %v707 = vpop.f32.mrb[0].mxu0
  %v708 = vadd.f32 0.0, %v707
  %v709 = vpop.f32.mrb[0].mxu0
  %710 = vdwg.mxu0
  %v711 = vmul.f32 %v688, 0.35355338
  %v712 = vmul.f32 %v693, 0.35355338
  %v713 = vmul.f32 %v698, 0.35355338
  %v714 = vmul.f32 %v703, 0.35355338
  %v715 = vmul.f32 %v708, 0.35355338
  %v716 = vadd.f32 %v711, %v257
  %v717 = vadd.f32 %v712, %v258
  %v718 = vadd.f32 %v713, %v259
  %v719 = vadd.f32 %v714, %v260
  %v720 = vadd.f32 %v715, %v261
  %v721 = vsel %vm402, %v716, -inf
  %722 = vmax.xlane.f32.xlu0 %v721
  %v723 = vpop.xlane.xlu0 %722
  %v724 = vsel %vm402, %v717, -inf
  %725 = vmax.xlane.f32.xlu0 %v724
  %v726 = vpop.xlane.xlu0 %725
  %v727 = vsel %vm402, %v718, -inf
  %728 = vmax.xlane.f32.xlu0 %v727
  %v729 = vpop.xlane.xlu0 %728
  %v730 = vsel %vm402, %v719, -inf
  %731 = vmax.xlane.f32.xlu0 %v730
  %v732 = vpop.xlane.xlu0 %731
  %v733 = vsel %vm415, %v720, -inf
  %734 = vmax.xlane.f32.xlu0 %v733
  %v735 = vpop.xlane.xlu0 %734
  %v736 = vsub.f32 %v716, %v723
  %v737 = vsub.f32 %v717, %v726
  %v738 = vsub.f32 %v718, %v729
  %v739 = vsub.f32 %v719, %v732
  %v740 = vsub.f32 %v720, %v735
  %v741 = vmul.f32 %v736, 1.442695
  %v742 = vpow.pop %v741
  %v743 = vmul.f32 %v737, 1.442695
  %v744 = vpow.pop %v743
  %v745 = vmul.f32 %v738, 1.442695
  %v746 = vpow.pop %v745
  %v747 = vmul.f32 %v739, 1.442695
  %v748 = vpow.pop %v747
  %v749 = vmul.f32 %v740, 1.442695
  %v750 = vpow.pop %v749
  %v751 = vsel %vm402, %v742, 0.0
  %752 = vadd.xlane.f32.xlu0 %v751
  %v753 = vpop.xlane.xlu0 %752
  %v754 = vsel %vm402, %v744, 0.0
  %755 = vadd.xlane.f32.xlu0 %v754
  %v756 = vpop.xlane.xlu0 %755
  %v757 = vsel %vm402, %v746, 0.0
  %758 = vadd.xlane.f32.xlu0 %v757
  %v759 = vpop.xlane.xlu0 %758
  %v760 = vsel %vm402, %v748, 0.0
  %761 = vadd.xlane.f32.xlu0 %v760
  %v762 = vpop.xlane.xlu0 %761
  %v763 = vsel %vm415, %v750, 0.0
  %764 = vadd.xlane.f32.xlu0 %v763
  %v765 = vpop.xlane.xlu0 %764
  %v766 = vrcp.pop %v753
  %v767 = vmul.f32 %v742, %v766
  %v768 = vrcp.pop %v756
  %v769 = vmul.f32 %v744, %v768
  %v770 = vrcp.pop %v759
  %v771 = vmul.f32 %v746, %v770
  %v772 = vrcp.pop %v762
  %v773 = vmul.f32 %v748, %v772
  %v774 = vrcp.pop %v765
  %v775 = vmul.f32 %v750, %v774
  %776 = vrot.lane.b32.xlu0 %v234, 56
  %v777 = vpop.permute.xlu0 %776
  %778 = vrot.lane.b32.xlu0 %v239, 56
  %v779 = vpop.permute.xlu0 %778
  %780 = vrot.lane.b32.xlu0 %v244, 56
  %v781 = vpop.permute.xlu0 %780
  %782 = vrot.lane.b32.xlu0 %v249, 56
  %v783 = vpop.permute.xlu0 %782
  %784 = vrot.lane.b32.xlu0 %v254, 56
  %v785 = vpop.permute.xlu0 %784
  %v791 = vsel %vm402, %v767, 0
  %v794 = vsel %vm402, %v769, 0
  %v797 = vsel %vm402, %v771, 0
  %v800 = vsel %vm402, %v773, 0
  %v803 = vsel %vm402, %v775, 0
  %v805 = vsel %vm488, %v785, 0
  %807 = vmatprep.subr.mxu0 0.0
  %808 = vmatpush1.msra.mxu0 %v777
  %809 = vmatprep.subr.mxu0 0.0
  %810 = vmatpush1.msra.mxu0 %v779
  %811 = vmatprep.subr.mxu0 0.0
  %812 = vmatpush1.msra.mxu0 %v781
  %813 = vmatprep.subr.mxu0 0.0
  %814 = vmatpush1.msra.mxu0 %v783
  %815 = vmatprep.subr.mxu0 0.0
  %816 = vmatpush1.msra.mxu0 %v805
  %817 = vmatprep.subr.mxu0 0.0
  %818 = vmatpush1.msra.mxu0 0.0
  %819 = vmatprep.subr.mxu0 0.0
  %820 = vmatpush1.msra.mxu0 0.0
  %821 = vmatprep.subr.mxu0 0.0
  %822 = vmatpush1.msra.mxu0 0.0
  %823 = vmatprep.subr.mxu0 0.0
  %824 = vmatpush1.msra.mxu0 0.0
  %825 = vmatprep.subr.mxu0 0.0
  %826 = vmatpush1.msra.mxu0 0.0
  %827 = vmatprep.subr.mxu0 0.0
  %828 = vmatpush1.msra.mxu0 0.0
  %829 = vmatprep.subr.mxu0 0.0
  %830 = vmatpush1.msra.mxu0 0.0
  %831 = vmatprep.subr.mxu0 0.0
  %832 = vmatpush1.msra.mxu0 0.0
  %833 = vmatprep.subr.mxu0 0.0
  %834 = vmatpush1.msra.mxu0 0.0
  %835 = vmatprep.subr.mxu0 0.0
  %836 = vmatpush1.msra.mxu0 0.0
  %837 = vmatprep.subr.mxu0 0.0
  %838 = vmatpush1.msra.mxu0 0.0
  %839 = vmatprep.subr.mxu0 0.0
  %840 = vmatpush1.msra.mxu0 0.0
  %841 = vmatprep.subr.mxu0 0.0
  %842 = vmatpush1.msra.mxu0 0.0
  %843 = vmatprep.subr.mxu0 0.0
  %844 = vmatpush1.msra.mxu0 0.0
  %845 = vmatprep.subr.mxu0 0.0
  %846 = vmatpush1.msra.mxu0 0.0
  %847 = vmatprep.subr.mxu0 0.0
  %848 = vmatpush1.msra.mxu0 0.0
  %849 = vmatprep.subr.mxu0 0.0
  %850 = vmatpush1.msra.mxu0 0.0
  %851 = vmatprep.subr.mxu0 0.0
  %852 = vmatpush1.msra.mxu0 0.0
  %853 = vmatprep.subr.mxu0 0.0
  %854 = vmatpush1.msra.mxu0 0.0
  %855 = vmatprep.subr.mxu0 0.0
  %856 = vmatpush1.msra.mxu0 0.0
  %857 = vmatprep.subr.mxu0 0.0
  %858 = vmatpush1.msra.mxu0 0.0
  %859 = vmatprep.subr.mxu0 0.0
  %860 = vmatpush1.msra.mxu0 0.0
  %861 = vmatprep.subr.mxu0 0.0
  %862 = vmatpush1.msra.mxu0 0.0
  %863 = vmatprep.subr.mxu0 0.0
  %864 = vmatpush1.msra.mxu0 0.0
  %865 = vmatprep.subr.mxu0 0.0
  %866 = vmatpush1.msra.mxu0 0.0
  %867 = vmatprep.subr.mxu0 0.0
  %868 = vmatpush1.msra.mxu0 0.0
  %869 = vmatprep.subr.mxu0 0.0
  %870 = vmatpush1.msra.mxu0 0.0
  %871 = vmatprep.mubr.f32.mxu0 0.0
  %872 = vmatmul.mubr.f32.gmra.mrb[0].mxu0 %v791
  %v873 = vpop.f32.mrb[0].mxu0
  %v874 = vadd.f32 0.0, %v873
  %v875 = vpop.f32.mrb[0].mxu0
  %876 = vmatprep.mubr.f32.mxu0 0.0
  %877 = vmatmul.mubr.f32.gmra.mrb[0].mxu0 %v794
  %v878 = vpop.f32.mrb[0].mxu0
  %v879 = vadd.f32 0.0, %v878
  %v880 = vpop.f32.mrb[0].mxu0
  %881 = vmatprep.mubr.f32.mxu0 0.0
  %882 = vmatmul.mubr.f32.gmra.mrb[0].mxu0 %v797
  %v883 = vpop.f32.mrb[0].mxu0
  %v884 = vadd.f32 0.0, %v883
  %v885 = vpop.f32.mrb[0].mxu0
  %886 = vmatprep.mubr.f32.mxu0 0.0
  %887 = vmatmul.mubr.f32.gmra.mrb[0].mxu0 %v800
  %v888 = vpop.f32.mrb[0].mxu0
  %v889 = vadd.f32 0.0, %v888
  %v890 = vpop.f32.mrb[0].mxu0
  %891 = vmatprep.mubr.f32.mxu0 0.0
  %892 = vmatmul.mubr.f32.gmra.mrb[0].mxu0 %v803
  %v893 = vpop.f32.mrb[0].mxu0
  %v894 = vadd.f32 0.0, %v893
  %v895 = vpop.f32.mrb[0].mxu0
  %896 = vdwg.mxu0
  %v898 = vsel %vm281, %v874, 0
  %v901 = vsel %vm281, %v879, 0
  %v904 = vsel %vm281, %v884, 0
  %v907 = vsel %vm281, %v889, 0
  %v910 = vsel %vm281, %v894, 0
  %912 = vmatprep.subr.mxu0 0.0
  %913 = vmatpush1.msra.mxu0 %v263
  %914 = vmatprep.subr.mxu0 0.0
  %915 = vmatpush1.msra.mxu0 0.0
  %916 = vmatprep.subr.mxu0 0.0
  %917 = vmatpush1.msra.mxu0 0.0
  %918 = vmatprep.subr.mxu0 0.0
  %919 = vmatpush1.msra.mxu0 0.0
  %920 = vmatprep.subr.mxu0 0.0
  %921 = vmatpush1.msra.mxu0 0.0
  %922 = vmatprep.subr.mxu0 0.0
  %923 = vmatpush1.msra.mxu0 0.0
  %924 = vmatprep.subr.mxu0 0.0
  %925 = vmatpush1.msra.mxu0 0.0
  %926 = vmatprep.subr.mxu0 0.0
  %927 = vmatpush1.msra.mxu0 0.0
  %928 = vmatprep.subr.mxu0 0.0
  %929 = vmatpush1.msra.mxu0 0.0
  %930 = vmatprep.subr.mxu0 0.0
  %931 = vmatpush1.msra.mxu0 0.0
  %932 = vmatprep.subr.mxu0 0.0
  %933 = vmatpush1.msra.mxu0 0.0
  %934 = vmatprep.subr.mxu0 0.0
  %935 = vmatpush1.msra.mxu0 0.0
  %936 = vmatprep.subr.mxu0 0.0
  %937 = vmatpush1.msra.mxu0 0.0
  %938 = vmatprep.subr.mxu0 0.0
  %939 = vmatpush1.msra.mxu0 0.0
  %940 = vmatprep.subr.mxu0 0.0
  %941 = vmatpush1.msra.mxu0 0.0
  %942 = vmatprep.subr.mxu0 0.0
  %943 = vmatpush1.msra.mxu0 0.0
  %944 = vmatprep.subr.mxu0 0.0
  %945 = vmatpush1.msra.mxu0 0.0
  %946 = vmatprep.subr.mxu0 0.0
  %947 = vmatpush1.msra.mxu0 0.0
  %948 = vmatprep.subr.mxu0 0.0
  %949 = vmatpush1.msra.mxu0 0.0
  %950 = vmatprep.subr.mxu0 0.0
  %951 = vmatpush1.msra.mxu0 0.0
  %952 = vmatprep.subr.mxu0 0.0
  %953 = vmatpush1.msra.mxu0 0.0
  %954 = vmatprep.subr.mxu0 0.0
  %955 = vmatpush1.msra.mxu0 0.0
  %956 = vmatprep.subr.mxu0 0.0
  %957 = vmatpush1.msra.mxu0 0.0
  %958 = vmatprep.subr.mxu0 0.0
  %959 = vmatpush1.msra.mxu0 0.0
  %960 = vmatprep.subr.mxu0 0.0
  %961 = vmatpush1.msra.mxu0 0.0
  %962 = vmatprep.subr.mxu0 0.0
  %963 = vmatpush1.msra.mxu0 0.0
  %964 = vmatprep.subr.mxu0 0.0
  %965 = vmatpush1.msra.mxu0 0.0
  %966 = vmatprep.subr.mxu0 0.0
  %967 = vmatpush1.msra.mxu0 0.0
  %968 = vmatprep.subr.mxu0 0.0
  %969 = vmatpush1.msra.mxu0 0.0
  %970 = vmatprep.subr.mxu0 0.0
  %971 = vmatpush1.msra.mxu0 0.0
  %972 = vmatprep.subr.mxu0 0.0
  %973 = vmatpush1.msra.mxu0 0.0
  %974 = vmatprep.subr.mxu0 0.0
  %975 = vmatpush1.msra.mxu0 0.0
  %976 = vmatprep.mubr.f32.mxu0 0.0
  %977 = vmatmul.mubr.f32.gmra.mrb[0].mxu0 %v898
  %v978 = vpop.f32.mrb[0].mxu0
  %v979 = vadd.f32 0.0, %v978
  %v980 = vpop.f32.mrb[0].mxu0
  %981 = vmatprep.mubr.f32.mxu0 0.0
  %982 = vmatmul.mubr.f32.gmra.mrb[0].mxu0 %v901
  %v983 = vpop.f32.mrb[0].mxu0
  %v984 = vadd.f32 0.0, %v983
  %v985 = vpop.f32.mrb[0].mxu0
  %986 = vmatprep.mubr.f32.mxu0 0.0
  %987 = vmatmul.mubr.f32.gmra.mrb[0].mxu0 %v904
  %v988 = vpop.f32.mrb[0].mxu0
  %v989 = vadd.f32 0.0, %v988
  %v990 = vpop.f32.mrb[0].mxu0
  %991 = vmatprep.mubr.f32.mxu0 0.0
  %992 = vmatmul.mubr.f32.gmra.mrb[0].mxu0 %v907
  %v993 = vpop.f32.mrb[0].mxu0
  %v994 = vadd.f32 0.0, %v993
  %v995 = vpop.f32.mrb[0].mxu0
  %996 = vmatprep.mubr.f32.mxu0 0.0
  %997 = vmatmul.mubr.f32.gmra.mrb[0].mxu0 %v910
  %v998 = vpop.f32.mrb[0].mxu0
  %v999 = vadd.f32 0.0, %v998
  %v1000 = vpop.f32.mrb[0].mxu0
  %1001 = vdwg.mxu0
  %v1003 = vsel %vm281, %v558, 0
  %v1006 = vsel %vm281, %v563, 0
  %v1009 = vsel %vm281, %v568, 0
  %v1012 = vsel %vm281, %v573, 0
  %v1015 = vsel %vm281, %v578, 0
  %1017 = vmatprep.subr.mxu0 0.0
  %1018 = vmatpush1.msra.mxu0 %v262
  %1019 = vmatprep.subr.mxu0 0.0
  %1020 = vmatpush1.msra.mxu0 0.0
  %1021 = vmatprep.subr.mxu0 0.0
  %1022 = vmatpush1.msra.mxu0 0.0
  %1023 = vmatprep.subr.mxu0 0.0
  %1024 = vmatpush1.msra.mxu0 0.0
  %1025 = vmatprep.subr.mxu0 0.0
  %1026 = vmatpush1.msra.mxu0 0.0
  %1027 = vmatprep.subr.mxu0 0.0
  %1028 = vmatpush1.msra.mxu0 0.0
  %1029 = vmatprep.subr.mxu0 0.0
  %1030 = vmatpush1.msra.mxu0 0.0
  %1031 = vmatprep.subr.mxu0 0.0
  %1032 = vmatpush1.msra.mxu0 0.0
  %1033 = vmatprep.subr.mxu0 0.0
  %1034 = vmatpush1.msra.mxu0 0.0
  %1035 = vmatprep.subr.mxu0 0.0
  %1036 = vmatpush1.msra.mxu0 0.0
  %1037 = vmatprep.subr.mxu0 0.0
  %1038 = vmatpush1.msra.mxu0 0.0
  %1039 = vmatprep.subr.mxu0 0.0
  %1040 = vmatpush1.msra.mxu0 0.0
  %1041 = vmatprep.subr.mxu0 0.0
  %1042 = vmatpush1.msra.mxu0 0.0
  %1043 = vmatprep.subr.mxu0 0.0
  %1044 = vmatpush1.msra.mxu0 0.0
  %1045 = vmatprep.subr.mxu0 0.0
  %1046 = vmatpush1.msra.mxu0 0.0
  %1047 = vmatprep.subr.mxu0 0.0
  %1048 = vmatpush1.msra.mxu0 0.0
  %1049 = vmatprep.subr.mxu0 0.0
  %1050 = vmatpush1.msra.mxu0 0.0
  %1051 = vmatprep.subr.mxu0 0.0
  %1052 = vmatpush1.msra.mxu0 0.0
  %1053 = vmatprep.subr.mxu0 0.0
  %1054 = vmatpush1.msra.mxu0 0.0
  %1055 = vmatprep.subr.mxu0 0.0
  %1056 = vmatpush1.msra.mxu0 0.0
  %1057 = vmatprep.subr.mxu0 0.0
  %1058 = vmatpush1.msra.mxu0 0.0
  %1059 = vmatprep.subr.mxu0 0.0
  %1060 = vmatpush1.msra.mxu0 0.0
  %1061 = vmatprep.subr.mxu0 0.0
  %1062 = vmatpush1.msra.mxu0 0.0
  %1063 = vmatprep.subr.mxu0 0.0
  %1064 = vmatpush1.msra.mxu0 0.0
  %1065 = vmatprep.subr.mxu0 0.0
  %1066 = vmatpush1.msra.mxu0 0.0
  %1067 = vmatprep.subr.mxu0 0.0
  %1068 = vmatpush1.msra.mxu0 0.0
  %1069 = vmatprep.subr.mxu0 0.0
  %1070 = vmatpush1.msra.mxu0 0.0
  %1071 = vmatprep.subr.mxu0 0.0
  %1072 = vmatpush1.msra.mxu0 0.0
  %1073 = vmatprep.subr.mxu0 0.0
  %1074 = vmatpush1.msra.mxu0 0.0
  %1075 = vmatprep.subr.mxu0 0.0
  %1076 = vmatpush1.msra.mxu0 0.0
  %1077 = vmatprep.subr.mxu0 0.0
  %1078 = vmatpush1.msra.mxu0 0.0
  %1079 = vmatprep.subr.mxu0 0.0
  %1080 = vmatpush1.msra.mxu0 0.0
  %1081 = vmatprep.mubr.f32.mxu0 0.0
  %1082 = vmatmul.mubr.f32.gmra.mrb[0].mxu0 %v1003
  %v1083 = vpop.f32.mrb[0].mxu0
  %v1084 = vadd.f32 %v979, %v1083
  %v1085 = vpop.f32.mrb[0].mxu0
  %1086 = vmatprep.mubr.f32.mxu0 0.0
  %1087 = vmatmul.mubr.f32.gmra.mrb[0].mxu0 %v1006
  %v1088 = vpop.f32.mrb[0].mxu0
  %v1089 = vadd.f32 %v984, %v1088
  %v1090 = vpop.f32.mrb[0].mxu0
  %1091 = vmatprep.mubr.f32.mxu0 0.0
  %1092 = vmatmul.mubr.f32.gmra.mrb[0].mxu0 %v1009
  %v1093 = vpop.f32.mrb[0].mxu0
  %v1094 = vadd.f32 %v989, %v1093
  %v1095 = vpop.f32.mrb[0].mxu0
  %1096 = vmatprep.mubr.f32.mxu0 0.0
  %1097 = vmatmul.mubr.f32.gmra.mrb[0].mxu0 %v1012
  %v1098 = vpop.f32.mrb[0].mxu0
  %v1099 = vadd.f32 %v994, %v1098
  %v1100 = vpop.f32.mrb[0].mxu0
  %1101 = vmatprep.mubr.f32.mxu0 0.0
  %1102 = vmatmul.mubr.f32.gmra.mrb[0].mxu0 %v1015
  %v1103 = vpop.f32.mrb[0].mxu0
  %v1104 = vadd.f32 %v999, %v1103
  %v1105 = vpop.f32.mrb[0].mxu0
  %1106 = vdwg.mxu0
  %1107 = vrot.lane.b32.xlu0 %v234, 112
  %v1108 = vpop.permute.xlu0 %1107
  %1109 = vrot.lane.b32.xlu0 %v239, 112
  %v1110 = vpop.permute.xlu0 %1109
  %1111 = vrot.lane.b32.xlu0 %v244, 112
  %v1112 = vpop.permute.xlu0 %1111
  %1113 = vrot.lane.b32.xlu0 %v249, 112
  %v1114 = vpop.permute.xlu0 %1113
  %1115 = vrot.lane.b32.xlu0 %v254, 112
  %v1116 = vpop.permute.xlu0 %1115
  %1117 = vrot.lane.b32.xlu0 %v234, 80
  %v1118 = vpop.permute.xlu0 %1117
  %1119 = vrot.lane.b32.xlu0 %v239, 80
  %v1120 = vpop.permute.xlu0 %1119
  %1121 = vrot.lane.b32.xlu0 %v244, 80
  %v1122 = vpop.permute.xlu0 %1121
  %1123 = vrot.lane.b32.xlu0 %v249, 80
  %v1124 = vpop.permute.xlu0 %1123
  %1125 = vrot.lane.b32.xlu0 %v254, 80
  %v1126 = vpop.permute.xlu0 %1125
  %v1127 = vsel %vm281, %v1108, 0
  %v1129 = vsel %vm281, %v1110, 0
  %v1131 = vsel %vm281, %v1112, 0
  %v1133 = vsel %vm281, %v1114, 0
  %v1135 = vsel %vm281, %v1116, 0
  %v1137 = vsel %vm281, %v1118, 0
  %v1139 = vsel %vm281, %v1120, 0
  %v1141 = vsel %vm281, %v1122, 0
  %v1143 = vsel %vm281, %v1124, 0
  %v1145 = vsel %vm281, %v1126, 0
  %1147 = vmatprep.subr.mxu0 0.0
  %1148 = vmatpush1.xpose.msra.mxu0 %v1137
  %1149 = vmatprep.subr.mxu0 0.0
  %1150 = vmatpush1.xpose.msra.mxu0 %v1139
  %1151 = vmatprep.subr.mxu0 0.0
  %1152 = vmatpush1.xpose.msra.mxu0 %v1141
  %1153 = vmatprep.subr.mxu0 0.0
  %1154 = vmatpush1.xpose.msra.mxu0 %v1143
  %1155 = vmatprep.subr.mxu0 0.0
  %1156 = vmatpush1.xpose.msra.mxu0 %v1145
  %1157 = vmatprep.subr.mxu0 0.0
  %1158 = vmatpush1.xpose.msra.mxu0 0.0
  %1159 = vmatprep.subr.mxu0 0.0
  %1160 = vmatpush1.xpose.msra.mxu0 0.0
  %1161 = vmatprep.subr.mxu0 0.0
  %1162 = vmatpush1.xpose.msra.mxu0 0.0
  %1163 = vmatprep.subr.mxu0 0.0
  %1164 = vmatpush1.xpose.msra.mxu0 0.0
  %1165 = vmatprep.subr.mxu0 0.0
  %1166 = vmatpush1.xpose.msra.mxu0 0.0
  %1167 = vmatprep.subr.mxu0 0.0
  %1168 = vmatpush1.xpose.msra.mxu0 0.0
  %1169 = vmatprep.subr.mxu0 0.0
  %1170 = vmatpush1.xpose.msra.mxu0 0.0
  %1171 = vmatprep.subr.mxu0 0.0
  %1172 = vmatpush1.xpose.msra.mxu0 0.0
  %1173 = vmatprep.subr.mxu0 0.0
  %1174 = vmatpush1.xpose.msra.mxu0 0.0
  %1175 = vmatprep.subr.mxu0 0.0
  %1176 = vmatpush1.xpose.msra.mxu0 0.0
  %1177 = vmatprep.subr.mxu0 0.0
  %1178 = vmatpush1.xpose.msra.mxu0 0.0
  %1179 = vmatprep.subr.mxu0 0.0
  %1180 = vmatpush1.xpose.msra.mxu0 0.0
  %1181 = vmatprep.subr.mxu0 0.0
  %1182 = vmatpush1.xpose.msra.mxu0 0.0
  %1183 = vmatprep.subr.mxu0 0.0
  %1184 = vmatpush1.xpose.msra.mxu0 0.0
  %1185 = vmatprep.subr.mxu0 0.0
  %1186 = vmatpush1.xpose.msra.mxu0 0.0
  %1187 = vmatprep.subr.mxu0 0.0
  %1188 = vmatpush1.xpose.msra.mxu0 0.0
  %1189 = vmatprep.subr.mxu0 0.0
  %1190 = vmatpush1.xpose.msra.mxu0 0.0
  %1191 = vmatprep.subr.mxu0 0.0
  %1192 = vmatpush1.xpose.msra.mxu0 0.0
  %1193 = vmatprep.subr.mxu0 0.0
  %1194 = vmatpush1.xpose.msra.mxu0 0.0
  %1195 = vmatprep.subr.mxu0 0.0
  %1196 = vmatpush1.xpose.msra.mxu0 0.0
  %1197 = vmatprep.subr.mxu0 0.0
  %1198 = vmatpush1.xpose.msra.mxu0 0.0
  %1199 = vmatprep.subr.mxu0 0.0
  %1200 = vmatpush1.xpose.msra.mxu0 0.0
  %1201 = vmatprep.subr.mxu0 0.0
  %1202 = vmatpush1.xpose.msra.mxu0 0.0
  %1203 = vmatprep.subr.mxu0 0.0
  %1204 = vmatpush1.xpose.msra.mxu0 0.0
  %1205 = vmatprep.subr.mxu0 0.0
  %1206 = vmatpush1.xpose.msra.mxu0 0.0
  %1207 = vmatprep.subr.mxu0 0.0
  %1208 = vmatpush1.xpose.msra.mxu0 0.0
  %1209 = vmatprep.subr.mxu0 0.0
  %1210 = vmatpush1.xpose.msra.mxu0 0.0
  %1211 = vmatprep.mubr.f32.mxu0 0.0
  %1212 = vmatmul.mubr.f32.gmra.mrb[0].mxu0 %v1127
  %v1213 = vpop.f32.mrb[0].mxu0
  %v1214 = vadd.f32 0.0, %v1213
  %v1215 = vpop.f32.mrb[0].mxu0
  %1216 = vmatprep.mubr.f32.mxu0 0.0
  %1217 = vmatmul.mubr.f32.gmra.mrb[0].mxu0 %v1129
  %v1218 = vpop.f32.mrb[0].mxu0
  %v1219 = vadd.f32 0.0, %v1218
  %v1220 = vpop.f32.mrb[0].mxu0
  %1221 = vmatprep.mubr.f32.mxu0 0.0
  %1222 = vmatmul.mubr.f32.gmra.mrb[0].mxu0 %v1131
  %v1223 = vpop.f32.mrb[0].mxu0
  %v1224 = vadd.f32 0.0, %v1223
  %v1225 = vpop.f32.mrb[0].mxu0
  %1226 = vmatprep.mubr.f32.mxu0 0.0
  %1227 = vmatmul.mubr.f32.gmra.mrb[0].mxu0 %v1133
  %v1228 = vpop.f32.mrb[0].mxu0
  %v1229 = vadd.f32 0.0, %v1228
  %v1230 = vpop.f32.mrb[0].mxu0
  %1231 = vmatprep.mubr.f32.mxu0 0.0
  %1232 = vmatmul.mubr.f32.gmra.mrb[0].mxu0 %v1135
  %v1233 = vpop.f32.mrb[0].mxu0
  %v1234 = vadd.f32 0.0, %v1233
  %v1235 = vpop.f32.mrb[0].mxu0
  %1236 = vdwg.mxu0
  %v1237 = vmul.f32 %v1214, 0.35355338
  %v1238 = vmul.f32 %v1219, 0.35355338
  %v1239 = vmul.f32 %v1224, 0.35355338
  %v1240 = vmul.f32 %v1229, 0.35355338
  %v1241 = vmul.f32 %v1234, 0.35355338
  %v1242 = vadd.f32 %v1237, %v257
  %v1243 = vadd.f32 %v1238, %v258
  %v1244 = vadd.f32 %v1239, %v259
  %v1245 = vadd.f32 %v1240, %v260
  %v1246 = vadd.f32 %v1241, %v261
  %v1247 = vsel %vm402, %v1242, -inf
  %1248 = vmax.xlane.f32.xlu0 %v1247
  %v1249 = vpop.xlane.xlu0 %1248
  %v1250 = vsel %vm402, %v1243, -inf
  %1251 = vmax.xlane.f32.xlu0 %v1250
  %v1252 = vpop.xlane.xlu0 %1251
  %v1253 = vsel %vm402, %v1244, -inf
  %1254 = vmax.xlane.f32.xlu0 %v1253
  %v1255 = vpop.xlane.xlu0 %1254
  %v1256 = vsel %vm402, %v1245, -inf
  %1257 = vmax.xlane.f32.xlu0 %v1256
  %v1258 = vpop.xlane.xlu0 %1257
  %v1259 = vsel %vm415, %v1246, -inf
  %1260 = vmax.xlane.f32.xlu0 %v1259
  %v1261 = vpop.xlane.xlu0 %1260
  %v1262 = vsub.f32 %v1242, %v1249
  %v1263 = vsub.f32 %v1243, %v1252
  %v1264 = vsub.f32 %v1244, %v1255
  %v1265 = vsub.f32 %v1245, %v1258
  %v1266 = vsub.f32 %v1246, %v1261
  %v1267 = vmul.f32 %v1262, 1.442695
  %v1268 = vpow.pop %v1267
  %v1269 = vmul.f32 %v1263, 1.442695
  %v1270 = vpow.pop %v1269
  %v1271 = vmul.f32 %v1264, 1.442695
  %v1272 = vpow.pop %v1271
  %v1273 = vmul.f32 %v1265, 1.442695
  %v1274 = vpow.pop %v1273
  %v1275 = vmul.f32 %v1266, 1.442695
  %v1276 = vpow.pop %v1275
  %v1277 = vsel %vm402, %v1268, 0.0
  %1278 = vadd.xlane.f32.xlu0 %v1277
  %v1279 = vpop.xlane.xlu0 %1278
  %v1280 = vsel %vm402, %v1270, 0.0
  %1281 = vadd.xlane.f32.xlu0 %v1280
  %v1282 = vpop.xlane.xlu0 %1281
  %v1283 = vsel %vm402, %v1272, 0.0
  %1284 = vadd.xlane.f32.xlu0 %v1283
  %v1285 = vpop.xlane.xlu0 %1284
  %v1286 = vsel %vm402, %v1274, 0.0
  %1287 = vadd.xlane.f32.xlu0 %v1286
  %v1288 = vpop.xlane.xlu0 %1287
  %v1289 = vsel %vm415, %v1276, 0.0
  %1290 = vadd.xlane.f32.xlu0 %v1289
  %v1291 = vpop.xlane.xlu0 %1290
  %v1292 = vrcp.pop %v1279
  %v1293 = vmul.f32 %v1268, %v1292
  %v1294 = vrcp.pop %v1282
  %v1295 = vmul.f32 %v1270, %v1294
  %v1296 = vrcp.pop %v1285
  %v1297 = vmul.f32 %v1272, %v1296
  %v1298 = vrcp.pop %v1288
  %v1299 = vmul.f32 %v1274, %v1298
  %v1300 = vrcp.pop %v1291
  %v1301 = vmul.f32 %v1276, %v1300
  %1302 = vrot.lane.b32.xlu0 %v234, 48
  %v1303 = vpop.permute.xlu0 %1302
  %1304 = vrot.lane.b32.xlu0 %v239, 48
  %v1305 = vpop.permute.xlu0 %1304
  %1306 = vrot.lane.b32.xlu0 %v244, 48
  %v1307 = vpop.permute.xlu0 %1306
  %1308 = vrot.lane.b32.xlu0 %v249, 48
  %v1309 = vpop.permute.xlu0 %1308
  %1310 = vrot.lane.b32.xlu0 %v254, 48
  %v1311 = vpop.permute.xlu0 %1310
  %v1317 = vsel %vm402, %v1293, 0
  %v1320 = vsel %vm402, %v1295, 0
  %v1323 = vsel %vm402, %v1297, 0
  %v1326 = vsel %vm402, %v1299, 0
  %v1329 = vsel %vm402, %v1301, 0
  %v1331 = vsel %vm488, %v1311, 0
  %1333 = vmatprep.subr.mxu0 0.0
  %1334 = vmatpush1.msra.mxu0 %v1303
  %1335 = vmatprep.subr.mxu0 0.0
  %1336 = vmatpush1.msra.mxu0 %v1305
  %1337 = vmatprep.subr.mxu0 0.0
  %1338 = vmatpush1.msra.mxu0 %v1307
  %1339 = vmatprep.subr.mxu0 0.0
  %1340 = vmatpush1.msra.mxu0 %v1309
  %1341 = vmatprep.subr.mxu0 0.0
  %1342 = vmatpush1.msra.mxu0 %v1331
  %1343 = vmatprep.subr.mxu0 0.0
  %1344 = vmatpush1.msra.mxu0 0.0
  %1345 = vmatprep.subr.mxu0 0.0
  %1346 = vmatpush1.msra.mxu0 0.0
  %1347 = vmatprep.subr.mxu0 0.0
  %1348 = vmatpush1.msra.mxu0 0.0
  %1349 = vmatprep.subr.mxu0 0.0
  %1350 = vmatpush1.msra.mxu0 0.0
  %1351 = vmatprep.subr.mxu0 0.0
  %1352 = vmatpush1.msra.mxu0 0.0
  %1353 = vmatprep.subr.mxu0 0.0
  %1354 = vmatpush1.msra.mxu0 0.0
  %1355 = vmatprep.subr.mxu0 0.0
  %1356 = vmatpush1.msra.mxu0 0.0
  %1357 = vmatprep.subr.mxu0 0.0
  %1358 = vmatpush1.msra.mxu0 0.0
  %1359 = vmatprep.subr.mxu0 0.0
  %1360 = vmatpush1.msra.mxu0 0.0
  %1361 = vmatprep.subr.mxu0 0.0
  %1362 = vmatpush1.msra.mxu0 0.0
  %1363 = vmatprep.subr.mxu0 0.0
  %1364 = vmatpush1.msra.mxu0 0.0
  %1365 = vmatprep.subr.mxu0 0.0
  %1366 = vmatpush1.msra.mxu0 0.0
  %1367 = vmatprep.subr.mxu0 0.0
  %1368 = vmatpush1.msra.mxu0 0.0
  %1369 = vmatprep.subr.mxu0 0.0
  %1370 = vmatpush1.msra.mxu0 0.0
  %1371 = vmatprep.subr.mxu0 0.0
  %1372 = vmatpush1.msra.mxu0 0.0
  %1373 = vmatprep.subr.mxu0 0.0
  %1374 = vmatpush1.msra.mxu0 0.0
  %1375 = vmatprep.subr.mxu0 0.0
  %1376 = vmatpush1.msra.mxu0 0.0
  %1377 = vmatprep.subr.mxu0 0.0
  %1378 = vmatpush1.msra.mxu0 0.0
  %1379 = vmatprep.subr.mxu0 0.0
  %1380 = vmatpush1.msra.mxu0 0.0
  %1381 = vmatprep.subr.mxu0 0.0
  %1382 = vmatpush1.msra.mxu0 0.0
  %1383 = vmatprep.subr.mxu0 0.0
  %1384 = vmatpush1.msra.mxu0 0.0
  %1385 = vmatprep.subr.mxu0 0.0
  %1386 = vmatpush1.msra.mxu0 0.0
  %1387 = vmatprep.subr.mxu0 0.0
  %1388 = vmatpush1.msra.mxu0 0.0
  %1389 = vmatprep.subr.mxu0 0.0
  %1390 = vmatpush1.msra.mxu0 0.0
  %1391 = vmatprep.subr.mxu0 0.0
  %1392 = vmatpush1.msra.mxu0 0.0
  %1393 = vmatprep.subr.mxu0 0.0
  %1394 = vmatpush1.msra.mxu0 0.0
  %1395 = vmatprep.subr.mxu0 0.0
  %1396 = vmatpush1.msra.mxu0 0.0
  %1397 = vmatprep.mubr.f32.mxu0 0.0
  %1398 = vmatmul.mubr.f32.gmra.mrb[0].mxu0 %v1317
  %v1399 = vpop.f32.mrb[0].mxu0
  %v1400 = vadd.f32 0.0, %v1399
  %v1401 = vpop.f32.mrb[0].mxu0
  %1402 = vmatprep.mubr.f32.mxu0 0.0
  %1403 = vmatmul.mubr.f32.gmra.mrb[0].mxu0 %v1320
  %v1404 = vpop.f32.mrb[0].mxu0
  %v1405 = vadd.f32 0.0, %v1404
  %v1406 = vpop.f32.mrb[0].mxu0
  %1407 = vmatprep.mubr.f32.mxu0 0.0
  %1408 = vmatmul.mubr.f32.gmra.mrb[0].mxu0 %v1323
  %v1409 = vpop.f32.mrb[0].mxu0
  %v1410 = vadd.f32 0.0, %v1409
  %v1411 = vpop.f32.mrb[0].mxu0
  %1412 = vmatprep.mubr.f32.mxu0 0.0
  %1413 = vmatmul.mubr.f32.gmra.mrb[0].mxu0 %v1326
  %v1414 = vpop.f32.mrb[0].mxu0
  %v1415 = vadd.f32 0.0, %v1414
  %v1416 = vpop.f32.mrb[0].mxu0
  %1417 = vmatprep.mubr.f32.mxu0 0.0
  %1418 = vmatmul.mubr.f32.gmra.mrb[0].mxu0 %v1329
  %v1419 = vpop.f32.mrb[0].mxu0
  %v1420 = vadd.f32 0.0, %v1419
  %v1421 = vpop.f32.mrb[0].mxu0
  %1422 = vdwg.mxu0
  %v1424 = vsel %vm281, %v1400, 0
  %v1427 = vsel %vm281, %v1405, 0
  %v1430 = vsel %vm281, %v1410, 0
  %v1433 = vsel %vm281, %v1415, 0
  %v1436 = vsel %vm281, %v1420, 0
  %1438 = vmatprep.subr.mxu0 0.0
  %1439 = vmatpush1.msra.mxu0 %v264
  %1440 = vmatprep.subr.mxu0 0.0
  %1441 = vmatpush1.msra.mxu0 0.0
  %1442 = vmatprep.subr.mxu0 0.0
  %1443 = vmatpush1.msra.mxu0 0.0
  %1444 = vmatprep.subr.mxu0 0.0
  %1445 = vmatpush1.msra.mxu0 0.0
  %1446 = vmatprep.subr.mxu0 0.0
  %1447 = vmatpush1.msra.mxu0 0.0
  %1448 = vmatprep.subr.mxu0 0.0
  %1449 = vmatpush1.msra.mxu0 0.0
  %1450 = vmatprep.subr.mxu0 0.0
  %1451 = vmatpush1.msra.mxu0 0.0
  %1452 = vmatprep.subr.mxu0 0.0
  %1453 = vmatpush1.msra.mxu0 0.0
  %1454 = vmatprep.subr.mxu0 0.0
  %1455 = vmatpush1.msra.mxu0 0.0
  %1456 = vmatprep.subr.mxu0 0.0
  %1457 = vmatpush1.msra.mxu0 0.0
  %1458 = vmatprep.subr.mxu0 0.0
  %1459 = vmatpush1.msra.mxu0 0.0
  %1460 = vmatprep.subr.mxu0 0.0
  %1461 = vmatpush1.msra.mxu0 0.0
  %1462 = vmatprep.subr.mxu0 0.0
  %1463 = vmatpush1.msra.mxu0 0.0
  %1464 = vmatprep.subr.mxu0 0.0
  %1465 = vmatpush1.msra.mxu0 0.0
  %1466 = vmatprep.subr.mxu0 0.0
  %1467 = vmatpush1.msra.mxu0 0.0
  %1468 = vmatprep.subr.mxu0 0.0
  %1469 = vmatpush1.msra.mxu0 0.0
  %1470 = vmatprep.subr.mxu0 0.0
  %1471 = vmatpush1.msra.mxu0 0.0
  %1472 = vmatprep.subr.mxu0 0.0
  %1473 = vmatpush1.msra.mxu0 0.0
  %1474 = vmatprep.subr.mxu0 0.0
  %1475 = vmatpush1.msra.mxu0 0.0
  %1476 = vmatprep.subr.mxu0 0.0
  %1477 = vmatpush1.msra.mxu0 0.0
  %1478 = vmatprep.subr.mxu0 0.0
  %1479 = vmatpush1.msra.mxu0 0.0
  %1480 = vmatprep.subr.mxu0 0.0
  %1481 = vmatpush1.msra.mxu0 0.0
  %1482 = vmatprep.subr.mxu0 0.0
  %1483 = vmatpush1.msra.mxu0 0.0
  %1484 = vmatprep.subr.mxu0 0.0
  %1485 = vmatpush1.msra.mxu0 0.0
  %1486 = vmatprep.subr.mxu0 0.0
  %1487 = vmatpush1.msra.mxu0 0.0
  %1488 = vmatprep.subr.mxu0 0.0
  %1489 = vmatpush1.msra.mxu0 0.0
  %1490 = vmatprep.subr.mxu0 0.0
  %1491 = vmatpush1.msra.mxu0 0.0
  %1492 = vmatprep.subr.mxu0 0.0
  %1493 = vmatpush1.msra.mxu0 0.0
  %1494 = vmatprep.subr.mxu0 0.0
  %1495 = vmatpush1.msra.mxu0 0.0
  %1496 = vmatprep.subr.mxu0 0.0
  %1497 = vmatpush1.msra.mxu0 0.0
  %1498 = vmatprep.subr.mxu0 0.0
  %1499 = vmatpush1.msra.mxu0 0.0
  %1500 = vmatprep.subr.mxu0 0.0
  %1501 = vmatpush1.msra.mxu0 0.0
  %1502 = vmatprep.mubr.f32.mxu0 0.0
  %1503 = vmatmul.mubr.f32.gmra.mrb[0].mxu0 %v1424
  %v1504 = vpop.f32.mrb[0].mxu0
  %v1505 = vadd.f32 0.0, %v1504
  %v1506 = vpop.f32.mrb[0].mxu0
  %1507 = vmatprep.mubr.f32.mxu0 0.0
  %1508 = vmatmul.mubr.f32.gmra.mrb[0].mxu0 %v1427
  %v1509 = vpop.f32.mrb[0].mxu0
  %v1510 = vadd.f32 0.0, %v1509
  %v1511 = vpop.f32.mrb[0].mxu0
  %1512 = vmatprep.mubr.f32.mxu0 0.0
  %1513 = vmatmul.mubr.f32.gmra.mrb[0].mxu0 %v1430
  %v1514 = vpop.f32.mrb[0].mxu0
  %v1515 = vadd.f32 0.0, %v1514
  %v1516 = vpop.f32.mrb[0].mxu0
  %1517 = vmatprep.mubr.f32.mxu0 0.0
  %1518 = vmatmul.mubr.f32.gmra.mrb[0].mxu0 %v1433
  %v1519 = vpop.f32.mrb[0].mxu0
  %v1520 = vadd.f32 0.0, %v1519
  %v1521 = vpop.f32.mrb[0].mxu0
  %1522 = vmatprep.mubr.f32.mxu0 0.0
  %1523 = vmatmul.mubr.f32.gmra.mrb[0].mxu0 %v1436
  %v1524 = vpop.f32.mrb[0].mxu0
  %v1525 = vadd.f32 0.0, %v1524
  %v1526 = vpop.f32.mrb[0].mxu0
  %1527 = vdwg.mxu0
  %v1528 = vadd.f32 %v1084, %v1505
  %v1529 = vadd.f32 %v1089, %v1510
  %v1530 = vadd.f32 %v1094, %v1515
  %v1531 = vadd.f32 %v1099, %v1520
  %v1532 = vadd.f32 %v1104, %v1525
  %1533 = vrot.lane.b32.xlu0 %v234, 104
  %v1534 = vpop.permute.xlu0 %1533
  %1535 = vrot.lane.b32.xlu0 %v239, 104
  %v1536 = vpop.permute.xlu0 %1535
  %1537 = vrot.lane.b32.xlu0 %v244, 104
  %v1538 = vpop.permute.xlu0 %1537
  %1539 = vrot.lane.b32.xlu0 %v249, 104
  %v1540 = vpop.permute.xlu0 %1539
  %1541 = vrot.lane.b32.xlu0 %v254, 104
  %v1542 = vpop.permute.xlu0 %1541
  %1543 = vrot.lane.b32.xlu0 %v234, 72
  %v1544 = vpop.permute.xlu0 %1543
  %1545 = vrot.lane.b32.xlu0 %v239, 72
  %v1546 = vpop.permute.xlu0 %1545
  %1547 = vrot.lane.b32.xlu0 %v244, 72
  %v1548 = vpop.permute.xlu0 %1547
  %1549 = vrot.lane.b32.xlu0 %v249, 72
  %v1550 = vpop.permute.xlu0 %1549
  %1551 = vrot.lane.b32.xlu0 %v254, 72
  %v1552 = vpop.permute.xlu0 %1551
  %v1553 = vsel %vm281, %v1534, 0
  %v1555 = vsel %vm281, %v1536, 0
  %v1557 = vsel %vm281, %v1538, 0
  %v1559 = vsel %vm281, %v1540, 0
  %v1561 = vsel %vm281, %v1542, 0
  %v1563 = vsel %vm281, %v1544, 0
  %v1565 = vsel %vm281, %v1546, 0
  %v1567 = vsel %vm281, %v1548, 0
  %v1569 = vsel %vm281, %v1550, 0
  %v1571 = vsel %vm281, %v1552, 0
  %1573 = vmatprep.subr.mxu0 0.0
  %1574 = vmatpush1.xpose.msra.mxu0 %v1563
  %1575 = vmatprep.subr.mxu0 0.0
  %1576 = vmatpush1.xpose.msra.mxu0 %v1565
  %1577 = vmatprep.subr.mxu0 0.0
  %1578 = vmatpush1.xpose.msra.mxu0 %v1567
  %1579 = vmatprep.subr.mxu0 0.0
  %1580 = vmatpush1.xpose.msra.mxu0 %v1569
  %1581 = vmatprep.subr.mxu0 0.0
  %1582 = vmatpush1.xpose.msra.mxu0 %v1571
  %1583 = vmatprep.subr.mxu0 0.0
  %1584 = vmatpush1.xpose.msra.mxu0 0.0
  %1585 = vmatprep.subr.mxu0 0.0
  %1586 = vmatpush1.xpose.msra.mxu0 0.0
  %1587 = vmatprep.subr.mxu0 0.0
  %1588 = vmatpush1.xpose.msra.mxu0 0.0
  %1589 = vmatprep.subr.mxu0 0.0
  %1590 = vmatpush1.xpose.msra.mxu0 0.0
  %1591 = vmatprep.subr.mxu0 0.0
  %1592 = vmatpush1.xpose.msra.mxu0 0.0
  %1593 = vmatprep.subr.mxu0 0.0
  %1594 = vmatpush1.xpose.msra.mxu0 0.0
  %1595 = vmatprep.subr.mxu0 0.0
  %1596 = vmatpush1.xpose.msra.mxu0 0.0
  %1597 = vmatprep.subr.mxu0 0.0
  %1598 = vmatpush1.xpose.msra.mxu0 0.0
  %1599 = vmatprep.subr.mxu0 0.0
  %1600 = vmatpush1.xpose.msra.mxu0 0.0
  %1601 = vmatprep.subr.mxu0 0.0
  %1602 = vmatpush1.xpose.msra.mxu0 0.0
  %1603 = vmatprep.subr.mxu0 0.0
  %1604 = vmatpush1.xpose.msra.mxu0 0.0
  %1605 = vmatprep.subr.mxu0 0.0
  %1606 = vmatpush1.xpose.msra.mxu0 0.0
  %1607 = vmatprep.subr.mxu0 0.0
  %1608 = vmatpush1.xpose.msra.mxu0 0.0
  %1609 = vmatprep.subr.mxu0 0.0
  %1610 = vmatpush1.xpose.msra.mxu0 0.0
  %1611 = vmatprep.subr.mxu0 0.0
  %1612 = vmatpush1.xpose.msra.mxu0 0.0
  %1613 = vmatprep.subr.mxu0 0.0
  %1614 = vmatpush1.xpose.msra.mxu0 0.0
  %1615 = vmatprep.subr.mxu0 0.0
  %1616 = vmatpush1.xpose.msra.mxu0 0.0
  %1617 = vmatprep.subr.mxu0 0.0
  %1618 = vmatpush1.xpose.msra.mxu0 0.0
  %1619 = vmatprep.subr.mxu0 0.0
  %1620 = vmatpush1.xpose.msra.mxu0 0.0
  %1621 = vmatprep.subr.mxu0 0.0
  %1622 = vmatpush1.xpose.msra.mxu0 0.0
  %1623 = vmatprep.subr.mxu0 0.0
  %1624 = vmatpush1.xpose.msra.mxu0 0.0
  %1625 = vmatprep.subr.mxu0 0.0
  %1626 = vmatpush1.xpose.msra.mxu0 0.0
  %1627 = vmatprep.subr.mxu0 0.0
  %1628 = vmatpush1.xpose.msra.mxu0 0.0
  %1629 = vmatprep.subr.mxu0 0.0
  %1630 = vmatpush1.xpose.msra.mxu0 0.0
  %1631 = vmatprep.subr.mxu0 0.0
  %1632 = vmatpush1.xpose.msra.mxu0 0.0
  %1633 = vmatprep.subr.mxu0 0.0
  %1634 = vmatpush1.xpose.msra.mxu0 0.0
  %1635 = vmatprep.subr.mxu0 0.0
  %1636 = vmatpush1.xpose.msra.mxu0 0.0
  %1637 = vmatprep.mubr.f32.mxu0 0.0
  %1638 = vmatmul.mubr.f32.gmra.mrb[0].mxu0 %v1553
  %v1639 = vpop.f32.mrb[0].mxu0
  %v1640 = vadd.f32 0.0, %v1639
  %v1641 = vpop.f32.mrb[0].mxu0
  %1642 = vmatprep.mubr.f32.mxu0 0.0
  %1643 = vmatmul.mubr.f32.gmra.mrb[0].mxu0 %v1555
  %v1644 = vpop.f32.mrb[0].mxu0
  %v1645 = vadd.f32 0.0, %v1644
  %v1646 = vpop.f32.mrb[0].mxu0
  %1647 = vmatprep.mubr.f32.mxu0 0.0
  %1648 = vmatmul.mubr.f32.gmra.mrb[0].mxu0 %v1557
  %v1649 = vpop.f32.mrb[0].mxu0
  %v1650 = vadd.f32 0.0, %v1649
  %v1651 = vpop.f32.mrb[0].mxu0
  %1652 = vmatprep.mubr.f32.mxu0 0.0
  %1653 = vmatmul.mubr.f32.gmra.mrb[0].mxu0 %v1559
  %v1654 = vpop.f32.mrb[0].mxu0
  %v1655 = vadd.f32 0.0, %v1654
  %v1656 = vpop.f32.mrb[0].mxu0
  %1657 = vmatprep.mubr.f32.mxu0 0.0
  %1658 = vmatmul.mubr.f32.gmra.mrb[0].mxu0 %v1561
  %v1659 = vpop.f32.mrb[0].mxu0
  %v1660 = vadd.f32 0.0, %v1659
  %v1661 = vpop.f32.mrb[0].mxu0
  %1662 = vdwg.mxu0
  %v1663 = vmul.f32 %v1640, 0.35355338
  %v1664 = vmul.f32 %v1645, 0.35355338
  %v1665 = vmul.f32 %v1650, 0.35355338
  %v1666 = vmul.f32 %v1655, 0.35355338
  %v1667 = vmul.f32 %v1660, 0.35355338
  %v1668 = vadd.f32 %v1663, %v257
  %v1669 = vadd.f32 %v1664, %v258
  %v1670 = vadd.f32 %v1665, %v259
  %v1671 = vadd.f32 %v1666, %v260
  %v1672 = vadd.f32 %v1667, %v261
  %v1673 = vsel %vm402, %v1668, -inf
  %1674 = vmax.xlane.f32.xlu0 %v1673
  %v1675 = vpop.xlane.xlu0 %1674
  %v1676 = vsel %vm402, %v1669, -inf
  %1677 = vmax.xlane.f32.xlu0 %v1676
  %v1678 = vpop.xlane.xlu0 %1677
  %v1679 = vsel %vm402, %v1670, -inf
  %1680 = vmax.xlane.f32.xlu0 %v1679
  %v1681 = vpop.xlane.xlu0 %1680
  %v1682 = vsel %vm402, %v1671, -inf
  %1683 = vmax.xlane.f32.xlu0 %v1682
  %v1684 = vpop.xlane.xlu0 %1683
  %v1685 = vsel %vm415, %v1672, -inf
  %1686 = vmax.xlane.f32.xlu0 %v1685
  %v1687 = vpop.xlane.xlu0 %1686
  %v1688 = vsub.f32 %v1668, %v1675
  %v1689 = vsub.f32 %v1669, %v1678
  %v1690 = vsub.f32 %v1670, %v1681
  %v1691 = vsub.f32 %v1671, %v1684
  %v1692 = vsub.f32 %v1672, %v1687
  %v1693 = vmul.f32 %v1688, 1.442695
  %v1694 = vpow.pop %v1693
  %v1695 = vmul.f32 %v1689, 1.442695
  %v1696 = vpow.pop %v1695
  %v1697 = vmul.f32 %v1690, 1.442695
  %v1698 = vpow.pop %v1697
  %v1699 = vmul.f32 %v1691, 1.442695
  %v1700 = vpow.pop %v1699
  %v1701 = vmul.f32 %v1692, 1.442695
  %v1702 = vpow.pop %v1701
  %v1703 = vsel %vm402, %v1694, 0.0
  %1704 = vadd.xlane.f32.xlu0 %v1703
  %v1705 = vpop.xlane.xlu0 %1704
  %v1706 = vsel %vm402, %v1696, 0.0
  %1707 = vadd.xlane.f32.xlu0 %v1706
  %v1708 = vpop.xlane.xlu0 %1707
  %v1709 = vsel %vm402, %v1698, 0.0
  %1710 = vadd.xlane.f32.xlu0 %v1709
  %v1711 = vpop.xlane.xlu0 %1710
  %v1712 = vsel %vm402, %v1700, 0.0
  %1713 = vadd.xlane.f32.xlu0 %v1712
  %v1714 = vpop.xlane.xlu0 %1713
  %v1715 = vsel %vm415, %v1702, 0.0
  %1716 = vadd.xlane.f32.xlu0 %v1715
  %v1717 = vpop.xlane.xlu0 %1716
  %v1718 = vrcp.pop %v1705
  %v1719 = vmul.f32 %v1694, %v1718
  %v1720 = vrcp.pop %v1708
  %v1721 = vmul.f32 %v1696, %v1720
  %v1722 = vrcp.pop %v1711
  %v1723 = vmul.f32 %v1698, %v1722
  %v1724 = vrcp.pop %v1714
  %v1725 = vmul.f32 %v1700, %v1724
  %v1726 = vrcp.pop %v1717
  %v1727 = vmul.f32 %v1702, %v1726
  %1728 = vrot.lane.b32.xlu0 %v234, 40
  %v1729 = vpop.permute.xlu0 %1728
  %1730 = vrot.lane.b32.xlu0 %v239, 40
  %v1731 = vpop.permute.xlu0 %1730
  %1732 = vrot.lane.b32.xlu0 %v244, 40
  %v1733 = vpop.permute.xlu0 %1732
  %1734 = vrot.lane.b32.xlu0 %v249, 40
  %v1735 = vpop.permute.xlu0 %1734
  %1736 = vrot.lane.b32.xlu0 %v254, 40
  %v1737 = vpop.permute.xlu0 %1736
  %v1743 = vsel %vm402, %v1719, 0
  %v1746 = vsel %vm402, %v1721, 0
  %v1749 = vsel %vm402, %v1723, 0
  %v1752 = vsel %vm402, %v1725, 0
  %v1755 = vsel %vm402, %v1727, 0
  %v1757 = vsel %vm488, %v1737, 0
  %1759 = vmatprep.subr.mxu0 0.0
  %1760 = vmatpush1.msra.mxu0 %v1729
  %1761 = vmatprep.subr.mxu0 0.0
  %1762 = vmatpush1.msra.mxu0 %v1731
  %1763 = vmatprep.subr.mxu0 0.0
  %1764 = vmatpush1.msra.mxu0 %v1733
  %1765 = vmatprep.subr.mxu0 0.0
  %1766 = vmatpush1.msra.mxu0 %v1735
  %1767 = vmatprep.subr.mxu0 0.0
  %1768 = vmatpush1.msra.mxu0 %v1757
  %1769 = vmatprep.subr.mxu0 0.0
  %1770 = vmatpush1.msra.mxu0 0.0
  %1771 = vmatprep.subr.mxu0 0.0
  %1772 = vmatpush1.msra.mxu0 0.0
  %1773 = vmatprep.subr.mxu0 0.0
  %1774 = vmatpush1.msra.mxu0 0.0
  %1775 = vmatprep.subr.mxu0 0.0
  %1776 = vmatpush1.msra.mxu0 0.0
  %1777 = vmatprep.subr.mxu0 0.0
  %1778 = vmatpush1.msra.mxu0 0.0
  %1779 = vmatprep.subr.mxu0 0.0
  %1780 = vmatpush1.msra.mxu0 0.0
  %1781 = vmatprep.subr.mxu0 0.0
  %1782 = vmatpush1.msra.mxu0 0.0
  %1783 = vmatprep.subr.mxu0 0.0
  %1784 = vmatpush1.msra.mxu0 0.0
  %1785 = vmatprep.subr.mxu0 0.0
  %1786 = vmatpush1.msra.mxu0 0.0
  %1787 = vmatprep.subr.mxu0 0.0
  %1788 = vmatpush1.msra.mxu0 0.0
  %1789 = vmatprep.subr.mxu0 0.0
  %1790 = vmatpush1.msra.mxu0 0.0
  %1791 = vmatprep.subr.mxu0 0.0
  %1792 = vmatpush1.msra.mxu0 0.0
  %1793 = vmatprep.subr.mxu0 0.0
  %1794 = vmatpush1.msra.mxu0 0.0
  %1795 = vmatprep.subr.mxu0 0.0
  %1796 = vmatpush1.msra.mxu0 0.0
  %1797 = vmatprep.subr.mxu0 0.0
  %1798 = vmatpush1.msra.mxu0 0.0
  %1799 = vmatprep.subr.mxu0 0.0
  %1800 = vmatpush1.msra.mxu0 0.0
  %1801 = vmatprep.subr.mxu0 0.0
  %1802 = vmatpush1.msra.mxu0 0.0
  %1803 = vmatprep.subr.mxu0 0.0
  %1804 = vmatpush1.msra.mxu0 0.0
  %1805 = vmatprep.subr.mxu0 0.0
  %1806 = vmatpush1.msra.mxu0 0.0
  %1807 = vmatprep.subr.mxu0 0.0
  %1808 = vmatpush1.msra.mxu0 0.0
  %1809 = vmatprep.subr.mxu0 0.0
  %1810 = vmatpush1.msra.mxu0 0.0
  %1811 = vmatprep.subr.mxu0 0.0
  %1812 = vmatpush1.msra.mxu0 0.0
  %1813 = vmatprep.subr.mxu0 0.0
  %1814 = vmatpush1.msra.mxu0 0.0
  %1815 = vmatprep.subr.mxu0 0.0
  %1816 = vmatpush1.msra.mxu0 0.0
  %1817 = vmatprep.subr.mxu0 0.0
  %1818 = vmatpush1.msra.mxu0 0.0
  %1819 = vmatprep.subr.mxu0 0.0
  %1820 = vmatpush1.msra.mxu0 0.0
  %1821 = vmatprep.subr.mxu0 0.0
  %1822 = vmatpush1.msra.mxu0 0.0
  %1823 = vmatprep.mubr.f32.mxu0 0.0
  %1824 = vmatmul.mubr.f32.gmra.mrb[0].mxu0 %v1743
  %v1825 = vpop.f32.mrb[0].mxu0
  %v1826 = vadd.f32 0.0, %v1825
  %v1827 = vpop.f32.mrb[0].mxu0
  %1828 = vmatprep.mubr.f32.mxu0 0.0
  %1829 = vmatmul.mubr.f32.gmra.mrb[0].mxu0 %v1746
  %v1830 = vpop.f32.mrb[0].mxu0
  %v1831 = vadd.f32 0.0, %v1830
  %v1832 = vpop.f32.mrb[0].mxu0
  %1833 = vmatprep.mubr.f32.mxu0 0.0
  %1834 = vmatmul.mubr.f32.gmra.mrb[0].mxu0 %v1749
  %v1835 = vpop.f32.mrb[0].mxu0
  %v1836 = vadd.f32 0.0, %v1835
  %v1837 = vpop.f32.mrb[0].mxu0
  %1838 = vmatprep.mubr.f32.mxu0 0.0
  %1839 = vmatmul.mubr.f32.gmra.mrb[0].mxu0 %v1752
  %v1840 = vpop.f32.mrb[0].mxu0
  %v1841 = vadd.f32 0.0, %v1840
  %v1842 = vpop.f32.mrb[0].mxu0
  %1843 = vmatprep.mubr.f32.mxu0 0.0
  %1844 = vmatmul.mubr.f32.gmra.mrb[0].mxu0 %v1755
  %v1845 = vpop.f32.mrb[0].mxu0
  %v1846 = vadd.f32 0.0, %v1845
  %v1847 = vpop.f32.mrb[0].mxu0
  %1848 = vdwg.mxu0
  %v1850 = vsel %vm281, %v1826, 0
  %v1853 = vsel %vm281, %v1831, 0
  %v1856 = vsel %vm281, %v1836, 0
  %v1859 = vsel %vm281, %v1841, 0
  %v1862 = vsel %vm281, %v1846, 0
  %1864 = vmatprep.subr.mxu0 0.0
  %1865 = vmatpush1.msra.mxu0 %v265
  %1866 = vmatprep.subr.mxu0 0.0
  %1867 = vmatpush1.msra.mxu0 0.0
  %1868 = vmatprep.subr.mxu0 0.0
  %1869 = vmatpush1.msra.mxu0 0.0
  %1870 = vmatprep.subr.mxu0 0.0
  %1871 = vmatpush1.msra.mxu0 0.0
  %1872 = vmatprep.subr.mxu0 0.0
  %1873 = vmatpush1.msra.mxu0 0.0
  %1874 = vmatprep.subr.mxu0 0.0
  %1875 = vmatpush1.msra.mxu0 0.0
  %1876 = vmatprep.subr.mxu0 0.0
  %1877 = vmatpush1.msra.mxu0 0.0
  %1878 = vmatprep.subr.mxu0 0.0
  %1879 = vmatpush1.msra.mxu0 0.0
  %1880 = vmatprep.subr.mxu0 0.0
  %1881 = vmatpush1.msra.mxu0 0.0
  %1882 = vmatprep.subr.mxu0 0.0
  %1883 = vmatpush1.msra.mxu0 0.0
  %1884 = vmatprep.subr.mxu0 0.0
  %1885 = vmatpush1.msra.mxu0 0.0
  %1886 = vmatprep.subr.mxu0 0.0
  %1887 = vmatpush1.msra.mxu0 0.0
  %1888 = vmatprep.subr.mxu0 0.0
  %1889 = vmatpush1.msra.mxu0 0.0
  %1890 = vmatprep.subr.mxu0 0.0
  %1891 = vmatpush1.msra.mxu0 0.0
  %1892 = vmatprep.subr.mxu0 0.0
  %1893 = vmatpush1.msra.mxu0 0.0
  %1894 = vmatprep.subr.mxu0 0.0
  %1895 = vmatpush1.msra.mxu0 0.0
  %1896 = vmatprep.subr.mxu0 0.0
  %1897 = vmatpush1.msra.mxu0 0.0
  %1898 = vmatprep.subr.mxu0 0.0
  %1899 = vmatpush1.msra.mxu0 0.0
  %1900 = vmatprep.subr.mxu0 0.0
  %1901 = vmatpush1.msra.mxu0 0.0
  %1902 = vmatprep.subr.mxu0 0.0
  %1903 = vmatpush1.msra.mxu0 0.0
  %1904 = vmatprep.subr.mxu0 0.0
  %1905 = vmatpush1.msra.mxu0 0.0
  %1906 = vmatprep.subr.mxu0 0.0
  %1907 = vmatpush1.msra.mxu0 0.0
  %1908 = vmatprep.subr.mxu0 0.0
  %1909 = vmatpush1.msra.mxu0 0.0
  %1910 = vmatprep.subr.mxu0 0.0
  %1911 = vmatpush1.msra.mxu0 0.0
  %1912 = vmatprep.subr.mxu0 0.0
  %1913 = vmatpush1.msra.mxu0 0.0
  %1914 = vmatprep.subr.mxu0 0.0
  %1915 = vmatpush1.msra.mxu0 0.0
  %1916 = vmatprep.subr.mxu0 0.0
  %1917 = vmatpush1.msra.mxu0 0.0
  %1918 = vmatprep.subr.mxu0 0.0
  %1919 = vmatpush1.msra.mxu0 0.0
  %1920 = vmatprep.subr.mxu0 0.0
  %1921 = vmatpush1.msra.mxu0 0.0
  %1922 = vmatprep.subr.mxu0 0.0
  %1923 = vmatpush1.msra.mxu0 0.0
  %1924 = vmatprep.subr.mxu0 0.0
  %1925 = vmatpush1.msra.mxu0 0.0
  %1926 = vmatprep.subr.mxu0 0.0
  %1927 = vmatpush1.msra.mxu0 0.0
  %1928 = vmatprep.mubr.f32.mxu0 0.0
  %1929 = vmatmul.mubr.f32.gmra.mrb[0].mxu0 %v1850
  %v1930 = vpop.f32.mrb[0].mxu0
  %v1931 = vadd.f32 0.0, %v1930
  %v1932 = vpop.f32.mrb[0].mxu0
  %1933 = vmatprep.mubr.f32.mxu0 0.0
  %1934 = vmatmul.mubr.f32.gmra.mrb[0].mxu0 %v1853
  %v1935 = vpop.f32.mrb[0].mxu0
  %v1936 = vadd.f32 0.0, %v1935
  %v1937 = vpop.f32.mrb[0].mxu0
  %1938 = vmatprep.mubr.f32.mxu0 0.0
  %1939 = vmatmul.mubr.f32.gmra.mrb[0].mxu0 %v1856
  %v1940 = vpop.f32.mrb[0].mxu0
  %v1941 = vadd.f32 0.0, %v1940
  %v1942 = vpop.f32.mrb[0].mxu0
  %1943 = vmatprep.mubr.f32.mxu0 0.0
  %1944 = vmatmul.mubr.f32.gmra.mrb[0].mxu0 %v1859
  %v1945 = vpop.f32.mrb[0].mxu0
  %v1946 = vadd.f32 0.0, %v1945
  %v1947 = vpop.f32.mrb[0].mxu0
  %1948 = vmatprep.mubr.f32.mxu0 0.0
  %1949 = vmatmul.mubr.f32.gmra.mrb[0].mxu0 %v1862
  %v1950 = vpop.f32.mrb[0].mxu0
  %v1951 = vadd.f32 0.0, %v1950
  %v1952 = vpop.f32.mrb[0].mxu0
  %1953 = vdwg.mxu0
  %v1954 = vadd.f32 %v1528, %v1931
  %v1955 = vadd.f32 %v1529, %v1936
  %v1956 = vadd.f32 %v1530, %v1941
  %v1957 = vadd.f32 %v1531, %v1946
  %v1958 = vadd.f32 %v1532, %v1951
  %v1959 = vadd.f32 %v60, %v1954
  %v1960 = vadd.f32 %v61, %v1955
  %v1961 = vadd.f32 %v62, %v1956
  %v1962 = vadd.f32 %v63, %v1957
  %v1963 = vadd.f32 %v64, %v1958
  %v1964 = vld [vmem:[%s8] sm:$0x1]
  %v1966 = vlaneseq
  %v1967 = vshrl.u32 %v1966, 7
  %v1968 = vsub.s32 0, %v1967
  %v1969 = vrot.slane %v1964, %v1968
  %v1971 = vadd.f32 %v1959, %v1969
  %v1972 = vadd.f32 %v1960, %v1969
  %v1973 = vadd.f32 %v1961, %v1969
  %v1974 = vadd.f32 %v1962, %v1969
  %v1975 = vadd.f32 %v1963, %v1969
  %v1976 = vsel %vm65, %v1971, 0.0
  %v1977 = vsel %vm65, %v1972, 0.0
  %v1978 = vadd.f32 %v1976, %v1977
  %v1979 = vsel %vm65, %v1973, 0.0
  %v1980 = vadd.f32 %v1978, %v1979
  %v1981 = vsel %vm65, %v1974, 0.0
  %v1982 = vadd.f32 %v1980, %v1981
  %v1983 = vsel %vm73, %v1975, 0.0
  %v1984 = vadd.f32 %v1982, %v1983
  %v1985 = vrot.slane %v1984, 4
  %v1986 = vadd.f32 %v1984, %v1985
  %v1987 = vrot.slane %v1986, 2
  %v1988 = vadd.f32 %v1986, %v1987
  %v1989 = vrot.slane %v1988, 1
  %v1990 = vadd.f32 %v1988, %v1989
  %v1991 = vmul.f32 %v1990, %v82
  %v1992 = vsub.f32 %v1971, %v1991
  %v1993 = vsub.f32 %v1972, %v1991
  %v1994 = vsub.f32 %v1973, %v1991
  %v1995 = vsub.f32 %v1974, %v1991
  %v1996 = vsub.f32 %v1975, %v1991
  %v1997 = vmul.f32 %v1992, %v1992
  %v1998 = vmul.f32 %v1993, %v1993
  %v1999 = vmul.f32 %v1994, %v1994
  %v2000 = vmul.f32 %v1995, %v1995
  %v2001 = vmul.f32 %v1996, %v1996
  %v2002 = vsel %vm65, %v1997, 0.0
  %v2003 = vsel %vm65, %v1998, 0.0
  %v2004 = vadd.f32 %v2002, %v2003
  %v2005 = vsel %vm65, %v1999, 0.0
  %v2006 = vadd.f32 %v2004, %v2005
  %v2007 = vsel %vm65, %v2000, 0.0
  %v2008 = vadd.f32 %v2006, %v2007
  %v2009 = vsel %vm73, %v2001, 0.0
  %v2010 = vadd.f32 %v2008, %v2009
  %v2011 = vrot.slane %v2010, 4
  %v2012 = vadd.f32 %v2010, %v2011
  %v2013 = vrot.slane %v2012, 2
  %v2014 = vadd.f32 %v2012, %v2013
  %v2015 = vrot.slane %v2014, 1
  %v2016 = vadd.f32 %v2014, %v2015
  %v2017 = vmul.f32 %v2016, %v82
  %v2018 = vadd.f32 %v2017, 1e-05
  %v2019 = vrsqrt.pop %v2018
  %v2020 = vmul.f32 %v1992, %v2019
  %v2021 = vmul.f32 %v1993, %v2019
  %v2022 = vmul.f32 %v1994, %v2019
  %v2023 = vmul.f32 %v1995, %v2019
  %v2024 = vmul.f32 %v1996, %v2019
  %v2025 = vld [vmem:[%s9] sm:$0x1]
  %v2027 = vlaneseq
  %v2028 = vshrl.u32 %v2027, 7
  %v2029 = vsub.s32 0, %v2028
  %v2030 = vrot.slane %v2025, %v2029
  %v2032 = vmul.f32 %v2020, %v2030
  %v2033 = vmul.f32 %v2021, %v2030
  %v2034 = vmul.f32 %v2022, %v2030
  %v2035 = vmul.f32 %v2023, %v2030
  %v2036 = vmul.f32 %v2024, %v2030
  %v2037 = vld [vmem:[%s10] sm:$0x1]
  %v2039 = vlaneseq
  %v2040 = vshrl.u32 %v2039, 7
  %v2041 = vsub.s32 0, %v2040
  %v2042 = vrot.slane %v2037, %v2041
  %v2044 = vadd.f32 %v2032, %v2042
  %v2045 = vadd.f32 %v2033, %v2042
  %v2046 = vadd.f32 %v2034, %v2042
  %v2047 = vadd.f32 %v2035, %v2042
  %v2048 = vadd.f32 %v2036, %v2042
  %v2049 = vld [vmem:[%s11] sm:$0xff]
  %v2050 = vld [vmem:[%s11 + $0x8] sm:$0xff]
  %v2051 = vld [vmem:[%s11 + $0x10] sm:$0xff]
  %v2052 = vld [vmem:[%s11 + $0x18] sm:$0xff]
  %v2053 = vld [vmem:[%s12] sm:$0x1]
  %v2055 = vlaneseq
  %v2056 = vshrl.u32 %v2055, 7
  %v2057 = vsub.s32 0, %v2056
  %v2058 = vrot.slane %v2053, %v2057
  %v2061 = vsel %vm65, %v2044, 0
  %v2064 = vsel %vm65, %v2045, 0
  %v2067 = vsel %vm65, %v2046, 0
  %v2070 = vsel %vm65, %v2047, 0
  %v2073 = vsel %vm65, %v2048, 0
  %2075 = vmatprep.subr.mxu0 0.0
  %2076 = vmatpush1.msra.mxu0 %v2049
  %2077 = vmatprep.subr.mxu0 0.0
  %2078 = vmatpush1.msra.mxu0 %v2050
  %2079 = vmatprep.subr.mxu0 0.0
  %2080 = vmatpush1.msra.mxu0 %v2051
  %2081 = vmatprep.subr.mxu0 0.0
  %2082 = vmatpush1.msra.mxu0 %v2052
  %2083 = vmatprep.subr.mxu0 0.0
  %2084 = vmatpush1.msra.mxu0 0.0
  %2085 = vmatprep.subr.mxu0 0.0
  %2086 = vmatpush1.msra.mxu0 0.0
  %2087 = vmatprep.subr.mxu0 0.0
  %2088 = vmatpush1.msra.mxu0 0.0
  %2089 = vmatprep.subr.mxu0 0.0
  %2090 = vmatpush1.msra.mxu0 0.0
  %2091 = vmatprep.subr.mxu0 0.0
  %2092 = vmatpush1.msra.mxu0 0.0
  %2093 = vmatprep.subr.mxu0 0.0
  %2094 = vmatpush1.msra.mxu0 0.0
  %2095 = vmatprep.subr.mxu0 0.0
  %2096 = vmatpush1.msra.mxu0 0.0
  %2097 = vmatprep.subr.mxu0 0.0
  %2098 = vmatpush1.msra.mxu0 0.0
  %2099 = vmatprep.subr.mxu0 0.0
  %2100 = vmatpush1.msra.mxu0 0.0
  %2101 = vmatprep.subr.mxu0 0.0
  %2102 = vmatpush1.msra.mxu0 0.0
  %2103 = vmatprep.subr.mxu0 0.0
  %2104 = vmatpush1.msra.mxu0 0.0
  %2105 = vmatprep.subr.mxu0 0.0
  %2106 = vmatpush1.msra.mxu0 0.0
  %2107 = vmatprep.subr.mxu0 0.0
  %2108 = vmatpush1.msra.mxu0 0.0
  %2109 = vmatprep.subr.mxu0 0.0
  %2110 = vmatpush1.msra.mxu0 0.0
  %2111 = vmatprep.subr.mxu0 0.0
  %2112 = vmatpush1.msra.mxu0 0.0
  %2113 = vmatprep.subr.mxu0 0.0
  %2114 = vmatpush1.msra.mxu0 0.0
  %2115 = vmatprep.subr.mxu0 0.0
  %2116 = vmatpush1.msra.mxu0 0.0
  %2117 = vmatprep.subr.mxu0 0.0
  %2118 = vmatpush1.msra.mxu0 0.0
  %2119 = vmatprep.subr.mxu0 0.0
  %2120 = vmatpush1.msra.mxu0 0.0
  %2121 = vmatprep.subr.mxu0 0.0
  %2122 = vmatpush1.msra.mxu0 0.0
  %2123 = vmatprep.subr.mxu0 0.0
  %2124 = vmatpush1.msra.mxu0 0.0
  %2125 = vmatprep.subr.mxu0 0.0
  %2126 = vmatpush1.msra.mxu0 0.0
  %2127 = vmatprep.subr.mxu0 0.0
  %2128 = vmatpush1.msra.mxu0 0.0
  %2129 = vmatprep.subr.mxu0 0.0
  %2130 = vmatpush1.msra.mxu0 0.0
  %2131 = vmatprep.subr.mxu0 0.0
  %2132 = vmatpush1.msra.mxu0 0.0
  %2133 = vmatprep.subr.mxu0 0.0
  %2134 = vmatpush1.msra.mxu0 0.0
  %2135 = vmatprep.subr.mxu0 0.0
  %2136 = vmatpush1.msra.mxu0 0.0
  %2137 = vmatprep.subr.mxu0 0.0
  %2138 = vmatpush1.msra.mxu0 0.0
  %2139 = vmatprep.mubr.f32.mxu0 0.0
  %2140 = vmatmul.mubr.f32.gmra.mrb[0].mxu0 %v2061
  %v2141 = vpop.f32.mrb[0].mxu0
  %v2142 = vadd.f32 %v2058, %v2141
  %v2143 = vpop.f32.mrb[0].mxu0
  %2144 = vmatprep.mubr.f32.mxu0 0.0
  %2145 = vmatmul.mubr.f32.gmra.mrb[0].mxu0 %v2064
  %v2146 = vpop.f32.mrb[0].mxu0
  %v2147 = vadd.f32 %v2058, %v2146
  %v2148 = vpop.f32.mrb[0].mxu0
  %2149 = vmatprep.mubr.f32.mxu0 0.0
  %2150 = vmatmul.mubr.f32.gmra.mrb[0].mxu0 %v2067
  %v2151 = vpop.f32.mrb[0].mxu0
  %v2152 = vadd.f32 %v2058, %v2151
  %v2153 = vpop.f32.mrb[0].mxu0
  %2154 = vmatprep.mubr.f32.mxu0 0.0
  %2155 = vmatmul.mubr.f32.gmra.mrb[0].mxu0 %v2070
  %v2156 = vpop.f32.mrb[0].mxu0
  %v2157 = vadd.f32 %v2058, %v2156
  %v2158 = vpop.f32.mrb[0].mxu0
  %2159 = vmatprep.mubr.f32.mxu0 0.0
  %2160 = vmatmul.mubr.f32.gmra.mrb[0].mxu0 %v2073
  %v2161 = vpop.f32.mrb[0].mxu0
  %v2162 = vadd.f32 %v2058, %v2161
  %v2163 = vpop.f32.mrb[0].mxu0
  %2164 = vdwg.mxu0
  %v2165 = vmul.f32 %v2142, 1.702
  %v2166 = vmul.f32 %v2147, 1.702
  %v2167 = vmul.f32 %v2152, 1.702
  %v2168 = vmul.f32 %v2157, 1.702
  %v2169 = vmul.f32 %v2162, 1.702
  %v2170 = vxor.u32 %v2165, 2147483648
  %v2171 = vxor.u32 %v2166, 2147483648
  %v2172 = vxor.u32 %v2167, 2147483648
  %v2173 = vxor.u32 %v2168, 2147483648
  %v2174 = vxor.u32 %v2169, 2147483648
  %v2175 = vmul.f32 %v2170, 1.442695
  %v2176 = vpow.pop %v2175
  %v2177 = vmul.f32 %v2171, 1.442695
  %v2178 = vpow.pop %v2177
  %v2179 = vmul.f32 %v2172, 1.442695
  %v2180 = vpow.pop %v2179
  %v2181 = vmul.f32 %v2173, 1.442695
  %v2182 = vpow.pop %v2181
  %v2183 = vmul.f32 %v2174, 1.442695
  %v2184 = vpow.pop %v2183
  %v2185 = vadd.f32 %v2176, 1.0
  %v2186 = vadd.f32 %v2178, 1.0
  %v2187 = vadd.f32 %v2180, 1.0
  %v2188 = vadd.f32 %v2182, 1.0
  %v2189 = vadd.f32 %v2184, 1.0
  %v2190 = vrcp.pop %v2185
  %v2191 = vmul.f32 1.0, %v2190
  %v2192 = vrcp.pop %v2186
  %v2193 = vmul.f32 1.0, %v2192
  %v2194 = vrcp.pop %v2187
  %v2195 = vmul.f32 1.0, %v2194
  %v2196 = vrcp.pop %v2188
  %v2197 = vmul.f32 1.0, %v2196
  %v2198 = vrcp.pop %v2189
  %v2199 = vmul.f32 1.0, %v2198
  %v2200 = vmul.f32 %v2142, %v2191
  %v2201 = vmul.f32 %v2147, %v2193
  %v2202 = vmul.f32 %v2152, %v2195
  %v2203 = vmul.f32 %v2157, %v2197
  %v2204 = vmul.f32 %v2162, %v2199
  %v2205 = vld [vmem:[%s13] sm:$0xff]
  %v2206 = vld [vmem:[%s13 + $0x8] sm:$0xff]
  %v2207 = vld [vmem:[%s13 + $0x10] sm:$0xff]
  %v2208 = vld [vmem:[%s13 + $0x18] sm:$0xff]
  %v2209 = vld [vmem:[%s13 + $0x20] sm:$0xff]
  %v2210 = vld [vmem:[%s13 + $0x28] sm:$0xff]
  %v2211 = vld [vmem:[%s13 + $0x30] sm:$0xff]
  %v2212 = vld [vmem:[%s13 + $0x38] sm:$0xff]
  %v2213 = vld [vmem:[%s13 + $0x40] sm:$0xff]
  %v2214 = vld [vmem:[%s13 + $0x48] sm:$0xff]
  %v2215 = vld [vmem:[%s13 + $0x50] sm:$0xff]
  %v2216 = vld [vmem:[%s13 + $0x58] sm:$0xff]
  %v2217 = vld [vmem:[%s13 + $0x60] sm:$0xff]
  %v2218 = vld [vmem:[%s13 + $0x68] sm:$0xff]
  %v2219 = vld [vmem:[%s13 + $0x70] sm:$0xff]
  %v2220 = vld [vmem:[%s13 + $0x78] sm:$0xff]
  %2221 = vmatprep.subr.mxu0 0.0
  %2222 = vmatpush1.msra.mxu0 %v2205
  %2223 = vmatprep.subr.mxu0 0.0
  %2224 = vmatpush1.msra.mxu0 %v2206
  %2225 = vmatprep.subr.mxu0 0.0
  %2226 = vmatpush1.msra.mxu0 %v2207
  %2227 = vmatprep.subr.mxu0 0.0
  %2228 = vmatpush1.msra.mxu0 %v2208
  %2229 = vmatprep.subr.mxu0 0.0
  %2230 = vmatpush1.msra.mxu0 %v2209
  %2231 = vmatprep.subr.mxu0 0.0
  %2232 = vmatpush1.msra.mxu0 %v2210
  %2233 = vmatprep.subr.mxu0 0.0
  %2234 = vmatpush1.msra.mxu0 %v2211
  %2235 = vmatprep.subr.mxu0 0.0
  %2236 = vmatpush1.msra.mxu0 %v2212
  %2237 = vmatprep.subr.mxu0 0.0
  %2238 = vmatpush1.msra.mxu0 %v2213
  %2239 = vmatprep.subr.mxu0 0.0
  %2240 = vmatpush1.msra.mxu0 %v2214
  %2241 = vmatprep.subr.mxu0 0.0
  %2242 = vmatpush1.msra.mxu0 %v2215
  %2243 = vmatprep.subr.mxu0 0.0
  %2244 = vmatpush1.msra.mxu0 %v2216
  %2245 = vmatprep.subr.mxu0 0.0
  %2246 = vmatpush1.msra.mxu0 %v2217
  %2247 = vmatprep.subr.mxu0 0.0
  %2248 = vmatpush1.msra.mxu0 %v2218
  %2249 = vmatprep.subr.mxu0 0.0
  %2250 = vmatpush1.msra.mxu0 %v2219
  %2251 = vmatprep.subr.mxu0 0.0
  %2252 = vmatpush1.msra.mxu0 %v2220
  %2253 = vmatprep.subr.mxu0 0.0
  %2254 = vmatpush1.msra.mxu0 0.0
  %2255 = vmatprep.subr.mxu0 0.0
  %2256 = vmatpush1.msra.mxu0 0.0
  %2257 = vmatprep.subr.mxu0 0.0
  %2258 = vmatpush1.msra.mxu0 0.0
  %2259 = vmatprep.subr.mxu0 0.0
  %2260 = vmatpush1.msra.mxu0 0.0
  %2261 = vmatprep.subr.mxu0 0.0
  %2262 = vmatpush1.msra.mxu0 0.0
  %2263 = vmatprep.subr.mxu0 0.0
  %2264 = vmatpush1.msra.mxu0 0.0
  %2265 = vmatprep.subr.mxu0 0.0
  %2266 = vmatpush1.msra.mxu0 0.0
  %2267 = vmatprep.subr.mxu0 0.0
  %2268 = vmatpush1.msra.mxu0 0.0
  %2269 = vmatprep.subr.mxu0 0.0
  %2270 = vmatpush1.msra.mxu0 0.0
  %2271 = vmatprep.subr.mxu0 0.0
  %2272 = vmatpush1.msra.mxu0 0.0
  %2273 = vmatprep.subr.mxu0 0.0
  %2274 = vmatpush1.msra.mxu0 0.0
  %2275 = vmatprep.subr.mxu0 0.0
  %2276 = vmatpush1.msra.mxu0 0.0
  %2277 = vmatprep.subr.mxu0 0.0
  %2278 = vmatpush1.msra.mxu0 0.0
  %2279 = vmatprep.subr.mxu0 0.0
  %2280 = vmatpush1.msra.mxu0 0.0
  %2281 = vmatprep.subr.mxu0 0.0
  %2282 = vmatpush1.msra.mxu0 0.0
  %2283 = vmatprep.subr.mxu0 0.0
  %2284 = vmatpush1.msra.mxu0 0.0
  %2285 = vmatprep.mubr.f32.mxu0 0.0
  %2286 = vmatmul.mubr.f32.gmra.mrb[0].mxu0 %v2200
  %v2287 = vpop.f32.mrb[0].mxu0
  %v2288 = vadd.f32 0.0, %v2287
  %v2289 = vpop.f32.mrb[0].mxu0
  %2290 = vmatprep.mubr.f32.mxu0 0.0
  %2291 = vmatmul.mubr.f32.gmra.mrb[0].mxu0 %v2201
  %v2292 = vpop.f32.mrb[0].mxu0
  %v2293 = vadd.f32 0.0, %v2292
  %v2294 = vpop.f32.mrb[0].mxu0
  %2295 = vmatprep.mubr.f32.mxu0 0.0
  %2296 = vmatmul.mubr.f32.gmra.mrb[0].mxu0 %v2202
  %v2297 = vpop.f32.mrb[0].mxu0
  %v2298 = vadd.f32 0.0, %v2297
  %v2299 = vpop.f32.mrb[0].mxu0
  %2300 = vmatprep.mubr.f32.mxu0 0.0
  %2301 = vmatmul.mubr.f32.gmra.mrb[0].mxu0 %v2203
  %v2302 = vpop.f32.mrb[0].mxu0
  %v2303 = vadd.f32 0.0, %v2302
  %v2304 = vpop.f32.mrb[0].mxu0
  %2305 = vmatprep.mubr.f32.mxu0 0.0
  %2306 = vmatmul.mubr.f32.gmra.mrb[0].mxu0 %v2204
  %v2307 = vpop.f32.mrb[0].mxu0
  %v2308 = vadd.f32 0.0, %v2307
  %v2309 = vpop.f32.mrb[0].mxu0
  %2310 = vdwg.mxu0
  %v2311 = vadd.f32 %v1971, %v2288
  %v2312 = vadd.f32 %v1972, %v2293
  %v2313 = vadd.f32 %v1973, %v2298
  %v2314 = vadd.f32 %v1974, %v2303
  %v2315 = vadd.f32 %v1975, %v2308
  %v2316 = vld [vmem:[%s14] sm:$0x1]
  %v2318 = vlaneseq
  %v2319 = vshrl.u32 %v2318, 7
  %v2320 = vsub.s32 0, %v2319
  %v2321 = vrot.slane %v2316, %v2320
  %v2323 = vadd.f32 %v2311, %v2321
  %v2324 = vadd.f32 %v2312, %v2321
  %v2325 = vadd.f32 %v2313, %v2321
  %v2326 = vadd.f32 %v2314, %v2321
  %v2327 = vadd.f32 %v2315, %v2321
  %2328 = vst.msk [vmem:[%s15] sm:$0xff] %vm65, %v2323
  %2329 = vst.msk [vmem:[%s15 + $0x8] sm:$0xff] %vm65, %v2324
  %2330 = vst.msk [vmem:[%s15 + $0x10] sm:$0xff] %vm65, %v2325
  %2331 = vst.msk [vmem:[%s15 + $0x18] sm:$0xff] %vm65, %v2326
  %2332 = vst.msk [vmem:[%s15 + $0x20] sm:$0x3] %vm73, %v2327
  // Predicated region
  $region62: #{discriminator_forward.3} parent=0 // pred_check
    _
  $region63: #{discriminator_forward.3} parent=0 // pred_check_branch
    %2334 = sbr.rel (0) target = $region65
  $region64: #{discriminator_forward.3} parent=0 // pred_region
    _
  $region65: #{discriminator_forward.3} parent=0 // pred_fallthru
    _
  // Predicated region
  $region66: #{discriminator_forward.3} parent=0 // pred_check
    _
  $region67: #{discriminator_forward.3} parent=0 // pred_check_branch
    %2336 = sbr.rel (0) target = $region69
  $region68: #{discriminator_forward.3} parent=0 // pred_region
    _
  $region69: #{discriminator_forward.3} parent=0 // pred_fallthru
    _

// kernel: discriminator_forward.4
$region0: #{discriminator_forward.4}
  #allocation0 [shape = 'u32[]', space=smem, size = 0x4, offset = 0x4, fixed_abs, tag = 'smem constant byte address 0x4 - core index']
  #allocation1 [shape = 'u32[144,128]{1,0:T(1,128)}', space=vmem, size = 0x12000, scoped, tag = 'internal scratch']
  %s0 = inlined_call_operand.vmem [shape: f32[34,32], index: 0, kind: input, shape index: {}]
  %s1 = inlined_call_operand.vmem [shape: f32[34,34], index: 1, kind: input, shape index: {}]
  %s2 = inlined_call_operand.vmem [shape: f32[1,32], index: 2, kind: input, shape index: {}]
  %s3 = inlined_call_operand.vmem [shape: f32[1,32], index: 3, kind: input, shape index: {}]
  %s4 = inlined_call_operand.vmem [shape: f32[32,96], index: 4, kind: input, shape index: {}]
  %s5 = inlined_call_operand.vmem [shape: f32[1,96], index: 5, kind: input, shape index: {}]
  %s6 = inlined_call_operand.vmem [shape: f32[32,32], index: 6, kind: input, shape index: {}]
  %s7 = inlined_call_operand.vmem [shape: f32[1,32], index: 7, kind: input, shape index: {}]
  %s8 = inlined_call_operand.vmem [shape: f32[1,32], index: 8, kind: input, shape index: {}]
  %s9 = inlined_call_operand.vmem [shape: f32[1,32], index: 9, kind: input, shape index: {}]
  %s10 = inlined_call_operand.vmem [shape: f32[32,128], index: 10, kind: input, shape index: {}]
  %s11 = inlined_call_operand.vmem [shape: f32[1,128], index: 11, kind: input, shape index: {}]
  %s12 = inlined_call_operand.vmem [shape: f32[128,32], index: 12, kind: input, shape index: {}]
  %s13 = inlined_call_operand.vmem [shape: f32[1,32], index: 13, kind: input, shape index: {}]
  %s14 = inlined_call_operand.vmem [shape: f32[34,32], index: 14, kind: output, shape index: {}]
  %s15 = sld [smem:[#allocation0]]
  $region66: #{discriminator_forward.4} parent=0
    _
  %s17 = ssub.s32 1, %s15
  %s18 = scalar_select 0, %s17, %s15
  // Predicated region
  $region2: #{discriminator_forward.4} parent=0 // pred_check
    _
  $region3: #{discriminator_forward.4} parent=0 // pred_check_branch
    %20 = sbr.rel (0) target = $region5
  $region4: #{discriminator_forward.4} parent=0 // pred_region
    _
  $region5: #{discriminator_forward.4} parent=0 // pred_fallthru
    _
  // Predicated region
  $region6: #{discriminator_forward.4} parent=0 // pred_check
    _
  $region7: #{discriminator_forward.4} parent=0 // pred_check_branch
    %22 = sbr.rel (0) target = $region9
  $region8: #{discriminator_forward.4} parent=0 // pred_region
    _
  $region9: #{discriminator_forward.4} parent=0 // pred_fallthru
    _
  // Predicated region
  $region10: #{discriminator_forward.4} parent=0 // pred_check
    _
  $region11: #{discriminator_forward.4} parent=0 // pred_check_branch
    %24 = sbr.rel (0) target = $region13
  $region12: #{discriminator_forward.4} parent=0 // pred_region
    _
  $region13: #{discriminator_forward.4} parent=0 // pred_fallthru
    _
  // Predicated region
  $region14: #{discriminator_forward.4} parent=0 // pred_check
    _
  $region15: #{discriminator_forward.4} parent=0 // pred_check_branch
    %26 = sbr.rel (0) target = $region17
  $region16: #{discriminator_forward.4} parent=0 // pred_region
    _
  $region17: #{discriminator_forward.4} parent=0 // pred_fallthru
    _
  // Predicated region
  $region18: #{discriminator_forward.4} parent=0 // pred_check
    _
  $region19: #{discriminator_forward.4} parent=0 // pred_check_branch
    %28 = sbr.rel (0) target = $region21
  $region20: #{discriminator_forward.4} parent=0 // pred_region
    _
  $region21: #{discriminator_forward.4} parent=0 // pred_fallthru
    _
  // Predicated region
  $region22: #{discriminator_forward.4} parent=0 // pred_check
    _
  $region23: #{discriminator_forward.4} parent=0 // pred_check_branch
    %30 = sbr.rel (0) target = $region25
  $region24: #{discriminator_forward.4} parent=0 // pred_region
    _
  $region25: #{discriminator_forward.4} parent=0 // pred_fallthru
    _
  // Predicated region
  $region26: #{discriminator_forward.4} parent=0 // pred_check
    _
  $region27: #{discriminator_forward.4} parent=0 // pred_check_branch
    %32 = sbr.rel (0) target = $region29
  $region28: #{discriminator_forward.4} parent=0 // pred_region
    _
  $region29: #{discriminator_forward.4} parent=0 // pred_fallthru
    _
  // Predicated region
  $region30: #{discriminator_forward.4} parent=0 // pred_check
    _
  $region31: #{discriminator_forward.4} parent=0 // pred_check_branch
    %34 = sbr.rel (0) target = $region33
  $region32: #{discriminator_forward.4} parent=0 // pred_region
    _
  $region33: #{discriminator_forward.4} parent=0 // pred_fallthru
    _
  // Predicated region
  $region34: #{discriminator_forward.4} parent=0 // pred_check
    _
  $region35: #{discriminator_forward.4} parent=0 // pred_check_branch
    %36 = sbr.rel (0) target = $region37
  $region36: #{discriminator_forward.4} parent=0 // pred_region
    _
  $region37: #{discriminator_forward.4} parent=0 // pred_fallthru
    _
  // Predicated region
  $region38: #{discriminator_forward.4} parent=0 // pred_check
    _
  $region39: #{discriminator_forward.4} parent=0 // pred_check_branch
    %38 = sbr.rel (0) target = $region41
  $region40: #{discriminator_forward.4} parent=0 // pred_region
    _
  $region41: #{discriminator_forward.4} parent=0 // pred_fallthru
    _
  // Predicated region
  $region42: #{discriminator_forward.4} parent=0 // pred_check
    _
  $region43: #{discriminator_forward.4} parent=0 // pred_check_branch
    %40 = sbr.rel (0) target = $region45
  $region44: #{discriminator_forward.4} parent=0 // pred_region
    _
  $region45: #{discriminator_forward.4} parent=0 // pred_fallthru
    _
  // Predicated region
  $region46: #{discriminator_forward.4} parent=0 // pred_check
    _
  $region47: #{discriminator_forward.4} parent=0 // pred_check_branch
    %42 = sbr.rel (0) target = $region49
  $region48: #{discriminator_forward.4} parent=0 // pred_region
    _
  $region49: #{discriminator_forward.4} parent=0 // pred_fallthru
    _
  // Predicated region
  $region50: #{discriminator_forward.4} parent=0 // pred_check
    _
  $region51: #{discriminator_forward.4} parent=0 // pred_check_branch
    %44 = sbr.rel (0) target = $region53
  $region52: #{discriminator_forward.4} parent=0 // pred_region
    _
  $region53: #{discriminator_forward.4} parent=0 // pred_fallthru
    _
  // Predicated region
  $region54: #{discriminator_forward.4} parent=0 // pred_check
    _
  $region55: #{discriminator_forward.4} parent=0 // pred_check_branch
    %46 = sbr.rel (0) target = $region57
  $region56: #{discriminator_forward.4} parent=0 // pred_region
    _
  $region57: #{discriminator_forward.4} parent=0 // pred_fallthru
    _
  %v47 = vld [vmem:[%s0] sm:$0xff]
  %v48 = vld [vmem:[%s0 + $0x8] sm:$0xff]
  %v49 = vld [vmem:[%s0 + $0x10] sm:$0xff]
  %v50 = vld [vmem:[%s0 + $0x18] sm:$0xff]
  %v51 = vld [vmem:[%s0 + $0x20] sm:$0x3]
  %vm52 = vcmask 261120
  %v53 = vsel %vm52, %v47, 0.0
  %v54 = vsel %vm52, %v48, 0.0
  %v55 = vadd.f32 %v53, %v54
  %v56 = vsel %vm52, %v49, 0.0
  %v57 = vadd.f32 %v55, %v56
  %v58 = vsel %vm52, %v50, 0.0
  %v59 = vadd.f32 %v57, %v58
  %vm60 = vcmask 254976
  %v61 = vsel %vm60, %v51, 0.0
  %v62 = vadd.f32 %v59, %v61
  %v63 = vrot.slane %v62, 4
  %v64 = vadd.f32 %v62, %v63
  %v65 = vrot.slane %v64, 2
  %v66 = vadd.f32 %v64, %v65
  %v67 = vrot.slane %v66, 1
  %v68 = vadd.f32 %v66, %v67
  %v69 = vrcp.pop 34.0
  %v70 = vmul.f32 %v68, %v69
  %v71 = vsub.f32 %v47, %v70
  %v72 = vsub.f32 %v48, %v70
  %v73 = vsub.f32 %v49, %v70
  %v74 = vsub.f32 %v50, %v70
  %v75 = vsub.f32 %v51, %v70
  %v76 = vmul.f32 %v71, %v71
  %v77 = vmul.f32 %v72, %v72
  %v78 = vmul.f32 %v73, %v73
  %v79 = vmul.f32 %v74, %v74
  %v80 = vmul.f32 %v75, %v75
  %v81 = vsel %vm52, %v76, 0.0
  %v82 = vsel %vm52, %v77, 0.0
  %v83 = vadd.f32 %v81, %v82
  %v84 = vsel %vm52, %v78, 0.0
  %v85 = vadd.f32 %v83, %v84
  %v86 = vsel %vm52, %v79, 0.0
  %v87 = vadd.f32 %v85, %v86
  %v88 = vsel %vm60, %v80, 0.0
  %v89 = vadd.f32 %v87, %v88
  %v90 = vrot.slane %v89, 4
  %v91 = vadd.f32 %v89, %v90
  %v92 = vrot.slane %v91, 2
  %v93 = vadd.f32 %v91, %v92
  %v94 = vrot.slane %v93, 1
  %v95 = vadd.f32 %v93, %v94
  %v96 = vmul.f32 %v95, %v69
  %v97 = vadd.f32 %v96, 1e-05
  %v98 = vrsqrt.pop %v97
  %v99 = vmul.f32 %v71, %v98
  %v100 = vmul.f32 %v72, %v98
  %v101 = vmul.f32 %v73, %v98
  %v102 = vmul.f32 %v74, %v98
  %v103 = vmul.f32 %v75, %v98
  %v104 = vld [vmem:[%s2] sm:$0x1]
  %v106 = vlaneseq
  %v107 = vshrl.u32 %v106, 7
  %v108 = vsub.s32 0, %v107
  %v109 = vrot.slane %v104, %v108
  %v111 = vmul.f32 %v99, %v109
  %v112 = vmul.f32 %v100, %v109
  %v113 = vmul.f32 %v101, %v109
  %v114 = vmul.f32 %v102, %v109
  %v115 = vmul.f32 %v103, %v109
  %v116 = vld [vmem:[%s3] sm:$0x1]
  %v118 = vlaneseq
  %v119 = vshrl.u32 %v118, 7
  %v120 = vsub.s32 0, %v119
  %v121 = vrot.slane %v116, %v120
  %v123 = vadd.f32 %v111, %v121
  %v124 = vadd.f32 %v112, %v121
  %v125 = vadd.f32 %v113, %v121
  %v126 = vadd.f32 %v114, %v121
  %v127 = vadd.f32 %v115, %v121
  %v128 = vld [vmem:[%s4] sm:$0xff]
  %v129 = vld [vmem:[%s4 + $0x8] sm:$0xff]
  %v130 = vld [vmem:[%s4 + $0x10] sm:$0xff]
  %v131 = vld [vmem:[%s4 + $0x18] sm:$0xff]
  %v132 = vld [vmem:[%s5] sm:$0x1]
  %v134 = vlaneseq
  %v135 = vshrl.u32 %v134, 7
  %v136 = vsub.s32 0, %v135
  %v137 = vrot.slane %v132, %v136
  %v140 = vsel %vm52, %v123, 0
  %v143 = vsel %vm52, %v124, 0
  %v146 = vsel %vm52, %v125, 0
  %v149 = vsel %vm52, %v126, 0
  %v152 = vsel %vm52, %v127, 0
  %154 = vmatprep.subr.mxu0 0.0
  %155 = vmatpush1.msra.mxu0 %v128
  %156 = vmatprep.subr.mxu0 0.0
  %157 = vmatpush1.msra.mxu0 %v129
  %158 = vmatprep.subr.mxu0 0.0
  %159 = vmatpush1.msra.mxu0 %v130
  %160 = vmatprep.subr.mxu0 0.0
  %161 = vmatpush1.msra.mxu0 %v131
  %162 = vmatprep.subr.mxu0 0.0
  %163 = vmatpush1.msra.mxu0 0.0
  %164 = vmatprep.subr.mxu0 0.0
  %165 = vmatpush1.msra.mxu0 0.0
  %166 = vmatprep.subr.mxu0 0.0
  %167 = vmatpush1.msra.mxu0 0.0
  %168 = vmatprep.subr.mxu0 0.0
  %169 = vmatpush1.msra.mxu0 0.0
  %170 = vmatprep.subr.mxu0 0.0
  %171 = vmatpush1.msra.mxu0 0.0
  %172 = vmatprep.subr.mxu0 0.0
  %173 = vmatpush1.msra.mxu0 0.0
  %174 = vmatprep.subr.mxu0 0.0
  %175 = vmatpush1.msra.mxu0 0.0
  %176 = vmatprep.subr.mxu0 0.0
  %177 = vmatpush1.msra.mxu0 0.0
  %178 = vmatprep.subr.mxu0 0.0
  %179 = vmatpush1.msra.mxu0 0.0
  %180 = vmatprep.subr.mxu0 0.0
  %181 = vmatpush1.msra.mxu0 0.0
  %182 = vmatprep.subr.mxu0 0.0
  %183 = vmatpush1.msra.mxu0 0.0
  %184 = vmatprep.subr.mxu0 0.0
  %185 = vmatpush1.msra.mxu0 0.0
  %186 = vmatprep.subr.mxu0 0.0
  %187 = vmatpush1.msra.mxu0 0.0
  %188 = vmatprep.subr.mxu0 0.0
  %189 = vmatpush1.msra.mxu0 0.0
  %190 = vmatprep.subr.mxu0 0.0
  %191 = vmatpush1.msra.mxu0 0.0
  %192 = vmatprep.subr.mxu0 0.0
  %193 = vmatpush1.msra.mxu0 0.0
  %194 = vmatprep.subr.mxu0 0.0
  %195 = vmatpush1.msra.mxu0 0.0
  %196 = vmatprep.subr.mxu0 0.0
  %197 = vmatpush1.msra.mxu0 0.0
  %198 = vmatprep.subr.mxu0 0.0
  %199 = vmatpush1.msra.mxu0 0.0
  %200 = vmatprep.subr.mxu0 0.0
  %201 = vmatpush1.msra.mxu0 0.0
  %202 = vmatprep.subr.mxu0 0.0
  %203 = vmatpush1.msra.mxu0 0.0
  %204 = vmatprep.subr.mxu0 0.0
  %205 = vmatpush1.msra.mxu0 0.0
  %206 = vmatprep.subr.mxu0 0.0
  %207 = vmatpush1.msra.mxu0 0.0
  %208 = vmatprep.subr.mxu0 0.0
  %209 = vmatpush1.msra.mxu0 0.0
  %210 = vmatprep.subr.mxu0 0.0
  %211 = vmatpush1.msra.mxu0 0.0
  %212 = vmatprep.subr.mxu0 0.0
  %213 = vmatpush1.msra.mxu0 0.0
  %214 = vmatprep.subr.mxu0 0.0
  %215 = vmatpush1.msra.mxu0 0.0
  %216 = vmatprep.subr.mxu0 0.0
  %217 = vmatpush1.msra.mxu0 0.0
  %218 = vmatprep.mubr.f32.mxu0 0.0
  %219 = vmatmul.mubr.f32.gmra.mrb[0].mxu0 %v140
  %v220 = vpop.f32.mrb[0].mxu0
  %v221 = vadd.f32 %v137, %v220
  %v222 = vpop.f32.mrb[0].mxu0
  %223 = vmatprep.mubr.f32.mxu0 0.0
  %224 = vmatmul.mubr.f32.gmra.mrb[0].mxu0 %v143
  %v225 = vpop.f32.mrb[0].mxu0
  %v226 = vadd.f32 %v137, %v225
  %v227 = vpop.f32.mrb[0].mxu0
  %228 = vmatprep.mubr.f32.mxu0 0.0
  %229 = vmatmul.mubr.f32.gmra.mrb[0].mxu0 %v146
  %v230 = vpop.f32.mrb[0].mxu0
  %v231 = vadd.f32 %v137, %v230
  %v232 = vpop.f32.mrb[0].mxu0
  %233 = vmatprep.mubr.f32.mxu0 0.0
  %234 = vmatmul.mubr.f32.gmra.mrb[0].mxu0 %v149
  %v235 = vpop.f32.mrb[0].mxu0
  %v236 = vadd.f32 %v137, %v235
  %v237 = vpop.f32.mrb[0].mxu0
  %238 = vmatprep.mubr.f32.mxu0 0.0
  %239 = vmatmul.mubr.f32.gmra.mrb[0].mxu0 %v152
  %v240 = vpop.f32.mrb[0].mxu0
  %v241 = vadd.f32 %v137, %v240
  %v242 = vpop.f32.mrb[0].mxu0
  %243 = vdwg.mxu0
  %v244 = vld [vmem:[%s1] sm:$0xff]
  %v245 = vld [vmem:[%s1 + $0x8] sm:$0xff]
  %v246 = vld [vmem:[%s1 + $0x10] sm:$0xff]
  %v247 = vld [vmem:[%s1 + $0x18] sm:$0xff]
  %v248 = vld [vmem:[%s1 + $0x20] sm:$0x3]
  %v249 = vld [vmem:[%s6] sm:$0xff]
  %v250 = vld [vmem:[%s6 + $0x8] sm:$0xff]
  %v251 = vld [vmem:[%s6 + $0x10] sm:$0xff]
  %v252 = vld [vmem:[%s6 + $0x18] sm:$0xff]
  %258 = vrot.lane.b32.xlu0 %v221, 96
  %v259 = vpop.permute.xlu0 %258
  %260 = vrot.lane.b32.xlu0 %v226, 96
  %v261 = vpop.permute.xlu0 %260
  %262 = vrot.lane.b32.xlu0 %v231, 96
  %v263 = vpop.permute.xlu0 %262
  %264 = vrot.lane.b32.xlu0 %v236, 96
  %v265 = vpop.permute.xlu0 %264
  %266 = vrot.lane.b32.xlu0 %v241, 96
  %v267 = vpop.permute.xlu0 %266
  %vm268 = vcmask 64512
  %v269 = vsel %vm268, %v221, 0
  %v271 = vsel %vm268, %v226, 0
  %v273 = vsel %vm268, %v231, 0
  %v275 = vsel %vm268, %v236, 0
  %v277 = vsel %vm268, %v241, 0
  %v279 = vsel %vm268, %v259, 0
  %v281 = vsel %vm268, %v261, 0
  %v283 = vsel %vm268, %v263, 0
  %v285 = vsel %vm268, %v265, 0
  %v287 = vsel %vm268, %v267, 0
  %289 = vmatprep.subr.mxu0 0.0
  %290 = vmatpush1.xpose.msra.mxu0 %v279
  %291 = vmatprep.subr.mxu0 0.0
  %292 = vmatpush1.xpose.msra.mxu0 %v281
  %293 = vmatprep.subr.mxu0 0.0
  %294 = vmatpush1.xpose.msra.mxu0 %v283
  %295 = vmatprep.subr.mxu0 0.0
  %296 = vmatpush1.xpose.msra.mxu0 %v285
  %297 = vmatprep.subr.mxu0 0.0
  %298 = vmatpush1.xpose.msra.mxu0 %v287
  %299 = vmatprep.subr.mxu0 0.0
  %300 = vmatpush1.xpose.msra.mxu0 0.0
  %301 = vmatprep.subr.mxu0 0.0
  %302 = vmatpush1.xpose.msra.mxu0 0.0
  %303 = vmatprep.subr.mxu0 0.0
  %304 = vmatpush1.xpose.msra.mxu0 0.0
  %305 = vmatprep.subr.mxu0 0.0
  %306 = vmatpush1.xpose.msra.mxu0 0.0
  %307 = vmatprep.subr.mxu0 0.0
  %308 = vmatpush1.xpose.msra.mxu0 0.0
  %309 = vmatprep.subr.mxu0 0.0
  %310 = vmatpush1.xpose.msra.mxu0 0.0
  %311 = vmatprep.subr.mxu0 0.0
  %312 = vmatpush1.xpose.msra.mxu0 0.0
  %313 = vmatprep.subr.mxu0 0.0
  %314 = vmatpush1.xpose.msra.mxu0 0.0
  %315 = vmatprep.subr.mxu0 0.0
  %316 = vmatpush1.xpose.msra.mxu0 0.0
  %317 = vmatprep.subr.mxu0 0.0
  %318 = vmatpush1.xpose.msra.mxu0 0.0
  %319 = vmatprep.subr.mxu0 0.0
  %320 = vmatpush1.xpose.msra.mxu0 0.0
  %321 = vmatprep.subr.mxu0 0.0
  %322 = vmatpush1.xpose.msra.mxu0 0.0
  %323 = vmatprep.subr.mxu0 0.0
  %324 = vmatpush1.xpose.msra.mxu0 0.0
  %325 = vmatprep.subr.mxu0 0.0
  %326 = vmatpush1.xpose.msra.mxu0 0.0
  %327 = vmatprep.subr.mxu0 0.0
  %328 = vmatpush1.xpose.msra.mxu0 0.0
  %329 = vmatprep.subr.mxu0 0.0
  %330 = vmatpush1.xpose.msra.mxu0 0.0
  %331 = vmatprep.subr.mxu0 0.0
  %332 = vmatpush1.xpose.msra.mxu0 0.0
  %333 = vmatprep.subr.mxu0 0.0
  %334 = vmatpush1.xpose.msra.mxu0 0.0
  %335 = vmatprep.subr.mxu0 0.0
  %336 = vmatpush1.xpose.msra.mxu0 0.0
  %337 = vmatprep.subr.mxu0 0.0
  %338 = vmatpush1.xpose.msra.mxu0 0.0
  %339 = vmatprep.subr.mxu0 0.0
  %340 = vmatpush1.xpose.msra.mxu0 0.0
  %341 = vmatprep.subr.mxu0 0.0
  %342 = vmatpush1.xpose.msra.mxu0 0.0
  %343 = vmatprep.subr.mxu0 0.0
  %344 = vmatpush1.xpose.msra.mxu0 0.0
  %345 = vmatprep.subr.mxu0 0.0
  %346 = vmatpush1.xpose.msra.mxu0 0.0
  %347 = vmatprep.subr.mxu0 0.0
  %348 = vmatpush1.xpose.msra.mxu0 0.0
  %349 = vmatprep.subr.mxu0 0.0
  %350 = vmatpush1.xpose.msra.mxu0 0.0
  %351 = vmatprep.subr.mxu0 0.0
  %352 = vmatpush1.xpose.msra.mxu0 0.0
  %353 = vmatprep.mubr.f32.mxu0 0.0
  %354 = vmatmul.mubr.f32.gmra.mrb[0].mxu0 %v269
  %v355 = vpop.f32.mrb[0].mxu0
  %v356 = vadd.f32 0.0, %v355
  %v357 = vpop.f32.mrb[0].mxu0
  %358 = vmatprep.mubr.f32.mxu0 0.0
  %359 = vmatmul.mubr.f32.gmra.mrb[0].mxu0 %v271
  %v360 = vpop.f32.mrb[0].mxu0
  %v361 = vadd.f32 0.0, %v360
  %v362 = vpop.f32.mrb[0].mxu0
  %363 = vmatprep.mubr.f32.mxu0 0.0
  %364 = vmatmul.mubr.f32.gmra.mrb[0].mxu0 %v273
  %v365 = vpop.f32.mrb[0].mxu0
  %v366 = vadd.f32 0.0, %v365
  %v367 = vpop.f32.mrb[0].mxu0
  %368 = vmatprep.mubr.f32.mxu0 0.0
  %369 = vmatmul.mubr.f32.gmra.mrb[0].mxu0 %v275
  %v370 = vpop.f32.mrb[0].mxu0
  %v371 = vadd.f32 0.0, %v370
  %v372 = vpop.f32.mrb[0].mxu0
  %373 = vmatprep.mubr.f32.mxu0 0.0
  %374 = vmatmul.mubr.f32.gmra.mrb[0].mxu0 %v277
  %v375 = vpop.f32.mrb[0].mxu0
  %v376 = vadd.f32 0.0, %v375
  %v377 = vpop.f32.mrb[0].mxu0
  %378 = vdwg.mxu0
  %v379 = vmul.f32 %v356, 0.35355338
  %v380 = vmul.f32 %v361, 0.35355338
  %v381 = vmul.f32 %v366, 0.35355338
  %v382 = vmul.f32 %v371, 0.35355338
  %v383 = vmul.f32 %v376, 0.35355338
  %v384 = vadd.f32 %v379, %v244
  %v385 = vadd.f32 %v380, %v245
  %v386 = vadd.f32 %v381, %v246
  %v387 = vadd.f32 %v382, %v247
  %v388 = vadd.f32 %v383, %v248
  %vm389 = vcmask 277504
  %v390 = vsel %vm389, %v384, -inf
  %391 = vmax.xlane.f32.xlu0 %v390
  %v392 = vpop.xlane.xlu0 %391
  %v393 = vsel %vm389, %v385, -inf
  %394 = vmax.xlane.f32.xlu0 %v393
  %v395 = vpop.xlane.xlu0 %394
  %v396 = vsel %vm389, %v386, -inf
  %397 = vmax.xlane.f32.xlu0 %v396
  %v398 = vpop.xlane.xlu0 %397
  %v399 = vsel %vm389, %v387, -inf
  %400 = vmax.xlane.f32.xlu0 %v399
  %v401 = vpop.xlane.xlu0 %400
  %vm402 = vcmask 271360
  %v403 = vsel %vm402, %v388, -inf
  %404 = vmax.xlane.f32.xlu0 %v403
  %v405 = vpop.xlane.xlu0 %404
  %v406 = vsub.f32 %v384, %v392
  %v407 = vsub.f32 %v385, %v395
  %v408 = vsub.f32 %v386, %v398
  %v409 = vsub.f32 %v387, %v401
  %v410 = vsub.f32 %v388, %v405
  %v411 = vmul.f32 %v406, 1.442695
  %v412 = vpow.pop %v411
  %v413 = vmul.f32 %v407, 1.442695
  %v414 = vpow.pop %v413
  %v415 = vmul.f32 %v408, 1.442695
  %v416 = vpow.pop %v415
  %v417 = vmul.f32 %v409, 1.442695
  %v418 = vpow.pop %v417
  %v419 = vmul.f32 %v410, 1.442695
  %v420 = vpow.pop %v419
  %v421 = vsel %vm389, %v412, 0.0
  %422 = vadd.xlane.f32.xlu0 %v421
  %v423 = vpop.xlane.xlu0 %422
  %v424 = vsel %vm389, %v414, 0.0
  %425 = vadd.xlane.f32.xlu0 %v424
  %v426 = vpop.xlane.xlu0 %425
  %v427 = vsel %vm389, %v416, 0.0
  %428 = vadd.xlane.f32.xlu0 %v427
  %v429 = vpop.xlane.xlu0 %428
  %v430 = vsel %vm389, %v418, 0.0
  %431 = vadd.xlane.f32.xlu0 %v430
  %v432 = vpop.xlane.xlu0 %431
  %v433 = vsel %vm402, %v420, 0.0
  %434 = vadd.xlane.f32.xlu0 %v433
  %v435 = vpop.xlane.xlu0 %434
  %v436 = vrcp.pop %v423
  %v437 = vmul.f32 %v412, %v436
  %v438 = vrcp.pop %v426
  %v439 = vmul.f32 %v414, %v438
  %v440 = vrcp.pop %v429
  %v441 = vmul.f32 %v416, %v440
  %v442 = vrcp.pop %v432
  %v443 = vmul.f32 %v418, %v442
  %v444 = vrcp.pop %v435
  %v445 = vmul.f32 %v420, %v444
  %446 = vrot.lane.b32.xlu0 %v221, 64
  %v447 = vpop.permute.xlu0 %446
  %448 = vrot.lane.b32.xlu0 %v226, 64
  %v449 = vpop.permute.xlu0 %448
  %450 = vrot.lane.b32.xlu0 %v231, 64
  %v451 = vpop.permute.xlu0 %450
  %452 = vrot.lane.b32.xlu0 %v236, 64
  %v453 = vpop.permute.xlu0 %452
  %454 = vrot.lane.b32.xlu0 %v241, 64
  %v455 = vpop.permute.xlu0 %454
  %v461 = vsel %vm389, %v437, 0
  %v464 = vsel %vm389, %v439, 0
  %v467 = vsel %vm389, %v441, 0
  %v470 = vsel %vm389, %v443, 0
  %v473 = vsel %vm389, %v445, 0
  %vm475 = vcmask 1041408
  %v476 = vsel %vm475, %v455, 0
  %478 = vmatprep.subr.mxu0 0.0
  %479 = vmatpush1.msra.mxu0 %v447
  %480 = vmatprep.subr.mxu0 0.0
  %481 = vmatpush1.msra.mxu0 %v449
  %482 = vmatprep.subr.mxu0 0.0
  %483 = vmatpush1.msra.mxu0 %v451
  %484 = vmatprep.subr.mxu0 0.0
  %485 = vmatpush1.msra.mxu0 %v453
  %486 = vmatprep.subr.mxu0 0.0
  %487 = vmatpush1.msra.mxu0 %v476
  %488 = vmatprep.subr.mxu0 0.0
  %489 = vmatpush1.msra.mxu0 0.0
  %490 = vmatprep.subr.mxu0 0.0
  %491 = vmatpush1.msra.mxu0 0.0
  %492 = vmatprep.subr.mxu0 0.0
  %493 = vmatpush1.msra.mxu0 0.0
  %494 = vmatprep.subr.mxu0 0.0
  %495 = vmatpush1.msra.mxu0 0.0
  %496 = vmatprep.subr.mxu0 0.0
  %497 = vmatpush1.msra.mxu0 0.0
  %498 = vmatprep.subr.mxu0 0.0
  %499 = vmatpush1.msra.mxu0 0.0
  %500 = vmatprep.subr.mxu0 0.0
  %501 = vmatpush1.msra.mxu0 0.0
  %502 = vmatprep.subr.mxu0 0.0
  %503 = vmatpush1.msra.mxu0 0.0
  %504 = vmatprep.subr.mxu0 0.0
  %505 = vmatpush1.msra.mxu0 0.0
  %506 = vmatprep.subr.mxu0 0.0
  %507 = vmatpush1.msra.mxu0 0.0
  %508 = vmatprep.subr.mxu0 0.0
  %509 = vmatpush1.msra.mxu0 0.0
  %510 = vmatprep.subr.mxu0 0.0
  %511 = vmatpush1.msra.mxu0 0.0
  %512 = vmatprep.subr.mxu0 0.0
  %513 = vmatpush1.msra.mxu0 0.0
  %514 = vmatprep.subr.mxu0 0.0
  %515 = vmatpush1.msra.mxu0 0.0
  %516 = vmatprep.subr.mxu0 0.0
  %517 = vmatpush1.msra.mxu0 0.0
  %518 = vmatprep.subr.mxu0 0.0
  %519 = vmatpush1.msra.mxu0 0.0
  %520 = vmatprep.subr.mxu0 0.0
  %521 = vmatpush1.msra.mxu0 0.0
  %522 = vmatprep.subr.mxu0 0.0
  %523 = vmatpush1.msra.mxu0 0.0
  %524 = vmatprep.subr.mxu0 0.0
  %525 = vmatpush1.msra.mxu0 0.0
  %526 = vmatprep.subr.mxu0 0.0
  %527 = vmatpush1.msra.mxu0 0.0
  %528 = vmatprep.subr.mxu0 0.0
  %529 = vmatpush1.msra.mxu0 0.0
  %530 = vmatprep.subr.mxu0 0.0
  %531 = vmatpush1.msra.mxu0 0.0
  %532 = vmatprep.subr.mxu0 0.0
  %533 = vmatpush1.msra.mxu0 0.0
  %534 = vmatprep.subr.mxu0 0.0
  %535 = vmatpush1.msra.mxu0 0.0
  %536 = vmatprep.subr.mxu0 0.0
  %537 = vmatpush1.msra.mxu0 0.0
  %538 = vmatprep.subr.mxu0 0.0
  %539 = vmatpush1.msra.mxu0 0.0
  %540 = vmatprep.subr.mxu0 0.0
  %541 = vmatpush1.msra.mxu0 0.0
  %542 = vmatprep.mubr.f32.mxu0 0.0
  %543 = vmatmul.mubr.f32.gmra.mrb[0].mxu0 %v461
  %v544 = vpop.f32.mrb[0].mxu0
  %v545 = vadd.f32 0.0, %v544
  %v546 = vpop.f32.mrb[0].mxu0
  %547 = vmatprep.mubr.f32.mxu0 0.0
  %548 = vmatmul.mubr.f32.gmra.mrb[0].mxu0 %v464
  %v549 = vpop.f32.mrb[0].mxu0
  %v550 = vadd.f32 0.0, %v549
  %v551 = vpop.f32.mrb[0].mxu0
  %552 = vmatprep.mubr.f32.mxu0 0.0
  %553 = vmatmul.mubr.f32.gmra.mrb[0].mxu0 %v467
  %v554 = vpop.f32.mrb[0].mxu0
  %v555 = vadd.f32 0.0, %v554
  %v556 = vpop.f32.mrb[0].mxu0
  %557 = vmatprep.mubr.f32.mxu0 0.0
  %558 = vmatmul.mubr.f32.gmra.mrb[0].mxu0 %v470
  %v559 = vpop.f32.mrb[0].mxu0
  %v560 = vadd.f32 0.0, %v559
  %v561 = vpop.f32.mrb[0].mxu0
  %562 = vmatprep.mubr.f32.mxu0 0.0
  %563 = vmatmul.mubr.f32.gmra.mrb[0].mxu0 %v473
  %v564 = vpop.f32.mrb[0].mxu0
  %v565 = vadd.f32 0.0, %v564
  %v566 = vpop.f32.mrb[0].mxu0
  %567 = vdwg.mxu0
  %568 = vrot.lane.b32.xlu0 %v221, 120
  %v569 = vpop.permute.xlu0 %568
  %570 = vrot.lane.b32.xlu0 %v226, 120
  %v571 = vpop.permute.xlu0 %570
  %572 = vrot.lane.b32.xlu0 %v231, 120
  %v573 = vpop.permute.xlu0 %572
  %574 = vrot.lane.b32.xlu0 %v236, 120
  %v575 = vpop.permute.xlu0 %574
  %576 = vrot.lane.b32.xlu0 %v241, 120
  %v577 = vpop.permute.xlu0 %576
  %578 = vrot.lane.b32.xlu0 %v221, 88
  %v579 = vpop.permute.xlu0 %578
  %580 = vrot.lane.b32.xlu0 %v226, 88
  %v581 = vpop.permute.xlu0 %580
  %582 = vrot.lane.b32.xlu0 %v231, 88
  %v583 = vpop.permute.xlu0 %582
  %584 = vrot.lane.b32.xlu0 %v236, 88
  %v585 = vpop.permute.xlu0 %584
  %586 = vrot.lane.b32.xlu0 %v241, 88
  %v587 = vpop.permute.xlu0 %586
  %v588 = vsel %vm268, %v569, 0
  %v590 = vsel %vm268, %v571, 0
  %v592 = vsel %vm268, %v573, 0
  %v594 = vsel %vm268, %v575, 0
  %v596 = vsel %vm268, %v577, 0
  %v598 = vsel %vm268, %v579, 0
  %v600 = vsel %vm268, %v581, 0
  %v602 = vsel %vm268, %v583, 0
  %v604 = vsel %vm268, %v585, 0
  %v606 = vsel %vm268, %v587, 0
  %608 = vmatprep.subr.mxu0 0.0
  %609 = vmatpush1.xpose.msra.mxu0 %v598
  %610 = vmatprep.subr.mxu0 0.0
  %611 = vmatpush1.xpose.msra.mxu0 %v600
  %612 = vmatprep.subr.mxu0 0.0
  %613 = vmatpush1.xpose.msra.mxu0 %v602
  %614 = vmatprep.subr.mxu0 0.0
  %615 = vmatpush1.xpose.msra.mxu0 %v604
  %616 = vmatprep.subr.mxu0 0.0
  %617 = vmatpush1.xpose.msra.mxu0 %v606
  %618 = vmatprep.subr.mxu0 0.0
  %619 = vmatpush1.xpose.msra.mxu0 0.0
  %620 = vmatprep.subr.mxu0 0.0
  %621 = vmatpush1.xpose.msra.mxu0 0.0
  %622 = vmatprep.subr.mxu0 0.0
  %623 = vmatpush1.xpose.msra.mxu0 0.0
  %624 = vmatprep.subr.mxu0 0.0
  %625 = vmatpush1.xpose.msra.mxu0 0.0
  %626 = vmatprep.subr.mxu0 0.0
  %627 = vmatpush1.xpose.msra.mxu0 0.0
  %628 = vmatprep.subr.mxu0 0.0
  %629 = vmatpush1.xpose.msra.mxu0 0.0
  %630 = vmatprep.subr.mxu0 0.0
  %631 = vmatpush1.xpose.msra.mxu0 0.0
  %632 = vmatprep.subr.mxu0 0.0
  %633 = vmatpush1.xpose.msra.mxu0 0.0
  %634 = vmatprep.subr.mxu0 0.0
  %635 = vmatpush1.xpose.msra.mxu0 0.0
  %636 = vmatprep.subr.mxu0 0.0
  %637 = vmatpush1.xpose.msra.mxu0 0.0
  %638 = vmatprep.subr.mxu0 0.0
  %639 = vmatpush1.xpose.msra.mxu0 0.0
  %640 = vmatprep.subr.mxu0 0.0
  %641 = vmatpush1.xpose.msra.mxu0 0.0
  %642 = vmatprep.subr.mxu0 0.0
  %643 = vmatpush1.xpose.msra.mxu0 0.0
  %644 = vmatprep.subr.mxu0 0.0
  %645 = vmatpush1.xpose.msra.mxu0 0.0
  %646 = vmatprep.subr.mxu0 0.0
  %647 = vmatpush1.xpose.msra.mxu0 0.0
  %648 = vmatprep.subr.mxu0 0.0
  %649 = vmatpush1.xpose.msra.mxu0 0.0
  %650 = vmatprep.subr.mxu0 0.0
  %651 = vmatpush1.xpose.msra.mxu0 0.0
  %652 = vmatprep.subr.mxu0 0.0
  %653 = vmatpush1.xpose.msra.mxu0 0.0
  %654 = vmatprep.subr.mxu0 0.0
  %655 = vmatpush1.xpose.msra.mxu0 0.0
  %656 = vmatprep.subr.mxu0 0.0
  %657 = vmatpush1.xpose.msra.mxu0 0.0
  %658 = vmatprep.subr.mxu0 0.0
  %659 = vmatpush1.xpose.msra.mxu0 0.0
  %660 = vmatprep.subr.mxu0 0.0
  %661 = vmatpush1.xpose.msra.mxu0 0.0
  %662 = vmatprep.subr.mxu0 0.0
  %663 = vmatpush1.xpose.msra.mxu0 0.0
  %664 = vmatprep.subr.mxu0 0.0
  %665 = vmatpush1.xpose.msra.mxu0 0.0
  %666 = vmatprep.subr.mxu0 0.0
  %667 = vmatpush1.xpose.msra.mxu0 0.0
  %668 = vmatprep.subr.mxu0 0.0
  %669 = vmatpush1.xpose.msra.mxu0 0.0
  %670 = vmatprep.subr.mxu0 0.0
  %671 = vmatpush1.xpose.msra.mxu0 0.0
  %672 = vmatprep.mubr.f32.mxu0 0.0
  %673 = vmatmul.mubr.f32.gmra.mrb[0].mxu0 %v588
  %v674 = vpop.f32.mrb[0].mxu0
  %v675 = vadd.f32 0.0, %v674
  %v676 = vpop.f32.mrb[0].mxu0
  %677 = vmatprep.mubr.f32.mxu0 0.0
  %678 = vmatmul.mubr.f32.gmra.mrb[0].mxu0 %v590
  %v679 = vpop.f32.mrb[0].mxu0
  %v680 = vadd.f32 0.0, %v679
  %v681 = vpop.f32.mrb[0].mxu0
  %682 = vmatprep.mubr.f32.mxu0 0.0
  %683 = vmatmul.mubr.f32.gmra.mrb[0].mxu0 %v592
  %v684 = vpop.f32.mrb[0].mxu0
  %v685 = vadd.f32 0.0, %v684
  %v686 = vpop.f32.mrb[0].mxu0
  %687 = vmatprep.mubr.f32.mxu0 0.0
  %688 = vmatmul.mubr.f32.gmra.mrb[0].mxu0 %v594
  %v689 = vpop.f32.mrb[0].mxu0
  %v690 = vadd.f32 0.0, %v689
  %v691 = vpop.f32.mrb[0].mxu0
  %692 = vmatprep.mubr.f32.mxu0 0.0
  %693 = vmatmul.mubr.f32.gmra.mrb[0].mxu0 %v596
  %v694 = vpop.f32.mrb[0].mxu0
  %v695 = vadd.f32 0.0, %v694
  %v696 = vpop.f32.mrb[0].mxu0
  %697 = vdwg.mxu0
  %v698 = vmul.f32 %v675, 0.35355338
  %v699 = vmul.f32 %v680, 0.35355338
  %v700 = vmul.f32 %v685, 0.35355338
  %v701 = vmul.f32 %v690, 0.35355338
  %v702 = vmul.f32 %v695, 0.35355338
  %v703 = vadd.f32 %v698, %v244
  %v704 = vadd.f32 %v699, %v245
  %v705 = vadd.f32 %v700, %v246
  %v706 = vadd.f32 %v701, %v247
  %v707 = vadd.f32 %v702, %v248
  %v708 = vsel %vm389, %v703, -inf
  %709 = vmax.xlane.f32.xlu0 %v708
  %v710 = vpop.xlane.xlu0 %709
  %v711 = vsel %vm389, %v704, -inf
  %712 = vmax.xlane.f32.xlu0 %v711
  %v713 = vpop.xlane.xlu0 %712
  %v714 = vsel %vm389, %v705, -inf
  %715 = vmax.xlane.f32.xlu0 %v714
  %v716 = vpop.xlane.xlu0 %715
  %v717 = vsel %vm389, %v706, -inf
  %718 = vmax.xlane.f32.xlu0 %v717
  %v719 = vpop.xlane.xlu0 %718
  %v720 = vsel %vm402, %v707, -inf
  %721 = vmax.xlane.f32.xlu0 %v720
  %v722 = vpop.xlane.xlu0 %721
  %v723 = vsub.f32 %v703, %v710
  %v724 = vsub.f32 %v704, %v713
  %v725 = vsub.f32 %v705, %v716
  %v726 = vsub.f32 %v706, %v719
  %v727 = vsub.f32 %v707, %v722
  %v728 = vmul.f32 %v723, 1.442695
  %v729 = vpow.pop %v728
  %v730 = vmul.f32 %v724, 1.442695
  %v731 = vpow.pop %v730
  %v732 = vmul.f32 %v725, 1.442695
  %v733 = vpow.pop %v732
  %v734 = vmul.f32 %v726, 1.442695
  %v735 = vpow.pop %v734
  %v736 = vmul.f32 %v727, 1.442695
  %v737 = vpow.pop %v736
  %v738 = vsel %vm389, %v729, 0.0
  %739 = vadd.xlane.f32.xlu0 %v738
  %v740 = vpop.xlane.xlu0 %739
  %v741 = vsel %vm389, %v731, 0.0
  %742 = vadd.xlane.f32.xlu0 %v741
  %v743 = vpop.xlane.xlu0 %742
  %v744 = vsel %vm389, %v733, 0.0
  %745 = vadd.xlane.f32.xlu0 %v744
  %v746 = vpop.xlane.xlu0 %745
  %v747 = vsel %vm389, %v735, 0.0
  %748 = vadd.xlane.f32.xlu0 %v747
  %v749 = vpop.xlane.xlu0 %748
  %v750 = vsel %vm402, %v737, 0.0
  %751 = vadd.xlane.f32.xlu0 %v750
  %v752 = vpop.xlane.xlu0 %751
  %v753 = vrcp.pop %v740
  %v754 = vmul.f32 %v729, %v753
  %v755 = vrcp.pop %v743
  %v756 = vmul.f32 %v731, %v755
  %v757 = vrcp.pop %v746
  %v758 = vmul.f32 %v733, %v757
  %v759 = vrcp.pop %v749
  %v760 = vmul.f32 %v735, %v759
  %v761 = vrcp.pop %v752
  %v762 = vmul.f32 %v737, %v761
  %763 = vrot.lane.b32.xlu0 %v221, 56
  %v764 = vpop.permute.xlu0 %763
  %765 = vrot.lane.b32.xlu0 %v226, 56
  %v766 = vpop.permute.xlu0 %765
  %767 = vrot.lane.b32.xlu0 %v231, 56
  %v768 = vpop.permute.xlu0 %767
  %769 = vrot.lane.b32.xlu0 %v236, 56
  %v770 = vpop.permute.xlu0 %769
  %771 = vrot.lane.b32.xlu0 %v241, 56
  %v772 = vpop.permute.xlu0 %771
  %v778 = vsel %vm389, %v754, 0
  %v781 = vsel %vm389, %v756, 0
  %v784 = vsel %vm389, %v758, 0
  %v787 = vsel %vm389, %v760, 0
  %v790 = vsel %vm389, %v762, 0
  %v792 = vsel %vm475, %v772, 0
  %794 = vmatprep.subr.mxu0 0.0
  %795 = vmatpush1.msra.mxu0 %v764
  %796 = vmatprep.subr.mxu0 0.0
  %797 = vmatpush1.msra.mxu0 %v766
  %798 = vmatprep.subr.mxu0 0.0
  %799 = vmatpush1.msra.mxu0 %v768
  %800 = vmatprep.subr.mxu0 0.0
  %801 = vmatpush1.msra.mxu0 %v770
  %802 = vmatprep.subr.mxu0 0.0
  %803 = vmatpush1.msra.mxu0 %v792
  %804 = vmatprep.subr.mxu0 0.0
  %805 = vmatpush1.msra.mxu0 0.0
  %806 = vmatprep.subr.mxu0 0.0
  %807 = vmatpush1.msra.mxu0 0.0
  %808 = vmatprep.subr.mxu0 0.0
  %809 = vmatpush1.msra.mxu0 0.0
  %810 = vmatprep.subr.mxu0 0.0
  %811 = vmatpush1.msra.mxu0 0.0
  %812 = vmatprep.subr.mxu0 0.0
  %813 = vmatpush1.msra.mxu0 0.0
  %814 = vmatprep.subr.mxu0 0.0
  %815 = vmatpush1.msra.mxu0 0.0
  %816 = vmatprep.subr.mxu0 0.0
  %817 = vmatpush1.msra.mxu0 0.0
  %818 = vmatprep.subr.mxu0 0.0
  %819 = vmatpush1.msra.mxu0 0.0
  %820 = vmatprep.subr.mxu0 0.0
  %821 = vmatpush1.msra.mxu0 0.0
  %822 = vmatprep.subr.mxu0 0.0
  %823 = vmatpush1.msra.mxu0 0.0
  %824 = vmatprep.subr.mxu0 0.0
  %825 = vmatpush1.msra.mxu0 0.0
  %826 = vmatprep.subr.mxu0 0.0
  %827 = vmatpush1.msra.mxu0 0.0
  %828 = vmatprep.subr.mxu0 0.0
  %829 = vmatpush1.msra.mxu0 0.0
  %830 = vmatprep.subr.mxu0 0.0
  %831 = vmatpush1.msra.mxu0 0.0
  %832 = vmatprep.subr.mxu0 0.0
  %833 = vmatpush1.msra.mxu0 0.0
  %834 = vmatprep.subr.mxu0 0.0
  %835 = vmatpush1.msra.mxu0 0.0
  %836 = vmatprep.subr.mxu0 0.0
  %837 = vmatpush1.msra.mxu0 0.0
  %838 = vmatprep.subr.mxu0 0.0
  %839 = vmatpush1.msra.mxu0 0.0
  %840 = vmatprep.subr.mxu0 0.0
  %841 = vmatpush1.msra.mxu0 0.0
  %842 = vmatprep.subr.mxu0 0.0
  %843 = vmatpush1.msra.mxu0 0.0
  %844 = vmatprep.subr.mxu0 0.0
  %845 = vmatpush1.msra.mxu0 0.0
  %846 = vmatprep.subr.mxu0 0.0
  %847 = vmatpush1.msra.mxu0 0.0
  %848 = vmatprep.subr.mxu0 0.0
  %849 = vmatpush1.msra.mxu0 0.0
  %850 = vmatprep.subr.mxu0 0.0
  %851 = vmatpush1.msra.mxu0 0.0
  %852 = vmatprep.subr.mxu0 0.0
  %853 = vmatpush1.msra.mxu0 0.0
  %854 = vmatprep.subr.mxu0 0.0
  %855 = vmatpush1.msra.mxu0 0.0
  %856 = vmatprep.subr.mxu0 0.0
  %857 = vmatpush1.msra.mxu0 0.0
  %858 = vmatprep.mubr.f32.mxu0 0.0
  %859 = vmatmul.mubr.f32.gmra.mrb[0].mxu0 %v778
  %v860 = vpop.f32.mrb[0].mxu0
  %v861 = vadd.f32 0.0, %v860
  %v862 = vpop.f32.mrb[0].mxu0
  %863 = vmatprep.mubr.f32.mxu0 0.0
  %864 = vmatmul.mubr.f32.gmra.mrb[0].mxu0 %v781
  %v865 = vpop.f32.mrb[0].mxu0
  %v866 = vadd.f32 0.0, %v865
  %v867 = vpop.f32.mrb[0].mxu0
  %868 = vmatprep.mubr.f32.mxu0 0.0
  %869 = vmatmul.mubr.f32.gmra.mrb[0].mxu0 %v784
  %v870 = vpop.f32.mrb[0].mxu0
  %v871 = vadd.f32 0.0, %v870
  %v872 = vpop.f32.mrb[0].mxu0
  %873 = vmatprep.mubr.f32.mxu0 0.0
  %874 = vmatmul.mubr.f32.gmra.mrb[0].mxu0 %v787
  %v875 = vpop.f32.mrb[0].mxu0
  %v876 = vadd.f32 0.0, %v875
  %v877 = vpop.f32.mrb[0].mxu0
  %878 = vmatprep.mubr.f32.mxu0 0.0
  %879 = vmatmul.mubr.f32.gmra.mrb[0].mxu0 %v790
  %v880 = vpop.f32.mrb[0].mxu0
  %v881 = vadd.f32 0.0, %v880
  %v882 = vpop.f32.mrb[0].mxu0
  %883 = vdwg.mxu0
  %v885 = vsel %vm268, %v861, 0
  %v888 = vsel %vm268, %v866, 0
  %v891 = vsel %vm268, %v871, 0
  %v894 = vsel %vm268, %v876, 0
  %v897 = vsel %vm268, %v881, 0
  %899 = vmatprep.subr.mxu0 0.0
  %900 = vmatpush1.msra.mxu0 %v250
  %901 = vmatprep.subr.mxu0 0.0
  %902 = vmatpush1.msra.mxu0 0.0
  %903 = vmatprep.subr.mxu0 0.0
  %904 = vmatpush1.msra.mxu0 0.0
  %905 = vmatprep.subr.mxu0 0.0
  %906 = vmatpush1.msra.mxu0 0.0
  %907 = vmatprep.subr.mxu0 0.0
  %908 = vmatpush1.msra.mxu0 0.0
  %909 = vmatprep.subr.mxu0 0.0
  %910 = vmatpush1.msra.mxu0 0.0
  %911 = vmatprep.subr.mxu0 0.0
  %912 = vmatpush1.msra.mxu0 0.0
  %913 = vmatprep.subr.mxu0 0.0
  %914 = vmatpush1.msra.mxu0 0.0
  %915 = vmatprep.subr.mxu0 0.0
  %916 = vmatpush1.msra.mxu0 0.0
  %917 = vmatprep.subr.mxu0 0.0
  %918 = vmatpush1.msra.mxu0 0.0
  %919 = vmatprep.subr.mxu0 0.0
  %920 = vmatpush1.msra.mxu0 0.0
  %921 = vmatprep.subr.mxu0 0.0
  %922 = vmatpush1.msra.mxu0 0.0
  %923 = vmatprep.subr.mxu0 0.0
  %924 = vmatpush1.msra.mxu0 0.0
  %925 = vmatprep.subr.mxu0 0.0
  %926 = vmatpush1.msra.mxu0 0.0
  %927 = vmatprep.subr.mxu0 0.0
  %928 = vmatpush1.msra.mxu0 0.0
  %929 = vmatprep.subr.mxu0 0.0
  %930 = vmatpush1.msra.mxu0 0.0
  %931 = vmatprep.subr.mxu0 0.0
  %932 = vmatpush1.msra.mxu0 0.0
  %933 = vmatprep.subr.mxu0 0.0
  %934 = vmatpush1.msra.mxu0 0.0
  %935 = vmatprep.subr.mxu0 0.0
  %936 = vmatpush1.msra.mxu0 0.0
  %937 = vmatprep.subr.mxu0 0.0
  %938 = vmatpush1.msra.mxu0 0.0
  %939 = vmatprep.subr.mxu0 0.0
  %940 = vmatpush1.msra.mxu0 0.0
  %941 = vmatprep.subr.mxu0 0.0
  %942 = vmatpush1.msra.mxu0 0.0
  %943 = vmatprep.subr.mxu0 0.0
  %944 = vmatpush1.msra.mxu0 0.0
  %945 = vmatprep.subr.mxu0 0.0
  %946 = vmatpush1.msra.mxu0 0.0
  %947 = vmatprep.subr.mxu0 0.0
  %948 = vmatpush1.msra.mxu0 0.0
  %949 = vmatprep.subr.mxu0 0.0
  %950 = vmatpush1.msra.mxu0 0.0
  %951 = vmatprep.subr.mxu0 0.0
  %952 = vmatpush1.msra.mxu0 0.0
  %953 = vmatprep.subr.mxu0 0.0
  %954 = vmatpush1.msra.mxu0 0.0
  %955 = vmatprep.subr.mxu0 0.0
  %956 = vmatpush1.msra.mxu0 0.0
  %957 = vmatprep.subr.mxu0 0.0
  %958 = vmatpush1.msra.mxu0 0.0
  %959 = vmatprep.subr.mxu0 0.0
  %960 = vmatpush1.msra.mxu0 0.0
  %961 = vmatprep.subr.mxu0 0.0
  %962 = vmatpush1.msra.mxu0 0.0
  %963 = vmatprep.mubr.f32.mxu0 0.0
  %964 = vmatmul.mubr.f32.gmra.mrb[0].mxu0 %v885
  %v965 = vpop.f32.mrb[0].mxu0
  %v966 = vadd.f32 0.0, %v965
  %v967 = vpop.f32.mrb[0].mxu0
  %968 = vmatprep.mubr.f32.mxu0 0.0
  %969 = vmatmul.mubr.f32.gmra.mrb[0].mxu0 %v888
  %v970 = vpop.f32.mrb[0].mxu0
  %v971 = vadd.f32 0.0, %v970
  %v972 = vpop.f32.mrb[0].mxu0
  %973 = vmatprep.mubr.f32.mxu0 0.0
  %974 = vmatmul.mubr.f32.gmra.mrb[0].mxu0 %v891
  %v975 = vpop.f32.mrb[0].mxu0
  %v976 = vadd.f32 0.0, %v975
  %v977 = vpop.f32.mrb[0].mxu0
  %978 = vmatprep.mubr.f32.mxu0 0.0
  %979 = vmatmul.mubr.f32.gmra.mrb[0].mxu0 %v894
  %v980 = vpop.f32.mrb[0].mxu0
  %v981 = vadd.f32 0.0, %v980
  %v982 = vpop.f32.mrb[0].mxu0
  %983 = vmatprep.mubr.f32.mxu0 0.0
  %984 = vmatmul.mubr.f32.gmra.mrb[0].mxu0 %v897
  %v985 = vpop.f32.mrb[0].mxu0
  %v986 = vadd.f32 0.0, %v985
  %v987 = vpop.f32.mrb[0].mxu0
  %988 = vdwg.mxu0
  %v990 = vsel %vm268, %v545, 0
  %v993 = vsel %vm268, %v550, 0
  %v996 = vsel %vm268, %v555, 0
  %v999 = vsel %vm268, %v560, 0
  %v1002 = vsel %vm268, %v565, 0
  %1004 = vmatprep.subr.mxu0 0.0
  %1005 = vmatpush1.msra.mxu0 %v249
  %1006 = vmatprep.subr.mxu0 0.0
  %1007 = vmatpush1.msra.mxu0 0.0
  %1008 = vmatprep.subr.mxu0 0.0
  %1009 = vmatpush1.msra.mxu0 0.0
  %1010 = vmatprep.subr.mxu0 0.0
  %1011 = vmatpush1.msra.mxu0 0.0
  %1012 = vmatprep.subr.mxu0 0.0
  %1013 = vmatpush1.msra.mxu0 0.0
  %1014 = vmatprep.subr.mxu0 0.0
  %1015 = vmatpush1.msra.mxu0 0.0
  %1016 = vmatprep.subr.mxu0 0.0
  %1017 = vmatpush1.msra.mxu0 0.0
  %1018 = vmatprep.subr.mxu0 0.0
  %1019 = vmatpush1.msra.mxu0 0.0
  %1020 = vmatprep.subr.mxu0 0.0
  %1021 = vmatpush1.msra.mxu0 0.0
  %1022 = vmatprep.subr.mxu0 0.0
  %1023 = vmatpush1.msra.mxu0 0.0
  %1024 = vmatprep.subr.mxu0 0.0
  %1025 = vmatpush1.msra.mxu0 0.0
  %1026 = vmatprep.subr.mxu0 0.0
  %1027 = vmatpush1.msra.mxu0 0.0
  %1028 = vmatprep.subr.mxu0 0.0
  %1029 = vmatpush1.msra.mxu0 0.0
  %1030 = vmatprep.subr.mxu0 0.0
  %1031 = vmatpush1.msra.mxu0 0.0
  %1032 = vmatprep.subr.mxu0 0.0
  %1033 = vmatpush1.msra.mxu0 0.0
  %1034 = vmatprep.subr.mxu0 0.0
  %1035 = vmatpush1.msra.mxu0 0.0
  %1036 = vmatprep.subr.mxu0 0.0
  %1037 = vmatpush1.msra.mxu0 0.0
  %1038 = vmatprep.subr.mxu0 0.0
  %1039 = vmatpush1.msra.mxu0 0.0
  %1040 = vmatprep.subr.mxu0 0.0
  %1041 = vmatpush1.msra.mxu0 0.0
  %1042 = vmatprep.subr.mxu0 0.0
  %1043 = vmatpush1.msra.mxu0 0.0
  %1044 = vmatprep.subr.mxu0 0.0
  %1045 = vmatpush1.msra.mxu0 0.0
  %1046 = vmatprep.subr.mxu0 0.0
  %1047 = vmatpush1.msra.mxu0 0.0
  %1048 = vmatprep.subr.mxu0 0.0
  %1049 = vmatpush1.msra.mxu0 0.0
  %1050 = vmatprep.subr.mxu0 0.0
  %1051 = vmatpush1.msra.mxu0 0.0
  %1052 = vmatprep.subr.mxu0 0.0
  %1053 = vmatpush1.msra.mxu0 0.0
  %1054 = vmatprep.subr.mxu0 0.0
  %1055 = vmatpush1.msra.mxu0 0.0
  %1056 = vmatprep.subr.mxu0 0.0
  %1057 = vmatpush1.msra.mxu0 0.0
  %1058 = vmatprep.subr.mxu0 0.0
  %1059 = vmatpush1.msra.mxu0 0.0
  %1060 = vmatprep.subr.mxu0 0.0
  %1061 = vmatpush1.msra.mxu0 0.0
  %1062 = vmatprep.subr.mxu0 0.0
  %1063 = vmatpush1.msra.mxu0 0.0
  %1064 = vmatprep.subr.mxu0 0.0
  %1065 = vmatpush1.msra.mxu0 0.0
  %1066 = vmatprep.subr.mxu0 0.0
  %1067 = vmatpush1.msra.mxu0 0.0
  %1068 = vmatprep.mubr.f32.mxu0 0.0
  %1069 = vmatmul.mubr.f32.gmra.mrb[0].mxu0 %v990
  %v1070 = vpop.f32.mrb[0].mxu0
  %v1071 = vadd.f32 %v966, %v1070
  %v1072 = vpop.f32.mrb[0].mxu0
  %1073 = vmatprep.mubr.f32.mxu0 0.0
  %1074 = vmatmul.mubr.f32.gmra.mrb[0].mxu0 %v993
  %v1075 = vpop.f32.mrb[0].mxu0
  %v1076 = vadd.f32 %v971, %v1075
  %v1077 = vpop.f32.mrb[0].mxu0
  %1078 = vmatprep.mubr.f32.mxu0 0.0
  %1079 = vmatmul.mubr.f32.gmra.mrb[0].mxu0 %v996
  %v1080 = vpop.f32.mrb[0].mxu0
  %v1081 = vadd.f32 %v976, %v1080
  %v1082 = vpop.f32.mrb[0].mxu0
  %1083 = vmatprep.mubr.f32.mxu0 0.0
  %1084 = vmatmul.mubr.f32.gmra.mrb[0].mxu0 %v999
  %v1085 = vpop.f32.mrb[0].mxu0
  %v1086 = vadd.f32 %v981, %v1085
  %v1087 = vpop.f32.mrb[0].mxu0
  %1088 = vmatprep.mubr.f32.mxu0 0.0
  %1089 = vmatmul.mubr.f32.gmra.mrb[0].mxu0 %v1002
  %v1090 = vpop.f32.mrb[0].mxu0
  %v1091 = vadd.f32 %v986, %v1090
  %v1092 = vpop.f32.mrb[0].mxu0
  %1093 = vdwg.mxu0
  %1094 = vrot.lane.b32.xlu0 %v221, 112
  %v1095 = vpop.permute.xlu0 %1094
  %1096 = vrot.lane.b32.xlu0 %v226, 112
  %v1097 = vpop.permute.xlu0 %1096
  %1098 = vrot.lane.b32.xlu0 %v231, 112
  %v1099 = vpop.permute.xlu0 %1098
  %1100 = vrot.lane.b32.xlu0 %v236, 112
  %v1101 = vpop.permute.xlu0 %1100
  %1102 = vrot.lane.b32.xlu0 %v241, 112
  %v1103 = vpop.permute.xlu0 %1102
  %1104 = vrot.lane.b32.xlu0 %v221, 80
  %v1105 = vpop.permute.xlu0 %1104
  %1106 = vrot.lane.b32.xlu0 %v226, 80
  %v1107 = vpop.permute.xlu0 %1106
  %1108 = vrot.lane.b32.xlu0 %v231, 80
  %v1109 = vpop.permute.xlu0 %1108
  %1110 = vrot.lane.b32.xlu0 %v236, 80
  %v1111 = vpop.permute.xlu0 %1110
  %1112 = vrot.lane.b32.xlu0 %v241, 80
  %v1113 = vpop.permute.xlu0 %1112
  %v1114 = vsel %vm268, %v1095, 0
  %v1116 = vsel %vm268, %v1097, 0
  %v1118 = vsel %vm268, %v1099, 0
  %v1120 = vsel %vm268, %v1101, 0
  %v1122 = vsel %vm268, %v1103, 0
  %v1124 = vsel %vm268, %v1105, 0
  %v1126 = vsel %vm268, %v1107, 0
  %v1128 = vsel %vm268, %v1109, 0
  %v1130 = vsel %vm268, %v1111, 0
  %v1132 = vsel %vm268, %v1113, 0
  %1134 = vmatprep.subr.mxu0 0.0
  %1135 = vmatpush1.xpose.msra.mxu0 %v1124
  %1136 = vmatprep.subr.mxu0 0.0
  %1137 = vmatpush1.xpose.msra.mxu0 %v1126
  %1138 = vmatprep.subr.mxu0 0.0
  %1139 = vmatpush1.xpose.msra.mxu0 %v1128
  %1140 = vmatprep.subr.mxu0 0.0
  %1141 = vmatpush1.xpose.msra.mxu0 %v1130
  %1142 = vmatprep.subr.mxu0 0.0
  %1143 = vmatpush1.xpose.msra.mxu0 %v1132
  %1144 = vmatprep.subr.mxu0 0.0
  %1145 = vmatpush1.xpose.msra.mxu0 0.0
  %1146 = vmatprep.subr.mxu0 0.0
  %1147 = vmatpush1.xpose.msra.mxu0 0.0
  %1148 = vmatprep.subr.mxu0 0.0
  %1149 = vmatpush1.xpose.msra.mxu0 0.0
  %1150 = vmatprep.subr.mxu0 0.0
  %1151 = vmatpush1.xpose.msra.mxu0 0.0
  %1152 = vmatprep.subr.mxu0 0.0
  %1153 = vmatpush1.xpose.msra.mxu0 0.0
  %1154 = vmatprep.subr.mxu0 0.0
  %1155 = vmatpush1.xpose.msra.mxu0 0.0
  %1156 = vmatprep.subr.mxu0 0.0
  %1157 = vmatpush1.xpose.msra.mxu0 0.0
  %1158 = vmatprep.subr.mxu0 0.0
  %1159 = vmatpush1.xpose.msra.mxu0 0.0
  %1160 = vmatprep.subr.mxu0 0.0
  %1161 = vmatpush1.xpose.msra.mxu0 0.0
  %1162 = vmatprep.subr.mxu0 0.0
  %1163 = vmatpush1.xpose.msra.mxu0 0.0
  %1164 = vmatprep.subr.mxu0 0.0
  %1165 = vmatpush1.xpose.msra.mxu0 0.0
  %1166 = vmatprep.subr.mxu0 0.0
  %1167 = vmatpush1.xpose.msra.mxu0 0.0
  %1168 = vmatprep.subr.mxu0 0.0
  %1169 = vmatpush1.xpose.msra.mxu0 0.0
  %1170 = vmatprep.subr.mxu0 0.0
  %1171 = vmatpush1.xpose.msra.mxu0 0.0
  %1172 = vmatprep.subr.mxu0 0.0
  %1173 = vmatpush1.xpose.msra.mxu0 0.0
  %1174 = vmatprep.subr.mxu0 0.0
  %1175 = vmatpush1.xpose.msra.mxu0 0.0
  %1176 = vmatprep.subr.mxu0 0.0
  %1177 = vmatpush1.xpose.msra.mxu0 0.0
  %1178 = vmatprep.subr.mxu0 0.0
  %1179 = vmatpush1.xpose.msra.mxu0 0.0
  %1180 = vmatprep.subr.mxu0 0.0
  %1181 = vmatpush1.xpose.msra.mxu0 0.0
  %1182 = vmatprep.subr.mxu0 0.0
  %1183 = vmatpush1.xpose.msra.mxu0 0.0
  %1184 = vmatprep.subr.mxu0 0.0
  %1185 = vmatpush1.xpose.msra.mxu0 0.0
  %1186 = vmatprep.subr.mxu0 0.0
  %1187 = vmatpush1.xpose.msra.mxu0 0.0
  %1188 = vmatprep.subr.mxu0 0.0
  %1189 = vmatpush1.xpose.msra.mxu0 0.0
  %1190 = vmatprep.subr.mxu0 0.0
  %1191 = vmatpush1.xpose.msra.mxu0 0.0
  %1192 = vmatprep.subr.mxu0 0.0
  %1193 = vmatpush1.xpose.msra.mxu0 0.0
  %1194 = vmatprep.subr.mxu0 0.0
  %1195 = vmatpush1.xpose.msra.mxu0 0.0
  %1196 = vmatprep.subr.mxu0 0.0
  %1197 = vmatpush1.xpose.msra.mxu0 0.0
  %1198 = vmatprep.mubr.f32.mxu0 0.0
  %1199 = vmatmul.mubr.f32.gmra.mrb[0].mxu0 %v1114
  %v1200 = vpop.f32.mrb[0].mxu0
  %v1201 = vadd.f32 0.0, %v1200
  %v1202 = vpop.f32.mrb[0].mxu0
  %1203 = vmatprep.mubr.f32.mxu0 0.0
  %1204 = vmatmul.mubr.f32.gmra.mrb[0].mxu0 %v1116
  %v1205 = vpop.f32.mrb[0].mxu0
  %v1206 = vadd.f32 0.0, %v1205
  %v1207 = vpop.f32.mrb[0].mxu0
  %1208 = vmatprep.mubr.f32.mxu0 0.0
  %1209 = vmatmul.mubr.f32.gmra.mrb[0].mxu0 %v1118
  %v1210 = vpop.f32.mrb[0].mxu0
  %v1211 = vadd.f32 0.0, %v1210
  %v1212 = vpop.f32.mrb[0].mxu0
  %1213 = vmatprep.mubr.f32.mxu0 0.0
  %1214 = vmatmul.mubr.f32.gmra.mrb[0].mxu0 %v1120
  %v1215 = vpop.f32.mrb[0].mxu0
  %v1216 = vadd.f32 0.0, %v1215
  %v1217 = vpop.f32.mrb[0].mxu0
  %1218 = vmatprep.mubr.f32.mxu0 0.0
  %1219 = vmatmul.mubr.f32.gmra.mrb[0].mxu0 %v1122
  %v1220 = vpop.f32.mrb[0].mxu0
  %v1221 = vadd.f32 0.0, %v1220
  %v1222 = vpop.f32.mrb[0].mxu0
  %1223 = vdwg.mxu0
  %v1224 = vmul.f32 %v1201, 0.35355338
  %v1225 = vmul.f32 %v1206, 0.35355338
  %v1226 = vmul.f32 %v1211, 0.35355338
  %v1227 = vmul.f32 %v1216, 0.35355338
  %v1228 = vmul.f32 %v1221, 0.35355338
  %v1229 = vadd.f32 %v1224, %v244
  %v1230 = vadd.f32 %v1225, %v245
  %v1231 = vadd.f32 %v1226, %v246
  %v1232 = vadd.f32 %v1227, %v247
  %v1233 = vadd.f32 %v1228, %v248
  %v1234 = vsel %vm389, %v1229, -inf
  %1235 = vmax.xlane.f32.xlu0 %v1234
  %v1236 = vpop.xlane.xlu0 %1235
  %v1237 = vsel %vm389, %v1230, -inf
  %1238 = vmax.xlane.f32.xlu0 %v1237
  %v1239 = vpop.xlane.xlu0 %1238
  %v1240 = vsel %vm389, %v1231, -inf
  %1241 = vmax.xlane.f32.xlu0 %v1240
  %v1242 = vpop.xlane.xlu0 %1241
  %v1243 = vsel %vm389, %v1232, -inf
  %1244 = vmax.xlane.f32.xlu0 %v1243
  %v1245 = vpop.xlane.xlu0 %1244
  %v1246 = vsel %vm402, %v1233, -inf
  %1247 = vmax.xlane.f32.xlu0 %v1246
  %v1248 = vpop.xlane.xlu0 %1247
  %v1249 = vsub.f32 %v1229, %v1236
  %v1250 = vsub.f32 %v1230, %v1239
  %v1251 = vsub.f32 %v1231, %v1242
  %v1252 = vsub.f32 %v1232, %v1245
  %v1253 = vsub.f32 %v1233, %v1248
  %v1254 = vmul.f32 %v1249, 1.442695
  %v1255 = vpow.pop %v1254
  %v1256 = vmul.f32 %v1250, 1.442695
  %v1257 = vpow.pop %v1256
  %v1258 = vmul.f32 %v1251, 1.442695
  %v1259 = vpow.pop %v1258
  %v1260 = vmul.f32 %v1252, 1.442695
  %v1261 = vpow.pop %v1260
  %v1262 = vmul.f32 %v1253, 1.442695
  %v1263 = vpow.pop %v1262
  %v1264 = vsel %vm389, %v1255, 0.0
  %1265 = vadd.xlane.f32.xlu0 %v1264
  %v1266 = vpop.xlane.xlu0 %1265
  %v1267 = vsel %vm389, %v1257, 0.0
  %1268 = vadd.xlane.f32.xlu0 %v1267
  %v1269 = vpop.xlane.xlu0 %1268
  %v1270 = vsel %vm389, %v1259, 0.0
  %1271 = vadd.xlane.f32.xlu0 %v1270
  %v1272 = vpop.xlane.xlu0 %1271
  %v1273 = vsel %vm389, %v1261, 0.0
  %1274 = vadd.xlane.f32.xlu0 %v1273
  %v1275 = vpop.xlane.xlu0 %1274
  %v1276 = vsel %vm402, %v1263, 0.0
  %1277 = vadd.xlane.f32.xlu0 %v1276
  %v1278 = vpop.xlane.xlu0 %1277
  %v1279 = vrcp.pop %v1266
  %v1280 = vmul.f32 %v1255, %v1279
  %v1281 = vrcp.pop %v1269
  %v1282 = vmul.f32 %v1257, %v1281
  %v1283 = vrcp.pop %v1272
  %v1284 = vmul.f32 %v1259, %v1283
  %v1285 = vrcp.pop %v1275
  %v1286 = vmul.f32 %v1261, %v1285
  %v1287 = vrcp.pop %v1278
  %v1288 = vmul.f32 %v1263, %v1287
  %1289 = vrot.lane.b32.xlu0 %v221, 48
  %v1290 = vpop.permute.xlu0 %1289
  %1291 = vrot.lane.b32.xlu0 %v226, 48
  %v1292 = vpop.permute.xlu0 %1291
  %1293 = vrot.lane.b32.xlu0 %v231, 48
  %v1294 = vpop.permute.xlu0 %1293
  %1295 = vrot.lane.b32.xlu0 %v236, 48
  %v1296 = vpop.permute.xlu0 %1295
  %1297 = vrot.lane.b32.xlu0 %v241, 48
  %v1298 = vpop.permute.xlu0 %1297
  %v1304 = vsel %vm389, %v1280, 0
  %v1307 = vsel %vm389, %v1282, 0
  %v1310 = vsel %vm389, %v1284, 0
  %v1313 = vsel %vm389, %v1286, 0
  %v1316 = vsel %vm389, %v1288, 0
  %v1318 = vsel %vm475, %v1298, 0
  %1320 = vmatprep.subr.mxu0 0.0
  %1321 = vmatpush1.msra.mxu0 %v1290
  %1322 = vmatprep.subr.mxu0 0.0
  %1323 = vmatpush1.msra.mxu0 %v1292
  %1324 = vmatprep.subr.mxu0 0.0
  %1325 = vmatpush1.msra.mxu0 %v1294
  %1326 = vmatprep.subr.mxu0 0.0
  %1327 = vmatpush1.msra.mxu0 %v1296
  %1328 = vmatprep.subr.mxu0 0.0
  %1329 = vmatpush1.msra.mxu0 %v1318
  %1330 = vmatprep.subr.mxu0 0.0
  %1331 = vmatpush1.msra.mxu0 0.0
  %1332 = vmatprep.subr.mxu0 0.0
  %1333 = vmatpush1.msra.mxu0 0.0
  %1334 = vmatprep.subr.mxu0 0.0
  %1335 = vmatpush1.msra.mxu0 0.0
  %1336 = vmatprep.subr.mxu0 0.0
  %1337 = vmatpush1.msra.mxu0 0.0
  %1338 = vmatprep.subr.mxu0 0.0
  %1339 = vmatpush1.msra.mxu0 0.0
  %1340 = vmatprep.subr.mxu0 0.0
  %1341 = vmatpush1.msra.mxu0 0.0
  %1342 = vmatprep.subr.mxu0 0.0
  %1343 = vmatpush1.msra.mxu0 0.0
  %1344 = vmatprep.subr.mxu0 0.0
  %1345 = vmatpush1.msra.mxu0 0.0
  %1346 = vmatprep.subr.mxu0 0.0
  %1347 = vmatpush1.msra.mxu0 0.0
  %1348 = vmatprep.subr.mxu0 0.0
  %1349 = vmatpush1.msra.mxu0 0.0
  %1350 = vmatprep.subr.mxu0 0.0
  %1351 = vmatpush1.msra.mxu0 0.0
  %1352 = vmatprep.subr.mxu0 0.0
  %1353 = vmatpush1.msra.mxu0 0.0
  %1354 = vmatprep.subr.mxu0 0.0
  %1355 = vmatpush1.msra.mxu0 0.0
  %1356 = vmatprep.subr.mxu0 0.0
  %1357 = vmatpush1.msra.mxu0 0.0
  %1358 = vmatprep.subr.mxu0 0.0
  %1359 = vmatpush1.msra.mxu0 0.0
  %1360 = vmatprep.subr.mxu0 0.0
  %1361 = vmatpush1.msra.mxu0 0.0
  %1362 = vmatprep.subr.mxu0 0.0
  %1363 = vmatpush1.msra.mxu0 0.0
  %1364 = vmatprep.subr.mxu0 0.0
  %1365 = vmatpush1.msra.mxu0 0.0
  %1366 = vmatprep.subr.mxu0 0.0
  %1367 = vmatpush1.msra.mxu0 0.0
  %1368 = vmatprep.subr.mxu0 0.0
  %1369 = vmatpush1.msra.mxu0 0.0
  %1370 = vmatprep.subr.mxu0 0.0
  %1371 = vmatpush1.msra.mxu0 0.0
  %1372 = vmatprep.subr.mxu0 0.0
  %1373 = vmatpush1.msra.mxu0 0.0
  %1374 = vmatprep.subr.mxu0 0.0
  %1375 = vmatpush1.msra.mxu0 0.0
  %1376 = vmatprep.subr.mxu0 0.0
  %1377 = vmatpush1.msra.mxu0 0.0
  %1378 = vmatprep.subr.mxu0 0.0
  %1379 = vmatpush1.msra.mxu0 0.0
  %1380 = vmatprep.subr.mxu0 0.0
  %1381 = vmatpush1.msra.mxu0 0.0
  %1382 = vmatprep.subr.mxu0 0.0
  %1383 = vmatpush1.msra.mxu0 0.0
  %1384 = vmatprep.mubr.f32.mxu0 0.0
  %1385 = vmatmul.mubr.f32.gmra.mrb[0].mxu0 %v1304
  %v1386 = vpop.f32.mrb[0].mxu0
  %v1387 = vadd.f32 0.0, %v1386
  %v1388 = vpop.f32.mrb[0].mxu0
  %1389 = vmatprep.mubr.f32.mxu0 0.0
  %1390 = vmatmul.mubr.f32.gmra.mrb[0].mxu0 %v1307
  %v1391 = vpop.f32.mrb[0].mxu0
  %v1392 = vadd.f32 0.0, %v1391
  %v1393 = vpop.f32.mrb[0].mxu0
  %1394 = vmatprep.mubr.f32.mxu0 0.0
  %1395 = vmatmul.mubr.f32.gmra.mrb[0].mxu0 %v1310
  %v1396 = vpop.f32.mrb[0].mxu0
  %v1397 = vadd.f32 0.0, %v1396
  %v1398 = vpop.f32.mrb[0].mxu0
  %1399 = vmatprep.mubr.f32.mxu0 0.0
  %1400 = vmatmul.mubr.f32.gmra.mrb[0].mxu0 %v1313
  %v1401 = vpop.f32.mrb[0].mxu0
  %v1402 = vadd.f32 0.0, %v1401
  %v1403 = vpop.f32.mrb[0].mxu0
  %1404 = vmatprep.mubr.f32.mxu0 0.0
  %1405 = vmatmul.mubr.f32.gmra.mrb[0].mxu0 %v1316
  %v1406 = vpop.f32.mrb[0].mxu0
  %v1407 = vadd.f32 0.0, %v1406
  %v1408 = vpop.f32.mrb[0].mxu0
  %1409 = vdwg.mxu0
  %v1411 = vsel %vm268, %v1387, 0
  %v1414 = vsel %vm268, %v1392, 0
  %v1417 = vsel %vm268, %v1397, 0
  %v1420 = vsel %vm268, %v1402, 0
  %v1423 = vsel %vm268, %v1407, 0
  %1425 = vmatprep.subr.mxu0 0.0
  %1426 = vmatpush1.msra.mxu0 %v251
  %1427 = vmatprep.subr.mxu0 0.0
  %1428 = vmatpush1.msra.mxu0 0.0
  %1429 = vmatprep.subr.mxu0 0.0
  %1430 = vmatpush1.msra.mxu0 0.0
  %1431 = vmatprep.subr.mxu0 0.0
  %1432 = vmatpush1.msra.mxu0 0.0
  %1433 = vmatprep.subr.mxu0 0.0
  %1434 = vmatpush1.msra.mxu0 0.0
  %1435 = vmatprep.subr.mxu0 0.0
  %1436 = vmatpush1.msra.mxu0 0.0
  %1437 = vmatprep.subr.mxu0 0.0
  %1438 = vmatpush1.msra.mxu0 0.0
  %1439 = vmatprep.subr.mxu0 0.0
  %1440 = vmatpush1.msra.mxu0 0.0
  %1441 = vmatprep.subr.mxu0 0.0
  %1442 = vmatpush1.msra.mxu0 0.0
  %1443 = vmatprep.subr.mxu0 0.0
  %1444 = vmatpush1.msra.mxu0 0.0
  %1445 = vmatprep.subr.mxu0 0.0
  %1446 = vmatpush1.msra.mxu0 0.0
  %1447 = vmatprep.subr.mxu0 0.0
  %1448 = vmatpush1.msra.mxu0 0.0
  %1449 = vmatprep.subr.mxu0 0.0
  %1450 = vmatpush1.msra.mxu0 0.0
  %1451 = vmatprep.subr.mxu0 0.0
  %1452 = vmatpush1.msra.mxu0 0.0
  %1453 = vmatprep.subr.mxu0 0.0
  %1454 = vmatpush1.msra.mxu0 0.0
  %1455 = vmatprep.subr.mxu0 0.0
  %1456 = vmatpush1.msra.mxu0 0.0
  %1457 = vmatprep.subr.mxu0 0.0
  %1458 = vmatpush1.msra.mxu0 0.0
  %1459 = vmatprep.subr.mxu0 0.0
  %1460 = vmatpush1.msra.mxu0 0.0
  %1461 = vmatprep.subr.mxu0 0.0
  %1462 = vmatpush1.msra.mxu0 0.0
  %1463 = vmatprep.subr.mxu0 0.0
  %1464 = vmatpush1.msra.mxu0 0.0
  %1465 = vmatprep.subr.mxu0 0.0
  %1466 = vmatpush1.msra.mxu0 0.0
  %1467 = vmatprep.subr.mxu0 0.0
  %1468 = vmatpush1.msra.mxu0 0.0
  %1469 = vmatprep.subr.mxu0 0.0
  %1470 = vmatpush1.msra.mxu0 0.0
  %1471 = vmatprep.subr.mxu0 0.0
  %1472 = vmatpush1.msra.mxu0 0.0
  %1473 = vmatprep.subr.mxu0 0.0
  %1474 = vmatpush1.msra.mxu0 0.0
  %1475 = vmatprep.subr.mxu0 0.0
  %1476 = vmatpush1.msra.mxu0 0.0
  %1477 = vmatprep.subr.mxu0 0.0
  %1478 = vmatpush1.msra.mxu0 0.0
  %1479 = vmatprep.subr.mxu0 0.0
  %1480 = vmatpush1.msra.mxu0 0.0
  %1481 = vmatprep.subr.mxu0 0.0
  %1482 = vmatpush1.msra.mxu0 0.0
  %1483 = vmatprep.subr.mxu0 0.0
  %1484 = vmatpush1.msra.mxu0 0.0
  %1485 = vmatprep.subr.mxu0 0.0
  %1486 = vmatpush1.msra.mxu0 0.0
  %1487 = vmatprep.subr.mxu0 0.0
  %1488 = vmatpush1.msra.mxu0 0.0
  %1489 = vmatprep.mubr.f32.mxu0 0.0
  %1490 = vmatmul.mubr.f32.gmra.mrb[0].mxu0 %v1411
  %v1491 = vpop.f32.mrb[0].mxu0
  %v1492 = vadd.f32 0.0, %v1491
  %v1493 = vpop.f32.mrb[0].mxu0
  %1494 = vmatprep.mubr.f32.mxu0 0.0
  %1495 = vmatmul.mubr.f32.gmra.mrb[0].mxu0 %v1414
  %v1496 = vpop.f32.mrb[0].mxu0
  %v1497 = vadd.f32 0.0, %v1496
  %v1498 = vpop.f32.mrb[0].mxu0
  %1499 = vmatprep.mubr.f32.mxu0 0.0
  %1500 = vmatmul.mubr.f32.gmra.mrb[0].mxu0 %v1417
  %v1501 = vpop.f32.mrb[0].mxu0
  %v1502 = vadd.f32 0.0, %v1501
  %v1503 = vpop.f32.mrb[0].mxu0
  %1504 = vmatprep.mubr.f32.mxu0 0.0
  %1505 = vmatmul.mubr.f32.gmra.mrb[0].mxu0 %v1420
  %v1506 = vpop.f32.mrb[0].mxu0
  %v1507 = vadd.f32 0.0, %v1506
  %v1508 = vpop.f32.mrb[0].mxu0
  %1509 = vmatprep.mubr.f32.mxu0 0.0
  %1510 = vmatmul.mubr.f32.gmra.mrb[0].mxu0 %v1423
  %v1511 = vpop.f32.mrb[0].mxu0
  %v1512 = vadd.f32 0.0, %v1511
  %v1513 = vpop.f32.mrb[0].mxu0
  %1514 = vdwg.mxu0
  %v1515 = vadd.f32 %v1071, %v1492
  %v1516 = vadd.f32 %v1076, %v1497
  %v1517 = vadd.f32 %v1081, %v1502
  %v1518 = vadd.f32 %v1086, %v1507
  %v1519 = vadd.f32 %v1091, %v1512
  %1520 = vrot.lane.b32.xlu0 %v221, 104
  %v1521 = vpop.permute.xlu0 %1520
  %1522 = vrot.lane.b32.xlu0 %v226, 104
  %v1523 = vpop.permute.xlu0 %1522
  %1524 = vrot.lane.b32.xlu0 %v231, 104
  %v1525 = vpop.permute.xlu0 %1524
  %1526 = vrot.lane.b32.xlu0 %v236, 104
  %v1527 = vpop.permute.xlu0 %1526
  %1528 = vrot.lane.b32.xlu0 %v241, 104
  %v1529 = vpop.permute.xlu0 %1528
  %1530 = vrot.lane.b32.xlu0 %v221, 72
  %v1531 = vpop.permute.xlu0 %1530
  %1532 = vrot.lane.b32.xlu0 %v226, 72
  %v1533 = vpop.permute.xlu0 %1532
  %1534 = vrot.lane.b32.xlu0 %v231, 72
  %v1535 = vpop.permute.xlu0 %1534
  %1536 = vrot.lane.b32.xlu0 %v236, 72
  %v1537 = vpop.permute.xlu0 %1536
  %1538 = vrot.lane.b32.xlu0 %v241, 72
  %v1539 = vpop.permute.xlu0 %1538
  %v1540 = vsel %vm268, %v1521, 0
  %v1542 = vsel %vm268, %v1523, 0
  %v1544 = vsel %vm268, %v1525, 0
  %v1546 = vsel %vm268, %v1527, 0
  %v1548 = vsel %vm268, %v1529, 0
  %v1550 = vsel %vm268, %v1531, 0
  %v1552 = vsel %vm268, %v1533, 0
  %v1554 = vsel %vm268, %v1535, 0
  %v1556 = vsel %vm268, %v1537, 0
  %v1558 = vsel %vm268, %v1539, 0
  %1560 = vmatprep.subr.mxu0 0.0
  %1561 = vmatpush1.xpose.msra.mxu0 %v1550
  %1562 = vmatprep.subr.mxu0 0.0
  %1563 = vmatpush1.xpose.msra.mxu0 %v1552
  %1564 = vmatprep.subr.mxu0 0.0
  %1565 = vmatpush1.xpose.msra.mxu0 %v1554
  %1566 = vmatprep.subr.mxu0 0.0
  %1567 = vmatpush1.xpose.msra.mxu0 %v1556
  %1568 = vmatprep.subr.mxu0 0.0
  %1569 = vmatpush1.xpose.msra.mxu0 %v1558
  %1570 = vmatprep.subr.mxu0 0.0
  %1571 = vmatpush1.xpose.msra.mxu0 0.0
  %1572 = vmatprep.subr.mxu0 0.0
  %1573 = vmatpush1.xpose.msra.mxu0 0.0
  %1574 = vmatprep.subr.mxu0 0.0
  %1575 = vmatpush1.xpose.msra.mxu0 0.0
  %1576 = vmatprep.subr.mxu0 0.0
  %1577 = vmatpush1.xpose.msra.mxu0 0.0
  %1578 = vmatprep.subr.mxu0 0.0
  %1579 = vmatpush1.xpose.msra.mxu0 0.0
  %1580 = vmatprep.subr.mxu0 0.0
  %1581 = vmatpush1.xpose.msra.mxu0 0.0
  %1582 = vmatprep.subr.mxu0 0.0
  %1583 = vmatpush1.xpose.msra.mxu0 0.0
  %1584 = vmatprep.subr.mxu0 0.0
  %1585 = vmatpush1.xpose.msra.mxu0 0.0
  %1586 = vmatprep.subr.mxu0 0.0
  %1587 = vmatpush1.xpose.msra.mxu0 0.0
  %1588 = vmatprep.subr.mxu0 0.0
  %1589 = vmatpush1.xpose.msra.mxu0 0.0
  %1590 = vmatprep.subr.mxu0 0.0
  %1591 = vmatpush1.xpose.msra.mxu0 0.0
  %1592 = vmatprep.subr.mxu0 0.0
  %1593 = vmatpush1.xpose.msra.mxu0 0.0
  %1594 = vmatprep.subr.mxu0 0.0
  %1595 = vmatpush1.xpose.msra.mxu0 0.0
  %1596 = vmatprep.subr.mxu0 0.0
  %1597 = vmatpush1.xpose.msra.mxu0 0.0
  %1598 = vmatprep.subr.mxu0 0.0
  %1599 = vmatpush1.xpose.msra.mxu0 0.0
  %1600 = vmatprep.subr.mxu0 0.0
  %1601 = vmatpush1.xpose.msra.mxu0 0.0
  %1602 = vmatprep.subr.mxu0 0.0
  %1603 = vmatpush1.xpose.msra.mxu0 0.0
  %1604 = vmatprep.subr.mxu0 0.0
  %1605 = vmatpush1.xpose.msra.mxu0 0.0
  %1606 = vmatprep.subr.mxu0 0.0
  %1607 = vmatpush1.xpose.msra.mxu0 0.0
  %1608 = vmatprep.subr.mxu0 0.0
  %1609 = vmatpush1.xpose.msra.mxu0 0.0
  %1610 = vmatprep.subr.mxu0 0.0
  %1611 = vmatpush1.xpose.msra.mxu0 0.0
  %1612 = vmatprep.subr.mxu0 0.0
  %1613 = vmatpush1.xpose.msra.mxu0 0.0
  %1614 = vmatprep.subr.mxu0 0.0
  %1615 = vmatpush1.xpose.msra.mxu0 0.0
  %1616 = vmatprep.subr.mxu0 0.0
  %1617 = vmatpush1.xpose.msra.mxu0 0.0
  %1618 = vmatprep.subr.mxu0 0.0
  %1619 = vmatpush1.xpose.msra.mxu0 0.0
  %1620 = vmatprep.subr.mxu0 0.0
  %1621 = vmatpush1.xpose.msra.mxu0 0.0
  %1622 = vmatprep.subr.mxu0 0.0
  %1623 = vmatpush1.xpose.msra.mxu0 0.0
  %1624 = vmatprep.mubr.f32.mxu0 0.0
  %1625 = vmatmul.mubr.f32.gmra.mrb[0].mxu0 %v1540
  %v1626 = vpop.f32.mrb[0].mxu0
  %v1627 = vadd.f32 0.0, %v1626
  %v1628 = vpop.f32.mrb[0].mxu0
  %1629 = vmatprep.mubr.f32.mxu0 0.0
  %1630 = vmatmul.mubr.f32.gmra.mrb[0].mxu0 %v1542
  %v1631 = vpop.f32.mrb[0].mxu0
  %v1632 = vadd.f32 0.0, %v1631
  %v1633 = vpop.f32.mrb[0].mxu0
  %1634 = vmatprep.mubr.f32.mxu0 0.0
  %1635 = vmatmul.mubr.f32.gmra.mrb[0].mxu0 %v1544
  %v1636 = vpop.f32.mrb[0].mxu0
  %v1637 = vadd.f32 0.0, %v1636
  %v1638 = vpop.f32.mrb[0].mxu0
  %1639 = vmatprep.mubr.f32.mxu0 0.0
  %1640 = vmatmul.mubr.f32.gmra.mrb[0].mxu0 %v1546
  %v1641 = vpop.f32.mrb[0].mxu0
  %v1642 = vadd.f32 0.0, %v1641
  %v1643 = vpop.f32.mrb[0].mxu0
  %1644 = vmatprep.mubr.f32.mxu0 0.0
  %1645 = vmatmul.mubr.f32.gmra.mrb[0].mxu0 %v1548
  %v1646 = vpop.f32.mrb[0].mxu0
  %v1647 = vadd.f32 0.0, %v1646
  %v1648 = vpop.f32.mrb[0].mxu0
  %1649 = vdwg.mxu0
  %v1650 = vmul.f32 %v1627, 0.35355338
  %v1651 = vmul.f32 %v1632, 0.35355338
  %v1652 = vmul.f32 %v1637, 0.35355338
  %v1653 = vmul.f32 %v1642, 0.35355338
  %v1654 = vmul.f32 %v1647, 0.35355338
  %v1655 = vadd.f32 %v1650, %v244
  %v1656 = vadd.f32 %v1651, %v245
  %v1657 = vadd.f32 %v1652, %v246
  %v1658 = vadd.f32 %v1653, %v247
  %v1659 = vadd.f32 %v1654, %v248
  %v1660 = vsel %vm389, %v1655, -inf
  %1661 = vmax.xlane.f32.xlu0 %v1660
  %v1662 = vpop.xlane.xlu0 %1661
  %v1663 = vsel %vm389, %v1656, -inf
  %1664 = vmax.xlane.f32.xlu0 %v1663
  %v1665 = vpop.xlane.xlu0 %1664
  %v1666 = vsel %vm389, %v1657, -inf
  %1667 = vmax.xlane.f32.xlu0 %v1666
  %v1668 = vpop.xlane.xlu0 %1667
  %v1669 = vsel %vm389, %v1658, -inf
  %1670 = vmax.xlane.f32.xlu0 %v1669
  %v1671 = vpop.xlane.xlu0 %1670
  %v1672 = vsel %vm402, %v1659, -inf
  %1673 = vmax.xlane.f32.xlu0 %v1672
  %v1674 = vpop.xlane.xlu0 %1673
  %v1675 = vsub.f32 %v1655, %v1662
  %v1676 = vsub.f32 %v1656, %v1665
  %v1677 = vsub.f32 %v1657, %v1668
  %v1678 = vsub.f32 %v1658, %v1671
  %v1679 = vsub.f32 %v1659, %v1674
  %v1680 = vmul.f32 %v1675, 1.442695
  %v1681 = vpow.pop %v1680
  %v1682 = vmul.f32 %v1676, 1.442695
  %v1683 = vpow.pop %v1682
  %v1684 = vmul.f32 %v1677, 1.442695
  %v1685 = vpow.pop %v1684
  %v1686 = vmul.f32 %v1678, 1.442695
  %v1687 = vpow.pop %v1686
  %v1688 = vmul.f32 %v1679, 1.442695
  %v1689 = vpow.pop %v1688
  %v1690 = vsel %vm389, %v1681, 0.0
  %1691 = vadd.xlane.f32.xlu0 %v1690
  %v1692 = vpop.xlane.xlu0 %1691
  %v1693 = vsel %vm389, %v1683, 0.0
  %1694 = vadd.xlane.f32.xlu0 %v1693
  %v1695 = vpop.xlane.xlu0 %1694
  %v1696 = vsel %vm389, %v1685, 0.0
  %1697 = vadd.xlane.f32.xlu0 %v1696
  %v1698 = vpop.xlane.xlu0 %1697
  %v1699 = vsel %vm389, %v1687, 0.0
  %1700 = vadd.xlane.f32.xlu0 %v1699
  %v1701 = vpop.xlane.xlu0 %1700
  %v1702 = vsel %vm402, %v1689, 0.0
  %1703 = vadd.xlane.f32.xlu0 %v1702
  %v1704 = vpop.xlane.xlu0 %1703
  %v1705 = vrcp.pop %v1692
  %v1706 = vmul.f32 %v1681, %v1705
  %v1707 = vrcp.pop %v1695
  %v1708 = vmul.f32 %v1683, %v1707
  %v1709 = vrcp.pop %v1698
  %v1710 = vmul.f32 %v1685, %v1709
  %v1711 = vrcp.pop %v1701
  %v1712 = vmul.f32 %v1687, %v1711
  %v1713 = vrcp.pop %v1704
  %v1714 = vmul.f32 %v1689, %v1713
  %1715 = vrot.lane.b32.xlu0 %v221, 40
  %v1716 = vpop.permute.xlu0 %1715
  %1717 = vrot.lane.b32.xlu0 %v226, 40
  %v1718 = vpop.permute.xlu0 %1717
  %1719 = vrot.lane.b32.xlu0 %v231, 40
  %v1720 = vpop.permute.xlu0 %1719
  %1721 = vrot.lane.b32.xlu0 %v236, 40
  %v1722 = vpop.permute.xlu0 %1721
  %1723 = vrot.lane.b32.xlu0 %v241, 40
  %v1724 = vpop.permute.xlu0 %1723
  %v1730 = vsel %vm389, %v1706, 0
  %v1733 = vsel %vm389, %v1708, 0
  %v1736 = vsel %vm389, %v1710, 0
  %v1739 = vsel %vm389, %v1712, 0
  %v1742 = vsel %vm389, %v1714, 0
  %v1744 = vsel %vm475, %v1724, 0
  %1746 = vmatprep.subr.mxu0 0.0
  %1747 = vmatpush1.msra.mxu0 %v1716
  %1748 = vmatprep.subr.mxu0 0.0
  %1749 = vmatpush1.msra.mxu0 %v1718
  %1750 = vmatprep.subr.mxu0 0.0
  %1751 = vmatpush1.msra.mxu0 %v1720
  %1752 = vmatprep.subr.mxu0 0.0
  %1753 = vmatpush1.msra.mxu0 %v1722
  %1754 = vmatprep.subr.mxu0 0.0
  %1755 = vmatpush1.msra.mxu0 %v1744
  %1756 = vmatprep.subr.mxu0 0.0
  %1757 = vmatpush1.msra.mxu0 0.0
  %1758 = vmatprep.subr.mxu0 0.0
  %1759 = vmatpush1.msra.mxu0 0.0
  %1760 = vmatprep.subr.mxu0 0.0
  %1761 = vmatpush1.msra.mxu0 0.0
  %1762 = vmatprep.subr.mxu0 0.0
  %1763 = vmatpush1.msra.mxu0 0.0
  %1764 = vmatprep.subr.mxu0 0.0
  %1765 = vmatpush1.msra.mxu0 0.0
  %1766 = vmatprep.subr.mxu0 0.0
  %1767 = vmatpush1.msra.mxu0 0.0
  %1768 = vmatprep.subr.mxu0 0.0
  %1769 = vmatpush1.msra.mxu0 0.0
  %1770 = vmatprep.subr.mxu0 0.0
  %1771 = vmatpush1.msra.mxu0 0.0
  %1772 = vmatprep.subr.mxu0 0.0
  %1773 = vmatpush1.msra.mxu0 0.0
  %1774 = vmatprep.subr.mxu0 0.0
  %1775 = vmatpush1.msra.mxu0 0.0
  %1776 = vmatprep.subr.mxu0 0.0
  %1777 = vmatpush1.msra.mxu0 0.0
  %1778 = vmatprep.subr.mxu0 0.0
  %1779 = vmatpush1.msra.mxu0 0.0
  %1780 = vmatprep.subr.mxu0 0.0
  %1781 = vmatpush1.msra.mxu0 0.0
  %1782 = vmatprep.subr.mxu0 0.0
  %1783 = vmatpush1.msra.mxu0 0.0
  %1784 = vmatprep.subr.mxu0 0.0
  %1785 = vmatpush1.msra.mxu0 0.0
  %1786 = vmatprep.subr.mxu0 0.0
  %1787 = vmatpush1.msra.mxu0 0.0
  %1788 = vmatprep.subr.mxu0 0.0
  %1789 = vmatpush1.msra.mxu0 0.0
  %1790 = vmatprep.subr.mxu0 0.0
  %1791 = vmatpush1.msra.mxu0 0.0
  %1792 = vmatprep.subr.mxu0 0.0
  %1793 = vmatpush1.msra.mxu0 0.0
  %1794 = vmatprep.subr.mxu0 0.0
  %1795 = vmatpush1.msra.mxu0 0.0
  %1796 = vmatprep.subr.mxu0 0.0
  %1797 = vmatpush1.msra.mxu0 0.0
  %1798 = vmatprep.subr.mxu0 0.0
  %1799 = vmatpush1.msra.mxu0 0.0
  %1800 = vmatprep.subr.mxu0 0.0
  %1801 = vmatpush1.msra.mxu0 0.0
  %1802 = vmatprep.subr.mxu0 0.0
  %1803 = vmatpush1.msra.mxu0 0.0
  %1804 = vmatprep.subr.mxu0 0.0
  %1805 = vmatpush1.msra.mxu0 0.0
  %1806 = vmatprep.subr.mxu0 0.0
  %1807 = vmatpush1.msra.mxu0 0.0
  %1808 = vmatprep.subr.mxu0 0.0
  %1809 = vmatpush1.msra.mxu0 0.0
  %1810 = vmatprep.mubr.f32.mxu0 0.0
  %1811 = vmatmul.mubr.f32.gmra.mrb[0].mxu0 %v1730
  %v1812 = vpop.f32.mrb[0].mxu0
  %v1813 = vadd.f32 0.0, %v1812
  %v1814 = vpop.f32.mrb[0].mxu0
  %1815 = vmatprep.mubr.f32.mxu0 0.0
  %1816 = vmatmul.mubr.f32.gmra.mrb[0].mxu0 %v1733
  %v1817 = vpop.f32.mrb[0].mxu0
  %v1818 = vadd.f32 0.0, %v1817
  %v1819 = vpop.f32.mrb[0].mxu0
  %1820 = vmatprep.mubr.f32.mxu0 0.0
  %1821 = vmatmul.mubr.f32.gmra.mrb[0].mxu0 %v1736
  %v1822 = vpop.f32.mrb[0].mxu0
  %v1823 = vadd.f32 0.0, %v1822
  %v1824 = vpop.f32.mrb[0].mxu0
  %1825 = vmatprep.mubr.f32.mxu0 0.0
  %1826 = vmatmul.mubr.f32.gmra.mrb[0].mxu0 %v1739
  %v1827 = vpop.f32.mrb[0].mxu0
  %v1828 = vadd.f32 0.0, %v1827
  %v1829 = vpop.f32.mrb[0].mxu0
  %1830 = vmatprep.mubr.f32.mxu0 0.0
  %1831 = vmatmul.mubr.f32.gmra.mrb[0].mxu0 %v1742
  %v1832 = vpop.f32.mrb[0].mxu0
  %v1833 = vadd.f32 0.0, %v1832
  %v1834 = vpop.f32.mrb[0].mxu0
  %1835 = vdwg.mxu0
  %v1837 = vsel %vm268, %v1813, 0
  %v1840 = vsel %vm268, %v1818, 0
  %v1843 = vsel %vm268, %v1823, 0
  %v1846 = vsel %vm268, %v1828, 0
  %v1849 = vsel %vm268, %v1833, 0
  %1851 = vmatprep.subr.mxu0 0.0
  %1852 = vmatpush1.msra.mxu0 %v252
  %1853 = vmatprep.subr.mxu0 0.0
  %1854 = vmatpush1.msra.mxu0 0.0
  %1855 = vmatprep.subr.mxu0 0.0
  %1856 = vmatpush1.msra.mxu0 0.0
  %1857 = vmatprep.subr.mxu0 0.0
  %1858 = vmatpush1.msra.mxu0 0.0
  %1859 = vmatprep.subr.mxu0 0.0
  %1860 = vmatpush1.msra.mxu0 0.0
  %1861 = vmatprep.subr.mxu0 0.0
  %1862 = vmatpush1.msra.mxu0 0.0
  %1863 = vmatprep.subr.mxu0 0.0
  %1864 = vmatpush1.msra.mxu0 0.0
  %1865 = vmatprep.subr.mxu0 0.0
  %1866 = vmatpush1.msra.mxu0 0.0
  %1867 = vmatprep.subr.mxu0 0.0
  %1868 = vmatpush1.msra.mxu0 0.0
  %1869 = vmatprep.subr.mxu0 0.0
  %1870 = vmatpush1.msra.mxu0 0.0
  %1871 = vmatprep.subr.mxu0 0.0
  %1872 = vmatpush1.msra.mxu0 0.0
  %1873 = vmatprep.subr.mxu0 0.0
  %1874 = vmatpush1.msra.mxu0 0.0
  %1875 = vmatprep.subr.mxu0 0.0
  %1876 = vmatpush1.msra.mxu0 0.0
  %1877 = vmatprep.subr.mxu0 0.0
  %1878 = vmatpush1.msra.mxu0 0.0
  %1879 = vmatprep.subr.mxu0 0.0
  %1880 = vmatpush1.msra.mxu0 0.0
  %1881 = vmatprep.subr.mxu0 0.0
  %1882 = vmatpush1.msra.mxu0 0.0
  %1883 = vmatprep.subr.mxu0 0.0
  %1884 = vmatpush1.msra.mxu0 0.0
  %1885 = vmatprep.subr.mxu0 0.0
  %1886 = vmatpush1.msra.mxu0 0.0
  %1887 = vmatprep.subr.mxu0 0.0
  %1888 = vmatpush1.msra.mxu0 0.0
  %1889 = vmatprep.subr.mxu0 0.0
  %1890 = vmatpush1.msra.mxu0 0.0
  %1891 = vmatprep.subr.mxu0 0.0
  %1892 = vmatpush1.msra.mxu0 0.0
  %1893 = vmatprep.subr.mxu0 0.0
  %1894 = vmatpush1.msra.mxu0 0.0
  %1895 = vmatprep.subr.mxu0 0.0
  %1896 = vmatpush1.msra.mxu0 0.0
  %1897 = vmatprep.subr.mxu0 0.0
  %1898 = vmatpush1.msra.mxu0 0.0
  %1899 = vmatprep.subr.mxu0 0.0
  %1900 = vmatpush1.msra.mxu0 0.0
  %1901 = vmatprep.subr.mxu0 0.0
  %1902 = vmatpush1.msra.mxu0 0.0
  %1903 = vmatprep.subr.mxu0 0.0
  %1904 = vmatpush1.msra.mxu0 0.0
  %1905 = vmatprep.subr.mxu0 0.0
  %1906 = vmatpush1.msra.mxu0 0.0
  %1907 = vmatprep.subr.mxu0 0.0
  %1908 = vmatpush1.msra.mxu0 0.0
  %1909 = vmatprep.subr.mxu0 0.0
  %1910 = vmatpush1.msra.mxu0 0.0
  %1911 = vmatprep.subr.mxu0 0.0
  %1912 = vmatpush1.msra.mxu0 0.0
  %1913 = vmatprep.subr.mxu0 0.0
  %1914 = vmatpush1.msra.mxu0 0.0
  %1915 = vmatprep.mubr.f32.mxu0 0.0
  %1916 = vmatmul.mubr.f32.gmra.mrb[0].mxu0 %v1837
  %v1917 = vpop.f32.mrb[0].mxu0
  %v1918 = vadd.f32 0.0, %v1917
  %v1919 = vpop.f32.mrb[0].mxu0
  %1920 = vmatprep.mubr.f32.mxu0 0.0
  %1921 = vmatmul.mubr.f32.gmra.mrb[0].mxu0 %v1840
  %v1922 = vpop.f32.mrb[0].mxu0
  %v1923 = vadd.f32 0.0, %v1922
  %v1924 = vpop.f32.mrb[0].mxu0
  %1925 = vmatprep.mubr.f32.mxu0 0.0
  %1926 = vmatmul.mubr.f32.gmra.mrb[0].mxu0 %v1843
  %v1927 = vpop.f32.mrb[0].mxu0
  %v1928 = vadd.f32 0.0, %v1927
  %v1929 = vpop.f32.mrb[0].mxu0
  %1930 = vmatprep.mubr.f32.mxu0 0.0
  %1931 = vmatmul.mubr.f32.gmra.mrb[0].mxu0 %v1846
  %v1932 = vpop.f32.mrb[0].mxu0
  %v1933 = vadd.f32 0.0, %v1932
  %v1934 = vpop.f32.mrb[0].mxu0
  %1935 = vmatprep.mubr.f32.mxu0 0.0
  %1936 = vmatmul.mubr.f32.gmra.mrb[0].mxu0 %v1849
  %v1937 = vpop.f32.mrb[0].mxu0
  %v1938 = vadd.f32 0.0, %v1937
  %v1939 = vpop.f32.mrb[0].mxu0
  %1940 = vdwg.mxu0
  %v1941 = vadd.f32 %v1515, %v1918
  %v1942 = vadd.f32 %v1516, %v1923
  %v1943 = vadd.f32 %v1517, %v1928
  %v1944 = vadd.f32 %v1518, %v1933
  %v1945 = vadd.f32 %v1519, %v1938
  %v1946 = vadd.f32 %v47, %v1941
  %v1947 = vadd.f32 %v48, %v1942
  %v1948 = vadd.f32 %v49, %v1943
  %v1949 = vadd.f32 %v50, %v1944
  %v1950 = vadd.f32 %v51, %v1945
  %v1951 = vld [vmem:[%s7] sm:$0x1]
  %v1953 = vlaneseq
  %v1954 = vshrl.u32 %v1953, 7
  %v1955 = vsub.s32 0, %v1954
  %v1956 = vrot.slane %v1951, %v1955
  %v1958 = vadd.f32 %v1946, %v1956
  %v1959 = vadd.f32 %v1947, %v1956
  %v1960 = vadd.f32 %v1948, %v1956
  %v1961 = vadd.f32 %v1949, %v1956
  %v1962 = vadd.f32 %v1950, %v1956
  %v1963 = vsel %vm52, %v1958, 0.0
  %v1964 = vsel %vm52, %v1959, 0.0
  %v1965 = vadd.f32 %v1963, %v1964
  %v1966 = vsel %vm52, %v1960, 0.0
  %v1967 = vadd.f32 %v1965, %v1966
  %v1968 = vsel %vm52, %v1961, 0.0
  %v1969 = vadd.f32 %v1967, %v1968
  %v1970 = vsel %vm60, %v1962, 0.0
  %v1971 = vadd.f32 %v1969, %v1970
  %v1972 = vrot.slane %v1971, 4
  %v1973 = vadd.f32 %v1971, %v1972
  %v1974 = vrot.slane %v1973, 2
  %v1975 = vadd.f32 %v1973, %v1974
  %v1976 = vrot.slane %v1975, 1
  %v1977 = vadd.f32 %v1975, %v1976
  %v1978 = vmul.f32 %v1977, %v69
  %v1979 = vsub.f32 %v1958, %v1978
  %v1980 = vsub.f32 %v1959, %v1978
  %v1981 = vsub.f32 %v1960, %v1978
  %v1982 = vsub.f32 %v1961, %v1978
  %v1983 = vsub.f32 %v1962, %v1978
  %v1984 = vmul.f32 %v1979, %v1979
  %v1985 = vmul.f32 %v1980, %v1980
  %v1986 = vmul.f32 %v1981, %v1981
  %v1987 = vmul.f32 %v1982, %v1982
  %v1988 = vmul.f32 %v1983, %v1983
  %v1989 = vsel %vm52, %v1984, 0.0
  %v1990 = vsel %vm52, %v1985, 0.0
  %v1991 = vadd.f32 %v1989, %v1990
  %v1992 = vsel %vm52, %v1986, 0.0
  %v1993 = vadd.f32 %v1991, %v1992
  %v1994 = vsel %vm52, %v1987, 0.0
  %v1995 = vadd.f32 %v1993, %v1994
  %v1996 = vsel %vm60, %v1988, 0.0
  %v1997 = vadd.f32 %v1995, %v1996
  %v1998 = vrot.slane %v1997, 4
  %v1999 = vadd.f32 %v1997, %v1998
  %v2000 = vrot.slane %v1999, 2
  %v2001 = vadd.f32 %v1999, %v2000
  %v2002 = vrot.slane %v2001, 1
  %v2003 = vadd.f32 %v2001, %v2002
  %v2004 = vmul.f32 %v2003, %v69
  %v2005 = vadd.f32 %v2004, 1e-05
  %v2006 = vrsqrt.pop %v2005
  %v2007 = vmul.f32 %v1979, %v2006
  %v2008 = vmul.f32 %v1980, %v2006
  %v2009 = vmul.f32 %v1981, %v2006
  %v2010 = vmul.f32 %v1982, %v2006
  %v2011 = vmul.f32 %v1983, %v2006
  %v2012 = vld [vmem:[%s8] sm:$0x1]
  %v2014 = vlaneseq
  %v2015 = vshrl.u32 %v2014, 7
  %v2016 = vsub.s32 0, %v2015
  %v2017 = vrot.slane %v2012, %v2016
  %v2019 = vmul.f32 %v2007, %v2017
  %v2020 = vmul.f32 %v2008, %v2017
  %v2021 = vmul.f32 %v2009, %v2017
  %v2022 = vmul.f32 %v2010, %v2017
  %v2023 = vmul.f32 %v2011, %v2017
  %v2024 = vld [vmem:[%s9] sm:$0x1]
  %v2026 = vlaneseq
  %v2027 = vshrl.u32 %v2026, 7
  %v2028 = vsub.s32 0, %v2027
  %v2029 = vrot.slane %v2024, %v2028
  %v2031 = vadd.f32 %v2019, %v2029
  %v2032 = vadd.f32 %v2020, %v2029
  %v2033 = vadd.f32 %v2021, %v2029
  %v2034 = vadd.f32 %v2022, %v2029
  %v2035 = vadd.f32 %v2023, %v2029
  %v2036 = vld [vmem:[%s10] sm:$0xff]
  %v2037 = vld [vmem:[%s10 + $0x8] sm:$0xff]
  %v2038 = vld [vmem:[%s10 + $0x10] sm:$0xff]
  %v2039 = vld [vmem:[%s10 + $0x18] sm:$0xff]
  %v2040 = vld [vmem:[%s11] sm:$0x1]
  %v2042 = vlaneseq
  %v2043 = vshrl.u32 %v2042, 7
  %v2044 = vsub.s32 0, %v2043
  %v2045 = vrot.slane %v2040, %v2044
  %v2048 = vsel %vm52, %v2031, 0
  %v2051 = vsel %vm52, %v2032, 0
  %v2054 = vsel %vm52, %v2033, 0
  %v2057 = vsel %vm52, %v2034, 0
  %v2060 = vsel %vm52, %v2035, 0
  %2062 = vmatprep.subr.mxu0 0.0
  %2063 = vmatpush1.msra.mxu0 %v2036
  %2064 = vmatprep.subr.mxu0 0.0
  %2065 = vmatpush1.msra.mxu0 %v2037
  %2066 = vmatprep.subr.mxu0 0.0
  %2067 = vmatpush1.msra.mxu0 %v2038
  %2068 = vmatprep.subr.mxu0 0.0
  %2069 = vmatpush1.msra.mxu0 %v2039
  %2070 = vmatprep.subr.mxu0 0.0
  %2071 = vmatpush1.msra.mxu0 0.0
  %2072 = vmatprep.subr.mxu0 0.0
  %2073 = vmatpush1.msra.mxu0 0.0
  %2074 = vmatprep.subr.mxu0 0.0
  %2075 = vmatpush1.msra.mxu0 0.0
  %2076 = vmatprep.subr.mxu0 0.0
  %2077 = vmatpush1.msra.mxu0 0.0
  %2078 = vmatprep.subr.mxu0 0.0
  %2079 = vmatpush1.msra.mxu0 0.0
  %2080 = vmatprep.subr.mxu0 0.0
  %2081 = vmatpush1.msra.mxu0 0.0
  %2082 = vmatprep.subr.mxu0 0.0
  %2083 = vmatpush1.msra.mxu0 0.0
  %2084 = vmatprep.subr.mxu0 0.0
  %2085 = vmatpush1.msra.mxu0 0.0
  %2086 = vmatprep.subr.mxu0 0.0
  %2087 = vmatpush1.msra.mxu0 0.0
  %2088 = vmatprep.subr.mxu0 0.0
  %2089 = vmatpush1.msra.mxu0 0.0
  %2090 = vmatprep.subr.mxu0 0.0
  %2091 = vmatpush1.msra.mxu0 0.0
  %2092 = vmatprep.subr.mxu0 0.0
  %2093 = vmatpush1.msra.mxu0 0.0
  %2094 = vmatprep.subr.mxu0 0.0
  %2095 = vmatpush1.msra.mxu0 0.0
  %2096 = vmatprep.subr.mxu0 0.0
  %2097 = vmatpush1.msra.mxu0 0.0
  %2098 = vmatprep.subr.mxu0 0.0
  %2099 = vmatpush1.msra.mxu0 0.0
  %2100 = vmatprep.subr.mxu0 0.0
  %2101 = vmatpush1.msra.mxu0 0.0
  %2102 = vmatprep.subr.mxu0 0.0
  %2103 = vmatpush1.msra.mxu0 0.0
  %2104 = vmatprep.subr.mxu0 0.0
  %2105 = vmatpush1.msra.mxu0 0.0
  %2106 = vmatprep.subr.mxu0 0.0
  %2107 = vmatpush1.msra.mxu0 0.0
  %2108 = vmatprep.subr.mxu0 0.0
  %2109 = vmatpush1.msra.mxu0 0.0
  %2110 = vmatprep.subr.mxu0 0.0
  %2111 = vmatpush1.msra.mxu0 0.0
  %2112 = vmatprep.subr.mxu0 0.0
  %2113 = vmatpush1.msra.mxu0 0.0
  %2114 = vmatprep.subr.mxu0 0.0
  %2115 = vmatpush1.msra.mxu0 0.0
  %2116 = vmatprep.subr.mxu0 0.0
  %2117 = vmatpush1.msra.mxu0 0.0
  %2118 = vmatprep.subr.mxu0 0.0
  %2119 = vmatpush1.msra.mxu0 0.0
  %2120 = vmatprep.subr.mxu0 0.0
  %2121 = vmatpush1.msra.mxu0 0.0
  %2122 = vmatprep.subr.mxu0 0.0
  %2123 = vmatpush1.msra.mxu0 0.0
  %2124 = vmatprep.subr.mxu0 0.0
  %2125 = vmatpush1.msra.mxu0 0.0
  %2126 = vmatprep.mubr.f32.mxu0 0.0
  %2127 = vmatmul.mubr.f32.gmra.mrb[0].mxu0 %v2048
  %v2128 = vpop.f32.mrb[0].mxu0
  %v2129 = vadd.f32 %v2045, %v2128
  %v2130 = vpop.f32.mrb[0].mxu0
  %2131 = vmatprep.mubr.f32.mxu0 0.0
  %2132 = vmatmul.mubr.f32.gmra.mrb[0].mxu0 %v2051
  %v2133 = vpop.f32.mrb[0].mxu0
  %v2134 = vadd.f32 %v2045, %v2133
  %v2135 = vpop.f32.mrb[0].mxu0
  %2136 = vmatprep.mubr.f32.mxu0 0.0
  %2137 = vmatmul.mubr.f32.gmra.mrb[0].mxu0 %v2054
  %v2138 = vpop.f32.mrb[0].mxu0
  %v2139 = vadd.f32 %v2045, %v2138
  %v2140 = vpop.f32.mrb[0].mxu0
  %2141 = vmatprep.mubr.f32.mxu0 0.0
  %2142 = vmatmul.mubr.f32.gmra.mrb[0].mxu0 %v2057
  %v2143 = vpop.f32.mrb[0].mxu0
  %v2144 = vadd.f32 %v2045, %v2143
  %v2145 = vpop.f32.mrb[0].mxu0
  %2146 = vmatprep.mubr.f32.mxu0 0.0
  %2147 = vmatmul.mubr.f32.gmra.mrb[0].mxu0 %v2060
  %v2148 = vpop.f32.mrb[0].mxu0
  %v2149 = vadd.f32 %v2045, %v2148
  %v2150 = vpop.f32.mrb[0].mxu0
  %2151 = vdwg.mxu0
  %v2152 = vmul.f32 %v2129, 1.702
  %v2153 = vmul.f32 %v2134, 1.702
  %v2154 = vmul.f32 %v2139, 1.702
  %v2155 = vmul.f32 %v2144, 1.702
  %v2156 = vmul.f32 %v2149, 1.702
  %v2157 = vxor.u32 %v2152, 2147483648
  %v2158 = vxor.u32 %v2153, 2147483648
  %v2159 = vxor.u32 %v2154, 2147483648
  %v2160 = vxor.u32 %v2155, 2147483648
  %v2161 = vxor.u32 %v2156, 2147483648
  %v2162 = vmul.f32 %v2157, 1.442695
  %v2163 = vpow.pop %v2162
  %v2164 = vmul.f32 %v2158, 1.442695
  %v2165 = vpow.pop %v2164
  %v2166 = vmul.f32 %v2159, 1.442695
  %v2167 = vpow.pop %v2166
  %v2168 = vmul.f32 %v2160, 1.442695
  %v2169 = vpow.pop %v2168
  %v2170 = vmul.f32 %v2161, 1.442695
  %v2171 = vpow.pop %v2170
  %v2172 = vadd.f32 %v2163, 1.0
  %v2173 = vadd.f32 %v2165, 1.0
  %v2174 = vadd.f32 %v2167, 1.0
  %v2175 = vadd.f32 %v2169, 1.0
  %v2176 = vadd.f32 %v2171, 1.0
  %v2177 = vrcp.pop %v2172
  %v2178 = vmul.f32 1.0, %v2177
  %v2179 = vrcp.pop %v2173
  %v2180 = vmul.f32 1.0, %v2179
  %v2181 = vrcp.pop %v2174
  %v2182 = vmul.f32 1.0, %v2181
  %v2183 = vrcp.pop %v2175
  %v2184 = vmul.f32 1.0, %v2183
  %v2185 = vrcp.pop %v2176
  %v2186 = vmul.f32 1.0, %v2185
  %v2187 = vmul.f32 %v2129, %v2178
  %v2188 = vmul.f32 %v2134, %v2180
  %v2189 = vmul.f32 %v2139, %v2182
  %v2190 = vmul.f32 %v2144, %v2184
  %v2191 = vmul.f32 %v2149, %v2186
  %v2192 = vld [vmem:[%s12] sm:$0xff]
  %v2193 = vld [vmem:[%s12 + $0x8] sm:$0xff]
  %v2194 = vld [vmem:[%s12 + $0x10] sm:$0xff]
  %v2195 = vld [vmem:[%s12 + $0x18] sm:$0xff]
  %v2196 = vld [vmem:[%s12 + $0x20] sm:$0xff]
  %v2197 = vld [vmem:[%s12 + $0x28] sm:$0xff]
  %v2198 = vld [vmem:[%s12 + $0x30] sm:$0xff]
  %v2199 = vld [vmem:[%s12 + $0x38] sm:$0xff]
  %v2200 = vld [vmem:[%s12 + $0x40] sm:$0xff]
  %v2201 = vld [vmem:[%s12 + $0x48] sm:$0xff]
  %v2202 = vld [vmem:[%s12 + $0x50] sm:$0xff]
  %v2203 = vld [vmem:[%s12 + $0x58] sm:$0xff]
  %v2204 = vld [vmem:[%s12 + $0x60] sm:$0xff]
  %v2205 = vld [vmem:[%s12 + $0x68] sm:$0xff]
  %v2206 = vld [vmem:[%s12 + $0x70] sm:$0xff]
  %v2207 = vld [vmem:[%s12 + $0x78] sm:$0xff]
  %2208 = vmatprep.subr.mxu0 0.0
  %2209 = vmatpush1.msra.mxu0 %v2192
  %2210 = vmatprep.subr.mxu0 0.0
  %2211 = vmatpush1.msra.mxu0 %v2193
  %2212 = vmatprep.subr.mxu0 0.0
  %2213 = vmatpush1.msra.mxu0 %v2194
  %2214 = vmatprep.subr.mxu0 0.0
  %2215 = vmatpush1.msra.mxu0 %v2195
  %2216 = vmatprep.subr.mxu0 0.0
  %2217 = vmatpush1.msra.mxu0 %v2196
  %2218 = vmatprep.subr.mxu0 0.0
  %2219 = vmatpush1.msra.mxu0 %v2197
  %2220 = vmatprep.subr.mxu0 0.0
  %2221 = vmatpush1.msra.mxu0 %v2198
  %2222 = vmatprep.subr.mxu0 0.0
  %2223 = vmatpush1.msra.mxu0 %v2199
  %2224 = vmatprep.subr.mxu0 0.0
  %2225 = vmatpush1.msra.mxu0 %v2200
  %2226 = vmatprep.subr.mxu0 0.0
  %2227 = vmatpush1.msra.mxu0 %v2201
  %2228 = vmatprep.subr.mxu0 0.0
  %2229 = vmatpush1.msra.mxu0 %v2202
  %2230 = vmatprep.subr.mxu0 0.0
  %2231 = vmatpush1.msra.mxu0 %v2203
  %2232 = vmatprep.subr.mxu0 0.0
  %2233 = vmatpush1.msra.mxu0 %v2204
  %2234 = vmatprep.subr.mxu0 0.0
  %2235 = vmatpush1.msra.mxu0 %v2205
  %2236 = vmatprep.subr.mxu0 0.0
  %2237 = vmatpush1.msra.mxu0 %v2206
  %2238 = vmatprep.subr.mxu0 0.0
  %2239 = vmatpush1.msra.mxu0 %v2207
  %2240 = vmatprep.subr.mxu0 0.0
  %2241 = vmatpush1.msra.mxu0 0.0
  %2242 = vmatprep.subr.mxu0 0.0
  %2243 = vmatpush1.msra.mxu0 0.0
  %2244 = vmatprep.subr.mxu0 0.0
  %2245 = vmatpush1.msra.mxu0 0.0
  %2246 = vmatprep.subr.mxu0 0.0
  %2247 = vmatpush1.msra.mxu0 0.0
  %2248 = vmatprep.subr.mxu0 0.0
  %2249 = vmatpush1.msra.mxu0 0.0
  %2250 = vmatprep.subr.mxu0 0.0
  %2251 = vmatpush1.msra.mxu0 0.0
  %2252 = vmatprep.subr.mxu0 0.0
  %2253 = vmatpush1.msra.mxu0 0.0
  %2254 = vmatprep.subr.mxu0 0.0
  %2255 = vmatpush1.msra.mxu0 0.0
  %2256 = vmatprep.subr.mxu0 0.0
  %2257 = vmatpush1.msra.mxu0 0.0
  %2258 = vmatprep.subr.mxu0 0.0
  %2259 = vmatpush1.msra.mxu0 0.0
  %2260 = vmatprep.subr.mxu0 0.0
  %2261 = vmatpush1.msra.mxu0 0.0
  %2262 = vmatprep.subr.mxu0 0.0
  %2263 = vmatpush1.msra.mxu0 0.0
  %2264 = vmatprep.subr.mxu0 0.0
  %2265 = vmatpush1.msra.mxu0 0.0
  %2266 = vmatprep.subr.mxu0 0.0
  %2267 = vmatpush1.msra.mxu0 0.0
  %2268 = vmatprep.subr.mxu0 0.0
  %2269 = vmatpush1.msra.mxu0 0.0
  %2270 = vmatprep.subr.mxu0 0.0
  %2271 = vmatpush1.msra.mxu0 0.0
  %2272 = vmatprep.mubr.f32.mxu0 0.0
  %2273 = vmatmul.mubr.f32.gmra.mrb[0].mxu0 %v2187
  %v2274 = vpop.f32.mrb[0].mxu0
  %v2275 = vadd.f32 0.0, %v2274
  %v2276 = vpop.f32.mrb[0].mxu0
  %2277 = vmatprep.mubr.f32.mxu0 0.0
  %2278 = vmatmul.mubr.f32.gmra.mrb[0].mxu0 %v2188
  %v2279 = vpop.f32.mrb[0].mxu0
  %v2280 = vadd.f32 0.0, %v2279
  %v2281 = vpop.f32.mrb[0].mxu0
  %2282 = vmatprep.mubr.f32.mxu0 0.0
  %2283 = vmatmul.mubr.f32.gmra.mrb[0].mxu0 %v2189
  %v2284 = vpop.f32.mrb[0].mxu0
  %v2285 = vadd.f32 0.0, %v2284
  %v2286 = vpop.f32.mrb[0].mxu0
  %2287 = vmatprep.mubr.f32.mxu0 0.0
  %2288 = vmatmul.mubr.f32.gmra.mrb[0].mxu0 %v2190
  %v2289 = vpop.f32.mrb[0].mxu0
  %v2290 = vadd.f32 0.0, %v2289
  %v2291 = vpop.f32.mrb[0].mxu0
  %2292 = vmatprep.mubr.f32.mxu0 0.0
  %2293 = vmatmul.mubr.f32.gmra.mrb[0].mxu0 %v2191
  %v2294 = vpop.f32.mrb[0].mxu0
  %v2295 = vadd.f32 0.0, %v2294
  %v2296 = vpop.f32.mrb[0].mxu0
  %2297 = vdwg.mxu0
  %v2298 = vadd.f32 %v1958, %v2275
  %v2299 = vadd.f32 %v1959, %v2280
  %v2300 = vadd.f32 %v1960, %v2285
  %v2301 = vadd.f32 %v1961, %v2290
  %v2302 = vadd.f32 %v1962, %v2295
  %v2303 = vld [vmem:[%s13] sm:$0x1]
  %v2305 = vlaneseq
  %v2306 = vshrl.u32 %v2305, 7
  %v2307 = vsub.s32 0, %v2306
  %v2308 = vrot.slane %v2303, %v2307
  %v2310 = vadd.f32 %v2298, %v2308
  %v2311 = vadd.f32 %v2299, %v2308
  %v2312 = vadd.f32 %v2300, %v2308
  %v2313 = vadd.f32 %v2301, %v2308
  %v2314 = vadd.f32 %v2302, %v2308
  %2315 = vst.msk [vmem:[%s14] sm:$0xff] %vm52, %v2310
  %2316 = vst.msk [vmem:[%s14 + $0x8] sm:$0xff] %vm52, %v2311
  %2317 = vst.msk [vmem:[%s14 + $0x10] sm:$0xff] %vm52, %v2312
  %2318 = vst.msk [vmem:[%s14 + $0x18] sm:$0xff] %vm52, %v2313
  %2319 = vst.msk [vmem:[%s14 + $0x20] sm:$0x3] %vm60, %v2314
  // Predicated region
  $region58: #{discriminator_forward.4} parent=0 // pred_check
    _
  $region59: #{discriminator_forward.4} parent=0 // pred_check_branch
    %2321 = sbr.rel (0) target = $region61
  $region60: #{discriminator_forward.4} parent=0 // pred_region
    _
  $region61: #{discriminator_forward.4} parent=0 // pred_fallthru
    _
  // Predicated region
  $region62: #{discriminator_forward.4} parent=0 // pred_check
    _
  $region63: #{discriminator_forward.4} parent=0 // pred_check_branch
    %2323 = sbr.rel (0) target = $region65
  $region64: #{discriminator_forward.4} parent=0 // pred_region
    _
  $region65: #{discriminator_forward.4} parent=0 // pred_fallthru
    _

</llo_original>
